<compile_context>
chip_gen: v6e
topology: v6e:2x2x1
jax: 0.10.0
libtpu: 0.0.40
codegen_flags: <defaults>
</compile_context>

<pallas_src>
import functools

import jax
import jax.numpy as jnp
from jax import lax
from jax.experimental import pallas as pl
from jax.experimental.pallas import tpu as pltpu

WH = 80                         # SKConv default GAP kernel (AvgPool2d(80))
_VMEM_LIMIT = 32 * 1024 * 1024


# ----------------------------------------------------------------------------
# The fused kernel: single_conv -> SK branch convs -> spatial attention + GAP
#                   -> channel attention -> weighted combine, one image / step
# ----------------------------------------------------------------------------
def _up_sk_kernel(x_ref, wsc_ref, bsc_ref, w0_ref, b0_ref, w1_ref, b1_ref,
                  wsa_ref, sa_ref, wfct_ref, wa_ref, wb_ref,
                  o_ref, ypad_ref, f0_ref, f1_ref, fu_ref, *, cin, feat):
    """Layouts are (row, channel, width) planes; tiled dims = (channels, width).

    x_ref   : (1, H+2, cin, W+2) f32   input, spatial halo 1 (for single_conv)
    wsc_ref : (feat, 9*cin)      f32   single_conv weight, BN folded, K = (dy*3+dx)*cin+ci
    bsc_ref : (feat, 1)          f32
    w0/w1   : (feat, 9*feat)     bf16  SK branch convs (dense block-diag grouped), dil 1/2
    b0/b1   : (feat, 1)          f32
    wsa_ref : (9*feat, 1)        f32   conv_for_SA 3x3 weight (BN scale folded)
    sa_ref  : (3,) f32 in SMEM         [SA 3x3 bias, SA 1x1 weight, SA 1x1 bias]
    wfct    : (feat, d)          f32   fc weight, transposed
    wa/wb   : (feat, d)          f32   fcs_i weights (natural (features, d) layout)
    o_ref   : (1, H, feat, W)    f32   fea_v, (row, channel, width) layout
    ypad_ref: (H+4, feat, W+4)   bf16  scratch: single_conv output, halo 2 (dil-2 branch)
    f0/f1   : (H, feat, W)       f32   scratch: branch outputs fea_0 / fea_1
    fu_ref  : (H+2, feat, W+2)   f32   scratch: fea_U, halo 1 (SA conv input)
    """
    H = W = WH

    # ---- zero only the thin halo strips (interior is fully overwritten) ----
    ypad_ref[0:2] = jnp.zeros((2, feat, W + 4), jnp.bfloat16)
    ypad_ref[H + 2:H + 4] = jnp.zeros((2, feat, W + 4), jnp.bfloat16)
    ypad_ref[2:2 + H, :, 0:2] = jnp.zeros((H, feat, 2), jnp.bfloat16)
    ypad_ref[2:2 + H, :, W + 2:W + 4] = jnp.zeros((H, feat, 2), jnp.bfloat16)
    fu_ref[0] = jnp.zeros((feat, W + 2), jnp.float32)
    fu_ref[H + 1] = jnp.zeros((feat, W + 2), jnp.float32)
    fu_ref[1:1 + H, :, 0:1] = jnp.zeros((H, feat, 1), jnp.float32)
    fu_ref[1:1 + H, :, W + 1:W + 2] = jnp.zeros((H, feat, 1), jnp.float32)

    # ---- hoisted loop-invariant weight loads / broadcasts ------------------
    w_sc = wsc_ref[...]                                        # (feat, 9*cin)
    b_sc = jnp.broadcast_to(bsc_ref[...], (feat, W))
    w_b0 = w0_ref[...]                                         # (feat, 9*feat) bf16
    w_b1 = w1_ref[...]
    b_b0 = jnp.broadcast_to(b0_ref[...], (feat, W))
    b_b1 = jnp.broadcast_to(b1_ref[...], (feat, W))
    w_sa = jnp.broadcast_to(wsa_ref[...], (9 * feat, W))
    sa_b, sa2_w, sa2_b = sa_ref[0], sa_ref[1], sa_ref[2]

    # ---- 1) single_conv: 3x3 conv + folded BN + ReLU, ONE matmul per row ---
    def sconv_row(r, carry):
        g0 = x_ref[0, r]                                       # (cin, W+2)
        g1 = x_ref[0, r + 1]
        g2 = x_ref[0, r + 2]
        a = jnp.concatenate(
            [g[:, dx:dx + W] for g in (g0, g1, g2) for dx in range(3)], axis=0)
        y = jnp.dot(w_sc, a, preferred_element_type=jnp.float32)    # (feat, W)
        y = jnp.maximum(y + b_sc, 0.0)
        ypad_ref[2 + r, :, 2:2 + W] = y.astype(jnp.bfloat16)
        return carry

    lax.fori_loop(0, H, sconv_row, 0)

    # ---- 2) SK branch convs (dil 1 / dil 2) + fea_U, one K=144 matmul each --
    def branch_row(r, carry):
        g0 = ypad_ref[r]                                       # (feat, W+4) bf16
        g1 = ypad_ref[r + 1]
        g2 = ypad_ref[r + 2]
        g3 = ypad_ref[r + 3]
        g4 = ypad_ref[r + 4]
        # dilation 1, pad 1 -> padded rows r+1..r+3, column offsets 1..3
        a0 = jnp.concatenate(
            [g[:, 1 + dx:1 + dx + W] for g in (g1, g2, g3) for dx in range(3)], axis=0)
        fea0 = jnp.maximum(
            jnp.dot(w_b0, a0, preferred_element_type=jnp.float32) + b_b0, 0.0)
        f0_ref[r] = fea0
        # dilation 2, pad 2 -> padded rows r, r+2, r+4, column offsets 0, 2, 4
        a1 = jnp.concatenate(
            [g[:, 2 * dx:2 * dx + W] for g in (g0, g2, g4) for dx in range(3)], axis=0)
        fea1 = jnp.maximum(
            jnp.dot(w_b1, a1, preferred_element_type=jnp.float32) + b_b1, 0.0)
        f1_ref[r] = fea1
        fu_ref[1 + r, :, 1:1 + W] = fea0 + fea1
        return carry

    lax.fori_loop(0, H, branch_row, 0)

    # ---- 3) spatial attention (3x3 -> BN -> ReLU -> 1x1 -> sigmoid) + GAP ---
    def sa_row(r, acc):
        g0 = fu_ref[r]                                         # (feat, W+2)
        g1 = fu_ref[r + 1]
        g2 = fu_ref[r + 2]
        a = jnp.concatenate(
            [g[:, dx:dx + W] for g in (g0, g1, g2) for dx in range(3)], axis=0)
        att = jnp.sum(a * w_sa, axis=0, keepdims=True)          # (1, W)
        s = jax.nn.sigmoid(jnp.maximum(att + sa_b, 0.0) * sa2_w + sa2_b)
        return acc + fu_ref[r + 1, :, 1:1 + W] * s

    acc = lax.fori_loop(0, H, sa_row, jnp.zeros((feat, W), jnp.float32))
    fea_s = jnp.sum(acc, axis=1, keepdims=True) * (1.0 / float(H * W))   # (feat, 1)

    # ---- 4) channel attention: fc -> fcs -> softmax over the 2 branches ----
    z = jnp.sum(wfct_ref[...] * fea_s, axis=0, keepdims=True)           # (1, d)
    va = jnp.sum(wa_ref[...] * z, axis=1, keepdims=True)                # (feat, 1)
    vb = jnp.sum(wb_ref[...] * z, axis=1, keepdims=True)
    m = jnp.maximum(va, vb)
    ea = jnp.exp(va - m)
    eb = jnp.exp(vb - m)
    inv = 1.0 / (ea + eb)
    att0 = jnp.broadcast_to(ea * inv, (feat, W))
    att1 = jnp.broadcast_to(eb * inv, (feat, W))

    # ---- 5) fea_v = fea0 * att0 + fea1 * att1 -------------------------------
    def out_row(r, carry):
        o_ref[0, r] = f0_ref[r] * att0 + f1_ref[r] * att1
        return carry

    lax.fori_loop(0, H, out_row, 0)


# ----------------------------------------------------------------------------
# pallas_call wrapper
# ----------------------------------------------------------------------------
def _up_sk_call(x, wsc, bsc, w0, b0, w1, b1, wsa, sa_scalars, wfct, wa, wb,
                *, cin, feat):
    B = x.shape[0]
    d = wfct.shape[1]
    kernel = functools.partial(_up_sk_kernel, cin=cin, feat=feat)
    return pl.pallas_call(
        kernel,
        out_shape=jax.ShapeDtypeStruct((B, WH, feat, WH), jnp.float32),
        grid=(B,),
        in_specs=[
            pl.BlockSpec((1, WH + 2, cin, WH + 2), lambda b: (b, 0, 0, 0)),
            pl.BlockSpec((feat, 9 * cin), lambda b: (0, 0)),
            pl.BlockSpec((feat, 1), lambda b: (0, 0)),
            pl.BlockSpec((feat, 9 * feat), lambda b: (0, 0)),
            pl.BlockSpec((feat, 1), lambda b: (0, 0)),
            pl.BlockSpec((feat, 9 * feat), lambda b: (0, 0)),
            pl.BlockSpec((feat, 1), lambda b: (0, 0)),
            pl.BlockSpec((9 * feat, 1), lambda b: (0, 0)),
            pl.BlockSpec(memory_space=pltpu.MemorySpace.SMEM),
            pl.BlockSpec((feat, d), lambda b: (0, 0)),
            pl.BlockSpec((feat, d), lambda b: (0, 0)),
            pl.BlockSpec((feat, d), lambda b: (0, 0)),
        ],
        out_specs=pl.BlockSpec((1, WH, feat, WH), lambda b: (b, 0, 0, 0)),
        scratch_shapes=[
            pltpu.VMEM((WH + 4, feat, WH + 4), jnp.bfloat16),   # y, halo 2
            pltpu.VMEM((WH, feat, WH), jnp.float32),            # fea_0
            pltpu.VMEM((WH, feat, WH), jnp.float32),            # fea_1
            pltpu.VMEM((WH + 2, feat, WH + 2), jnp.float32),    # fea_U, halo 1
        ],
        compiler_params=pltpu.CompilerParams(
            dimension_semantics=("parallel",),
            vmem_limit_bytes=_VMEM_LIMIT),
    )(x, wsc, bsc, w0, b0, w1, b1, wsa, sa_scalars, wfct, wa, wb)


# ----------------------------------------------------------------------------
# JAX glue: parameter folding + data movement done once, outside the kernel
# ----------------------------------------------------------------------------
def _fold_conv_bn(w_oihw, conv_b, bn, eps=1e-5):
    """Conv(OIHW) + eval-BN -> LHS weight (O, 9*I) with K=(dy*3+dx)*I+ci, bias (O,1)."""
    cout = w_oihw.shape[0]
    scale = bn["gamma"] / jnp.sqrt(bn["var"] + eps)
    w2d = jnp.transpose(w_oihw, (0, 2, 3, 1)).reshape(cout, -1) * scale[:, None]
    bias = (conv_b - bn["mean"]) * scale + bn["beta"]
    return w2d, bias[:, None]


def _expand_grouped_weight(wg, cin, groups):
    """Grouped-conv weight (Cout, Cin/G, 3, 3) -> block-diagonal dense (Cout, Cin, 3, 3)."""
    cout, cin_g, kh, kw = wg.shape
    outs_g = cout // groups
    w = jnp.zeros((cout, cin, kh, kw), wg.dtype)
    for g in range(groups):
        w = w.at[g * outs_g:(g + 1) * outs_g,
                 g * cin_g:(g + 1) * cin_g].set(wg[g * outs_g:(g + 1) * outs_g])
    return w


def _upsample_bilinear_2x_align_corners(x):  # NCHW, nn.Upsample(2, bilinear, align_corners=True)
    B, C, H, W = x.shape
    Ho, Wo = 2 * H, 2 * W
    ys = jnp.arange(Ho, dtype=jnp.float32) * (H - 1) / (Ho - 1)
    xs = jnp.arange(Wo, dtype=jnp.float32) * (W - 1) / (Wo - 1)
    y0 = jnp.floor(ys).astype(jnp.int32)
    x0 = jnp.floor(xs).astype(jnp.int32)
    y1 = jnp.minimum(y0 + 1, H - 1)
    x1 = jnp.minimum(x0 + 1, W - 1)
    wy = (ys - y0.astype(jnp.float32))[None, None, :, None]
    wx = (xs - x0.astype(jnp.float32))[None, None, None, :]
    r0 = x[:, :, y0, :]
    r1 = x[:, :, y1, :]
    top = r0[:, :, :, x0] * (1 - wx) + r0[:, :, :, x1] * wx
    bot = r1[:, :, :, x0] * (1 - wx) + r1[:, :, :, x1] * wx
    return top * (1 - wy) + bot * wy


# ----------------------------------------------------------------------------
# Parameters (deterministic synthetic init, eval-mode BN statistics)
# ----------------------------------------------------------------------------
def _bn(key, c):
    k1, k2, k3, k4 = jax.random.split(key, 4)
    return {"gamma": 1.0 + 0.1 * jax.random.normal(k1, (c,), jnp.float32),
            "beta": 0.1 * jax.random.normal(k2, (c,), jnp.float32),
            "mean": 0.1 * jax.random.normal(k3, (c,), jnp.float32),
            "var": 0.5 + jax.random.uniform(k4, (c,), jnp.float32)}


def init_params(key, in_ch, out_ch, *, r=16, L=8, G=8):
    feats = out_ch
    d = max(int(feats / r), L)
    csa = feats // r
    assert csa == 1, "spatial-attention 1x1 conv handled as scalars; use out_ch == 16."
    ks = jax.random.split(key, 17)
    rnd = lambda k, s: 0.1 * jax.random.normal(k, s, jnp.float32)
    p = {}
    # single_conv
    p["sc_w"], p["sc_b"], p["sc_bn"] = rnd(ks[0], (feats, in_ch, 3, 3)), rnd(ks[1], (feats,)), _bn(ks[2], feats)
    # SKConv branch convs (grouped, G=8)
    p["b0_w"], p["b0_b"], p["b0_bn"] = rnd(ks[3], (feats, feats // G, 3, 3)), rnd(ks[4], (feats,)), _bn(ks[5], feats)
    p["b1_w"], p["b1_b"], p["b1_bn"] = rnd(ks[6], (feats, feats // G, 3, 3)), rnd(ks[7], (feats,)), _bn(ks[8], feats)
    # conv_for_SA
    p["sa1_w"], p["sa1_b"], p["sa1_bn"] = rnd(ks[9], (csa, feats, 3, 3)), rnd(ks[10], (csa,)), _bn(ks[11], csa)
    p["sa2_w"] = rnd(ks[12], (1,))     # Conv2d(1, 1, 1) weight
    p["sa2_b"] = rnd(ks[13], (1,))     # Conv2d(1, 1, 1) bias
    # fc / fcs
    p["fc_w"] = rnd(ks[14], (d, feats))
    p["fcs0_w"] = rnd(ks[15], (feats, d))
    p["fcs1_w"] = rnd(ks[16], (feats, d))
    return p


# ----------------------------------------------------------------------------
# up_with_sk forward
# ----------------------------------------------------------------------------
def up_with_sk_forward(p, x1, x2):
    G = 8
    feat = p["sc_w"].shape[0]
    assert x2.shape[2] == WH and x2.shape[3] == WH, (
        "SKConv's gap = AvgPool2d(80) is a true global average pool only at 80x80")

    # 1) bilinear 2x upsample (align_corners) + pad to x2 + channel concat (XLA)
    x1u = _upsample_bilinear_2x_align_corners(x1)
    dY = x2.shape[2] - x1u.shape[2]
    dX = x2.shape[3] - x1u.shape[3]
    x1u = jnp.pad(x1u, ((0, 0), (0, 0),
                        (dY // 2, dY - dY // 2), (dX // 2, dX - dX // 2)))
    x = jnp.concatenate([x2, x1u], axis=1)                 # (B, cin, H, W) NCHW
    cin = x.shape[1]
    x = jnp.pad(x, ((0, 0), (0, 0), (1, 1), (1, 1)))       # spatial halo of 1
    x = jnp.transpose(x, (0, 2, 1, 3))                     # (B, H+2, cin, W+2) row planes

    # 2) fold eval-mode BN into the conv weights / biases (done once, tiny arrays)
    wsc, bsc = _fold_conv_bn(p["sc_w"], p["sc_b"], p["sc_bn"])
    w0d = _expand_grouped_weight(p["b0_w"], feat, G)
    w1d = _expand_grouped_weight(p["b1_w"], feat, G)
    w0, b0 = _fold_conv_bn(w0d, p["b0_b"], p["b0_bn"])
    w1, b1 = _fold_conv_bn(w1d, p["b1_b"], p["b1_bn"])
    wsa2d, sa_bias = _fold_conv_bn(p["sa1_w"], p["sa1_b"], p["sa1_bn"])  # (1, 9*feat), (1,1)
    sa_scalars = jnp.concatenate(
        [sa_bias.reshape(1), p["sa2_w"].reshape(1), p["sa2_b"].reshape(1)]
    ).astype(jnp.float32)

    # 3) fused single_conv + SKConv kernel (one pallas_call, one image per grid step)
    out_rcw = _up_sk_call(
        x, wsc, bsc,
        w0.astype(jnp.bfloat16), b0, w1.astype(jnp.bfloat16), b1,
        jnp.transpose(wsa2d), sa_scalars,
        jnp.transpose(p["fc_w"]), p["fcs0_w"], p["fcs1_w"],
        cin=cin, feat=feat)

    # TODO(synk): the (B, H, C, W) -> NCHW swap below is one small strided XLA copy
    # (~0.8 MB/image); folding it into the kernel would need a per-row sublane->plane
    # scatter that costs more in-kernel than this copy does.
    return jnp.transpose(out_rcw, (0, 2, 1, 3))            # NCHW


if __name__ == "__main__":
    key = jax.random.PRNGKey(0)
    k_p, k_x1, k_x2 = jax.random.split(key, 3)

    in_ch, out_ch, B = 8, 16, 2
    # x2 spatial must equal SKConv's default WH=80; x1 is the half-resolution input.
    x1 = jax.random.normal(k_x1, (B, in_ch // 2, WH // 2, WH // 2), jnp.float32)
    x2 = jax.random.normal(k_x2, (B, in_ch // 2, WH, WH), jnp.float32)

    params = init_params(k_p, in_ch, out_ch)
    fwd = jax.jit(up_with_sk_forward)
    out = jax.block_until_ready(fwd(params, x1, x2))

    assert out.shape == (B, out_ch, WH, WH), out.shape
    assert bool(jnp.all(jnp.isfinite(out)))
    print("KERNEL_OK")
</pallas_src>

<mosaic_0001>
module attributes {stable_mosaic.version = 11 : i64} {
  func.func @_up_sk_kernel(%arg0: i32, %arg1: memref<1x82x8x82xf32, #tpu.memory_space<vmem>>, %arg2: memref<16x72xf32, #tpu.memory_space<vmem>>, %arg3: memref<16x1xf32, #tpu.memory_space<vmem>>, %arg4: memref<16x144xbf16, #tpu.memory_space<vmem>>, %arg5: memref<16x1xf32, #tpu.memory_space<vmem>>, %arg6: memref<16x144xbf16, #tpu.memory_space<vmem>>, %arg7: memref<16x1xf32, #tpu.memory_space<vmem>>, %arg8: memref<144x1xf32, #tpu.memory_space<vmem>>, %arg9: memref<3xf32, #tpu.memory_space<smem>>, %arg10: memref<16x8xf32, #tpu.memory_space<vmem>>, %arg11: memref<16x8xf32, #tpu.memory_space<vmem>>, %arg12: memref<16x8xf32, #tpu.memory_space<vmem>>, %arg13: memref<1x80x16x80xf32, #tpu.memory_space<vmem>>, %arg14: memref<84x16x84xbf16, #tpu.memory_space<vmem>>, %arg15: memref<80x16x80xf32, #tpu.memory_space<vmem>>, %arg16: memref<80x16x80xf32, #tpu.memory_space<vmem>>, %arg17: memref<82x16x82xf32, #tpu.memory_space<vmem>>) attributes {dimension_semantics = [#tpu.dimension_semantics<parallel>], iteration_bounds = array<i64: 2>, scalar_prefetch = 0 : i64, scratch_operands = 4 : i64, tpu.core_type = #tpu.core_type<tc>, window_params = [{transform_indices = @transform_0, window_bounds = array<i64: 1, 82, 8, 82>}, {pipeline_mode = #tpu.pipeline_mode<synchronous>, transform_indices = @transform_1, window_bounds = array<i64: 16, 72>}, {pipeline_mode = #tpu.pipeline_mode<synchronous>, transform_indices = @transform_2, window_bounds = array<i64: 16, 1>}, {pipeline_mode = #tpu.pipeline_mode<synchronous>, transform_indices = @transform_3, window_bounds = array<i64: 16, 144>}, {pipeline_mode = #tpu.pipeline_mode<synchronous>, transform_indices = @transform_4, window_bounds = array<i64: 16, 1>}, {pipeline_mode = #tpu.pipeline_mode<synchronous>, transform_indices = @transform_5, window_bounds = array<i64: 16, 144>}, {pipeline_mode = #tpu.pipeline_mode<synchronous>, transform_indices = @transform_6, window_bounds = array<i64: 16, 1>}, {pipeline_mode = #tpu.pipeline_mode<synchronous>, transform_indices = @transform_7, window_bounds = array<i64: 144, 1>}, {transform_indices = @transform_8, window_bounds = array<i64: 3>}, {pipeline_mode = #tpu.pipeline_mode<synchronous>, transform_indices = @transform_9, window_bounds = array<i64: 16, 8>}, {pipeline_mode = #tpu.pipeline_mode<synchronous>, transform_indices = @transform_10, window_bounds = array<i64: 16, 8>}, {pipeline_mode = #tpu.pipeline_mode<synchronous>, transform_indices = @transform_11, window_bounds = array<i64: 16, 8>}, {transform_indices = @transform_12, window_bounds = array<i64: 1, 80, 16, 80>}]} {
    %cst = arith.constant 0.000000e+00 : bf16
    %0 = vector.broadcast %cst : bf16 to vector<2x16x84xbf16>
    %c0 = arith.constant 0 : index
    %c0_0 = arith.constant 0 : index
    %c0_1 = arith.constant 0 : index
    %1 = vector.load %arg14[%c0, %c0_0, %c0_1] : memref<84x16x84xbf16, #tpu.memory_space<vmem>>, vector<2x16x84xbf16>
    tpu.vector_store %arg14[%c0, %c0_0, %c0_1], %0 {strides = array<i32>} : memref<84x16x84xbf16, #tpu.memory_space<vmem>>, vector<2x16x84xbf16>,
    %cst_2 = arith.constant 0.000000e+00 : bf16
    %2 = vector.broadcast %cst_2 : bf16 to vector<2x16x84xbf16>
    %c82 = arith.constant 82 : index
    %c0_3 = arith.constant 0 : index
    %c0_4 = arith.constant 0 : index
    %3 = vector.load %arg14[%c82, %c0_3, %c0_4] : memref<84x16x84xbf16, #tpu.memory_space<vmem>>, vector<2x16x84xbf16>
    tpu.vector_store %arg14[%c82, %c0_3, %c0_4], %2 {strides = array<i32>} : memref<84x16x84xbf16, #tpu.memory_space<vmem>>, vector<2x16x84xbf16>,
    %cst_5 = arith.constant 0.000000e+00 : bf16
    %4 = vector.broadcast %cst_5 : bf16 to vector<80x16x2xbf16>
    %c2 = arith.constant 2 : index
    %c0_6 = arith.constant 0 : index
    %c0_7 = arith.constant 0 : index
    %5 = vector.load %arg14[%c2, %c0_6, %c0_7] : memref<84x16x84xbf16, #tpu.memory_space<vmem>>, vector<80x16x2xbf16>
    tpu.vector_store %arg14[%c2, %c0_6, %c0_7], %4 {strides = array<i32>} : memref<84x16x84xbf16, #tpu.memory_space<vmem>>, vector<80x16x2xbf16>,
    %cst_8 = arith.constant 0.000000e+00 : bf16
    %6 = vector.broadcast %cst_8 : bf16 to vector<80x16x2xbf16>
    %c2_9 = arith.constant 2 : index
    %c0_10 = arith.constant 0 : index
    %c82_11 = arith.constant 82 : index
    %7 = vector.load %arg14[%c2_9, %c0_10, %c82_11] : memref<84x16x84xbf16, #tpu.memory_space<vmem>>, vector<80x16x2xbf16>
    tpu.vector_store %arg14[%c2_9, %c0_10, %c82_11], %6 {strides = array<i32>} : memref<84x16x84xbf16, #tpu.memory_space<vmem>>, vector<80x16x2xbf16>,
    %cst_12 = arith.constant 0.000000e+00 : f32
    %8 = vector.broadcast %cst_12 : f32 to vector<16x82xf32>
    %c0_13 = arith.constant 0 : index
    %c0_14 = arith.constant 0 : index
    %c0_15 = arith.constant 0 : index
    %9 = vector.load %arg17[%c0_13, %c0_14, %c0_15] : memref<82x16x82xf32, #tpu.memory_space<vmem>>, vector<1x16x82xf32>
    %10 = vector.shape_cast %9 : vector<1x16x82xf32> to vector<16x82xf32>
    %11 = vector.shape_cast %8 : vector<16x82xf32> to vector<1x16x82xf32>
    tpu.vector_store %arg17[%c0_13, %c0_14, %c0_15], %11 {strides = array<i32>} : memref<82x16x82xf32, #tpu.memory_space<vmem>>, vector<1x16x82xf32>,
    %cst_16 = arith.constant 0.000000e+00 : f32
    %12 = vector.broadcast %cst_16 : f32 to vector<16x82xf32>
    %c81 = arith.constant 81 : index
    %c0_17 = arith.constant 0 : index
    %c0_18 = arith.constant 0 : index
    %13 = vector.load %arg17[%c81, %c0_17, %c0_18] : memref<82x16x82xf32, #tpu.memory_space<vmem>>, vector<1x16x82xf32>
    %14 = vector.shape_cast %13 : vector<1x16x82xf32> to vector<16x82xf32>
    %15 = vector.shape_cast %12 : vector<16x82xf32> to vector<1x16x82xf32>
    tpu.vector_store %arg17[%c81, %c0_17, %c0_18], %15 {strides = array<i32>} : memref<82x16x82xf32, #tpu.memory_space<vmem>>, vector<1x16x82xf32>,
    %cst_19 = arith.constant 0.000000e+00 : f32
    %16 = vector.broadcast %cst_19 : f32 to vector<80x16x1xf32>
    %c1 = arith.constant 1 : index
    %c0_20 = arith.constant 0 : index
    %c0_21 = arith.constant 0 : index
    %17 = vector.load %arg17[%c1, %c0_20, %c0_21] : memref<82x16x82xf32, #tpu.memory_space<vmem>>, vector<80x16x1xf32>
    tpu.vector_store %arg17[%c1, %c0_20, %c0_21], %16 {strides = array<i32>} : memref<82x16x82xf32, #tpu.memory_space<vmem>>, vector<80x16x1xf32>,
    %cst_22 = arith.constant 0.000000e+00 : f32
    %18 = vector.broadcast %cst_22 : f32 to vector<80x16x1xf32>
    %c1_23 = arith.constant 1 : index
    %c0_24 = arith.constant 0 : index
    %c81_25 = arith.constant 81 : index
    %19 = vector.load %arg17[%c1_23, %c0_24, %c81_25] : memref<82x16x82xf32, #tpu.memory_space<vmem>>, vector<80x16x1xf32>
    tpu.vector_store %arg17[%c1_23, %c0_24, %c81_25], %18 {strides = array<i32>} : memref<82x16x82xf32, #tpu.memory_space<vmem>>, vector<80x16x1xf32>,
    %c0_26 = arith.constant 0 : index
    %c0_27 = arith.constant 0 : index
    %20 = vector.load %arg2[%c0_26, %c0_27] : memref<16x72xf32, #tpu.memory_space<vmem>>, vector<16x72xf32>
    %c0_28 = arith.constant 0 : index
    %c0_29 = arith.constant 0 : index
    %21 = vector.load %arg3[%c0_28, %c0_29] : memref<16x1xf32, #tpu.memory_space<vmem>>, vector<16x1xf32>
    %22 = vector.shape_cast %21 : vector<16x1xf32> to vector<16x1xf32>
    %23 = vector.broadcast %22 : vector<16x1xf32> to vector<16x80xf32>
    %c0_30 = arith.constant 0 : index
    %c0_31 = arith.constant 0 : index
    %24 = vector.load %arg4[%c0_30, %c0_31] : memref<16x144xbf16, #tpu.memory_space<vmem>>, vector<16x144xbf16>
    %c0_32 = arith.constant 0 : index
    %c0_33 = arith.constant 0 : index
    %25 = vector.load %arg6[%c0_32, %c0_33] : memref<16x144xbf16, #tpu.memory_space<vmem>>, vector<16x144xbf16>
    %c0_34 = arith.constant 0 : index
    %c0_35 = arith.constant 0 : index
    %26 = vector.load %arg5[%c0_34, %c0_35] : memref<16x1xf32, #tpu.memory_space<vmem>>, vector<16x1xf32>
    %27 = vector.shape_cast %26 : vector<16x1xf32> to vector<16x1xf32>
    %28 = vector.broadcast %27 : vector<16x1xf32> to vector<16x80xf32>
    %c0_36 = arith.constant 0 : index
    %c0_37 = arith.constant 0 : index
    %29 = vector.load %arg7[%c0_36, %c0_37] : memref<16x1xf32, #tpu.memory_space<vmem>>, vector<16x1xf32>
    %30 = vector.shape_cast %29 : vector<16x1xf32> to vector<16x1xf32>
    %31 = vector.broadcast %30 : vector<16x1xf32> to vector<16x80xf32>
    %c0_38 = arith.constant 0 : index
    %c0_39 = arith.constant 0 : index
    %32 = vector.load %arg8[%c0_38, %c0_39] : memref<144x1xf32, #tpu.memory_space<vmem>>, vector<144x1xf32>
    %33 = vector.shape_cast %32 : vector<144x1xf32> to vector<144x1xf32>
    %34 = vector.broadcast %33 : vector<144x1xf32> to vector<144x80xf32>
    %c0_40 = arith.constant 0 : index
    %35 = memref.load %arg9[%c0_40] : memref<3xf32, #tpu.memory_space<smem>>
    %c1_41 = arith.constant 1 : index
    %36 = memref.load %arg9[%c1_41] : memref<3xf32, #tpu.memory_space<smem>>
    %c2_42 = arith.constant 2 : index
    %37 = memref.load %arg9[%c2_42] : memref<3xf32, #tpu.memory_space<smem>>
    %c0_i32 = arith.constant 0 : i32
    %c80_i32 = arith.constant 80 : i32
    %38 = arith.addi %c0_i32, %c80_i32 : i32
    %c1_i32 = arith.constant 1 : i32
    scf.for %arg18 = %c0_i32 to %38 step %c1_i32  : i32 {
      %c0_69 = arith.constant 0 : index
      %77 = arith.index_cast %arg18 : i32 to index
      %c0_70 = arith.constant 0 : index
      %c0_71 = arith.constant 0 : index
      %78 = vector.load %arg1[%c0_69, %77, %c0_70, %c0_71] : memref<1x82x8x82xf32, #tpu.memory_space<vmem>>, vector<1x1x8x82xf32>
      %79 = vector.shape_cast %78 : vector<1x1x8x82xf32> to vector<8x82xf32>
      %c1_i32_72 = arith.constant 1 : i32
      %80 = arith.addi %arg18, %c1_i32_72 : i32
      %c0_73 = arith.constant 0 : index
      %81 = arith.index_cast %80 : i32 to index
      %c0_74 = arith.constant 0 : index
      %c0_75 = arith.constant 0 : index
      %82 = vector.load %arg1[%c0_73, %81, %c0_74, %c0_75] : memref<1x82x8x82xf32, #tpu.memory_space<vmem>>, vector<1x1x8x82xf32>
      %83 = vector.shape_cast %82 : vector<1x1x8x82xf32> to vector<8x82xf32>
      %c2_i32 = arith.constant 2 : i32
      %84 = arith.addi %arg18, %c2_i32 : i32
      %c0_76 = arith.constant 0 : index
      %85 = arith.index_cast %84 : i32 to index
      %c0_77 = arith.constant 0 : index
      %c0_78 = arith.constant 0 : index
      %86 = vector.load %arg1[%c0_76, %85, %c0_77, %c0_78] : memref<1x82x8x82xf32, #tpu.memory_space<vmem>>, vector<1x1x8x82xf32>
      %87 = vector.shape_cast %86 : vector<1x1x8x82xf32> to vector<8x82xf32>
      %88 = vector.extract_strided_slice %79 {offsets = [0, 0], sizes = [8, 80], strides = [1, 1]} : vector<8x82xf32> to vector<8x80xf32>
      %89 = vector.extract_strided_slice %79 {offsets = [0, 1], sizes = [8, 80], strides = [1, 1]} : vector<8x82xf32> to vector<8x80xf32>
      %90 = vector.extract_strided_slice %79 {offsets = [0, 2], sizes = [8, 80], strides = [1, 1]} : vector<8x82xf32> to vector<8x80xf32>
      %91 = vector.extract_strided_slice %83 {offsets = [0, 0], sizes = [8, 80], strides = [1, 1]} : vector<8x82xf32> to vector<8x80xf32>
      %92 = vector.extract_strided_slice %83 {offsets = [0, 1], sizes = [8, 80], strides = [1, 1]} : vector<8x82xf32> to vector<8x80xf32>
      %93 = vector.extract_strided_slice %83 {offsets = [0, 2], sizes = [8, 80], strides = [1, 1]} : vector<8x82xf32> to vector<8x80xf32>
      %94 = vector.extract_strided_slice %87 {offsets = [0, 0], sizes = [8, 80], strides = [1, 1]} : vector<8x82xf32> to vector<8x80xf32>
      %95 = vector.extract_strided_slice %87 {offsets = [0, 1], sizes = [8, 80], strides = [1, 1]} : vector<8x82xf32> to vector<8x80xf32>
      %96 = vector.extract_strided_slice %87 {offsets = [0, 2], sizes = [8, 80], strides = [1, 1]} : vector<8x82xf32> to vector<8x80xf32>
      %97 = tpu.concatenate %88, %89, %90, %91, %92, %93, %94, %95, %96 in 0 : vector<8x80xf32>, vector<8x80xf32>, vector<8x80xf32>, vector<8x80xf32>, vector<8x80xf32>, vector<8x80xf32>, vector<8x80xf32>, vector<8x80xf32>, vector<8x80xf32> -> vector<72x80xf32>
      %cst_79 = arith.constant dense<0.000000e+00> : vector<16x80xf32>
      %98 = tpu.matmul %20, %97, %cst_79 {dimension_numbers = #tpu.dot_dimension_numbers<[1], [0], [0], [1], [0, 0, 1, 1], [], []>} : vector<16x72xf32>, vector<72x80xf32>, vector<16x80xf32> -> vector<16x80xf32>
      %99 = arith.addf %98, %23 : vector<16x80xf32>
      %cst_80 = arith.constant 0.000000e+00 : f32
      %100 = vector.broadcast %cst_80 : f32 to vector<16x80xf32>
      %101 = arith.maximumf %99, %100 : vector<16x80xf32>
      %102 = arith.truncf %101 : vector<16x80xf32> to vector<16x80xbf16>
      %c2_i32_81 = arith.constant 2 : i32
      %103 = arith.addi %c2_i32_81, %arg18 : i32
      %104 = arith.index_cast %103 : i32 to index
      %c0_82 = arith.constant 0 : index
      %c2_83 = arith.constant 2 : index
      %105 = vector.load %arg14[%104, %c0_82, %c2_83] : memref<84x16x84xbf16, #tpu.memory_space<vmem>>, vector<1x16x80xbf16>
      %106 = vector.shape_cast %105 : vector<1x16x80xbf16> to vector<16x80xbf16>
      %107 = vector.shape_cast %102 : vector<16x80xbf16> to vector<1x16x80xbf16>
      tpu.vector_store %arg14[%104, %c0_82, %c2_83], %107 {strides = array<i32>} : memref<84x16x84xbf16, #tpu.memory_space<vmem>>, vector<1x16x80xbf16>,
    }
    %c80_i32_43 = arith.constant 80 : i32
    %c0_i32_44 = arith.constant 0 : i32
    %c80_i32_45 = arith.constant 80 : i32
    %39 = arith.addi %c0_i32_44, %c80_i32_45 : i32
    %c1_i32_46 = arith.constant 1 : i32
    scf.for %arg18 = %c0_i32_44 to %39 step %c1_i32_46  : i32 {
      %77 = arith.index_cast %arg18 : i32 to index
      %c0_69 = arith.constant 0 : index
      %c0_70 = arith.constant 0 : index
      %78 = vector.load %arg14[%77, %c0_69, %c0_70] : memref<84x16x84xbf16, #tpu.memory_space<vmem>>, vector<1x16x84xbf16>
      %79 = vector.shape_cast %78 : vector<1x16x84xbf16> to vector<16x84xbf16>
      %c1_i32_71 = arith.constant 1 : i32
      %80 = arith.addi %arg18, %c1_i32_71 : i32
      %81 = arith.index_cast %80 : i32 to index
      %c0_72 = arith.constant 0 : index
      %c0_73 = arith.constant 0 : index
      %82 = vector.load %arg14[%81, %c0_72, %c0_73] : memref<84x16x84xbf16, #tpu.memory_space<vmem>>, vector<1x16x84xbf16>
      %83 = vector.shape_cast %82 : vector<1x16x84xbf16> to vector<16x84xbf16>
      %c2_i32 = arith.constant 2 : i32
      %84 = arith.addi %arg18, %c2_i32 : i32
      %85 = arith.index_cast %84 : i32 to index
      %c0_74 = arith.constant 0 : index
      %c0_75 = arith.constant 0 : index
      %86 = vector.load %arg14[%85, %c0_74, %c0_75] : memref<84x16x84xbf16, #tpu.memory_space<vmem>>, vector<1x16x84xbf16>
      %87 = vector.shape_cast %86 : vector<1x16x84xbf16> to vector<16x84xbf16>
      %c3_i32 = arith.constant 3 : i32
      %88 = arith.addi %arg18, %c3_i32 : i32
      %89 = arith.index_cast %88 : i32 to index
      %c0_76 = arith.constant 0 : index
      %c0_77 = arith.constant 0 : index
      %90 = vector.load %arg14[%89, %c0_76, %c0_77] : memref<84x16x84xbf16, #tpu.memory_space<vmem>>, vector<1x16x84xbf16>
      %91 = vector.shape_cast %90 : vector<1x16x84xbf16> to vector<16x84xbf16>
      %c4_i32 = arith.constant 4 : i32
      %92 = arith.addi %arg18, %c4_i32 : i32
      %93 = arith.index_cast %92 : i32 to index
      %c0_78 = arith.constant 0 : index
      %c0_79 = arith.constant 0 : index
      %94 = vector.load %arg14[%93, %c0_78, %c0_79] : memref<84x16x84xbf16, #tpu.memory_space<vmem>>, vector<1x16x84xbf16>
      %95 = vector.shape_cast %94 : vector<1x16x84xbf16> to vector<16x84xbf16>
      %96 = vector.extract_strided_slice %83 {offsets = [0, 1], sizes = [16, 80], strides = [1, 1]} : vector<16x84xbf16> to vector<16x80xbf16>
      %97 = vector.extract_strided_slice %83 {offsets = [0, 2], sizes = [16, 80], strides = [1, 1]} : vector<16x84xbf16> to vector<16x80xbf16>
      %98 = vector.extract_strided_slice %83 {offsets = [0, 3], sizes = [16, 80], strides = [1, 1]} : vector<16x84xbf16> to vector<16x80xbf16>
      %99 = vector.extract_strided_slice %87 {offsets = [0, 1], sizes = [16, 80], strides = [1, 1]} : vector<16x84xbf16> to vector<16x80xbf16>
      %100 = vector.extract_strided_slice %87 {offsets = [0, 2], sizes = [16, 80], strides = [1, 1]} : vector<16x84xbf16> to vector<16x80xbf16>
      %101 = vector.extract_strided_slice %87 {offsets = [0, 3], sizes = [16, 80], strides = [1, 1]} : vector<16x84xbf16> to vector<16x80xbf16>
      %102 = vector.extract_strided_slice %91 {offsets = [0, 1], sizes = [16, 80], strides = [1, 1]} : vector<16x84xbf16> to vector<16x80xbf16>
      %103 = vector.extract_strided_slice %91 {offsets = [0, 2], sizes = [16, 80], strides = [1, 1]} : vector<16x84xbf16> to vector<16x80xbf16>
      %104 = vector.extract_strided_slice %91 {offsets = [0, 3], sizes = [16, 80], strides = [1, 1]} : vector<16x84xbf16> to vector<16x80xbf16>
      %105 = tpu.concatenate %96, %97, %98, %99, %100, %101, %102, %103, %104 in 0 : vector<16x80xbf16>, vector<16x80xbf16>, vector<16x80xbf16>, vector<16x80xbf16>, vector<16x80xbf16>, vector<16x80xbf16>, vector<16x80xbf16>, vector<16x80xbf16>, vector<16x80xbf16> -> vector<144x80xbf16>
      %cst_80 = arith.constant dense<0.000000e+00> : vector<16x80xf32>
      %106 = tpu.matmul %24, %105, %cst_80 {dimension_numbers = #tpu.dot_dimension_numbers<[1], [0], [0], [1], [0, 0, 1, 1], [], []>} : vector<16x144xbf16>, vector<144x80xbf16>, vector<16x80xf32> -> vector<16x80xf32>
      %107 = arith.addf %106, %28 : vector<16x80xf32>
      %cst_81 = arith.constant 0.000000e+00 : f32
      %108 = vector.broadcast %cst_81 : f32 to vector<16x80xf32>
      %109 = arith.maximumf %107, %108 : vector<16x80xf32>
      %110 = arith.index_cast %arg18 : i32 to index
      %c0_82 = arith.constant 0 : index
      %c0_83 = arith.constant 0 : index
      %111 = vector.load %arg15[%110, %c0_82, %c0_83] : memref<80x16x80xf32, #tpu.memory_space<vmem>>, vector<1x16x80xf32>
      %112 = vector.shape_cast %111 : vector<1x16x80xf32> to vector<16x80xf32>
      %113 = vector.shape_cast %109 : vector<16x80xf32> to vector<1x16x80xf32>
      tpu.vector_store %arg15[%110, %c0_82, %c0_83], %113 {strides = array<i32>} : memref<80x16x80xf32, #tpu.memory_space<vmem>>, vector<1x16x80xf32>,
      %114 = vector.extract_strided_slice %79 {offsets = [0, 0], sizes = [16, 80], strides = [1, 1]} : vector<16x84xbf16> to vector<16x80xbf16>
      %115 = vector.extract_strided_slice %79 {offsets = [0, 2], sizes = [16, 80], strides = [1, 1]} : vector<16x84xbf16> to vector<16x80xbf16>
      %116 = vector.extract_strided_slice %79 {offsets = [0, 4], sizes = [16, 80], strides = [1, 1]} : vector<16x84xbf16> to vector<16x80xbf16>
      %117 = vector.extract_strided_slice %87 {offsets = [0, 0], sizes = [16, 80], strides = [1, 1]} : vector<16x84xbf16> to vector<16x80xbf16>
      %118 = vector.extract_strided_slice %87 {offsets = [0, 2], sizes = [16, 80], strides = [1, 1]} : vector<16x84xbf16> to vector<16x80xbf16>
      %119 = vector.extract_strided_slice %87 {offsets = [0, 4], sizes = [16, 80], strides = [1, 1]} : vector<16x84xbf16> to vector<16x80xbf16>
      %120 = vector.extract_strided_slice %95 {offsets = [0, 0], sizes = [16, 80], strides = [1, 1]} : vector<16x84xbf16> to vector<16x80xbf16>
      %121 = vector.extract_strided_slice %95 {offsets = [0, 2], sizes = [16, 80], strides = [1, 1]} : vector<16x84xbf16> to vector<16x80xbf16>
      %122 = vector.extract_strided_slice %95 {offsets = [0, 4], sizes = [16, 80], strides = [1, 1]} : vector<16x84xbf16> to vector<16x80xbf16>
      %123 = tpu.concatenate %114, %115, %116, %117, %118, %119, %120, %121, %122 in 0 : vector<16x80xbf16>, vector<16x80xbf16>, vector<16x80xbf16>, vector<16x80xbf16>, vector<16x80xbf16>, vector<16x80xbf16>, vector<16x80xbf16>, vector<16x80xbf16>, vector<16x80xbf16> -> vector<144x80xbf16>
      %cst_84 = arith.constant dense<0.000000e+00> : vector<16x80xf32>
      %124 = tpu.matmul %25, %123, %cst_84 {dimension_numbers = #tpu.dot_dimension_numbers<[1], [0], [0], [1], [0, 0, 1, 1], [], []>} : vector<16x144xbf16>, vector<144x80xbf16>, vector<16x80xf32> -> vector<16x80xf32>
      %125 = arith.addf %124, %31 : vector<16x80xf32>
      %cst_85 = arith.constant 0.000000e+00 : f32
      %126 = vector.broadcast %cst_85 : f32 to vector<16x80xf32>
      %127 = arith.maximumf %125, %126 : vector<16x80xf32>
      %128 = arith.index_cast %arg18 : i32 to index
      %c0_86 = arith.constant 0 : index
      %c0_87 = arith.constant 0 : index
      %129 = vector.load %arg16[%128, %c0_86, %c0_87] : memref<80x16x80xf32, #tpu.memory_space<vmem>>, vector<1x16x80xf32>
      %130 = vector.shape_cast %129 : vector<1x16x80xf32> to vector<16x80xf32>
      %131 = vector.shape_cast %127 : vector<16x80xf32> to vector<1x16x80xf32>
      tpu.vector_store %arg16[%128, %c0_86, %c0_87], %131 {strides = array<i32>} : memref<80x16x80xf32, #tpu.memory_space<vmem>>, vector<1x16x80xf32>,
      %132 = arith.addf %109, %127 : vector<16x80xf32>
      %c1_i32_88 = arith.constant 1 : i32
      %133 = arith.addi %c1_i32_88, %arg18 : i32
      %134 = arith.index_cast %133 : i32 to index
      %c0_89 = arith.constant 0 : index
      %c1_90 = arith.constant 1 : index
      %135 = vector.load %arg17[%134, %c0_89, %c1_90] : memref<82x16x82xf32, #tpu.memory_space<vmem>>, vector<1x16x80xf32>
      %136 = vector.shape_cast %135 : vector<1x16x80xf32> to vector<16x80xf32>
      %137 = vector.shape_cast %132 : vector<16x80xf32> to vector<1x16x80xf32>
      tpu.vector_store %arg17[%134, %c0_89, %c1_90], %137 {strides = array<i32>} : memref<82x16x82xf32, #tpu.memory_space<vmem>>, vector<1x16x80xf32>,
    }
    %c80_i32_47 = arith.constant 80 : i32
    %cst_48 = arith.constant 0.000000e+00 : f32
    %40 = vector.broadcast %cst_48 : f32 to vector<16x80xf32>
    %c0_i32_49 = arith.constant 0 : i32
    %c80_i32_50 = arith.constant 80 : i32
    %41 = arith.addi %c0_i32_49, %c80_i32_50 : i32
    %c1_i32_51 = arith.constant 1 : i32
    %42 = scf.for %arg18 = %c0_i32_49 to %41 step %c1_i32_51 iter_args(%arg19 = %40) -> (vector<16x80xf32>)  : i32 {
      %77 = arith.index_cast %arg18 : i32 to index
      %c0_69 = arith.constant 0 : index
      %c0_70 = arith.constant 0 : index
      %78 = vector.load %arg17[%77, %c0_69, %c0_70] : memref<82x16x82xf32, #tpu.memory_space<vmem>>, vector<1x16x82xf32>
      %79 = vector.shape_cast %78 : vector<1x16x82xf32> to vector<16x82xf32>
      %c1_i32_71 = arith.constant 1 : i32
      %80 = arith.addi %arg18, %c1_i32_71 : i32
      %81 = arith.index_cast %80 : i32 to index
      %c0_72 = arith.constant 0 : index
      %c0_73 = arith.constant 0 : index
      %82 = vector.load %arg17[%81, %c0_72, %c0_73] : memref<82x16x82xf32, #tpu.memory_space<vmem>>, vector<1x16x82xf32>
      %83 = vector.shape_cast %82 : vector<1x16x82xf32> to vector<16x82xf32>
      %c2_i32 = arith.constant 2 : i32
      %84 = arith.addi %arg18, %c2_i32 : i32
      %85 = arith.index_cast %84 : i32 to index
      %c0_74 = arith.constant 0 : index
      %c0_75 = arith.constant 0 : index
      %86 = vector.load %arg17[%85, %c0_74, %c0_75] : memref<82x16x82xf32, #tpu.memory_space<vmem>>, vector<1x16x82xf32>
      %87 = vector.shape_cast %86 : vector<1x16x82xf32> to vector<16x82xf32>
      %88 = vector.extract_strided_slice %79 {offsets = [0, 0], sizes = [16, 80], strides = [1, 1]} : vector<16x82xf32> to vector<16x80xf32>
      %89 = vector.extract_strided_slice %79 {offsets = [0, 1], sizes = [16, 80], strides = [1, 1]} : vector<16x82xf32> to vector<16x80xf32>
      %90 = vector.extract_strided_slice %79 {offsets = [0, 2], sizes = [16, 80], strides = [1, 1]} : vector<16x82xf32> to vector<16x80xf32>
      %91 = vector.extract_strided_slice %83 {offsets = [0, 0], sizes = [16, 80], strides = [1, 1]} : vector<16x82xf32> to vector<16x80xf32>
      %92 = vector.extract_strided_slice %83 {offsets = [0, 1], sizes = [16, 80], strides = [1, 1]} : vector<16x82xf32> to vector<16x80xf32>
      %93 = vector.extract_strided_slice %83 {offsets = [0, 2], sizes = [16, 80], strides = [1, 1]} : vector<16x82xf32> to vector<16x80xf32>
      %94 = vector.extract_strided_slice %87 {offsets = [0, 0], sizes = [16, 80], strides = [1, 1]} : vector<16x82xf32> to vector<16x80xf32>
      %95 = vector.extract_strided_slice %87 {offsets = [0, 1], sizes = [16, 80], strides = [1, 1]} : vector<16x82xf32> to vector<16x80xf32>
      %96 = vector.extract_strided_slice %87 {offsets = [0, 2], sizes = [16, 80], strides = [1, 1]} : vector<16x82xf32> to vector<16x80xf32>
      %97 = tpu.concatenate %88, %89, %90, %91, %92, %93, %94, %95, %96 in 0 : vector<16x80xf32>, vector<16x80xf32>, vector<16x80xf32>, vector<16x80xf32>, vector<16x80xf32>, vector<16x80xf32>, vector<16x80xf32>, vector<16x80xf32>, vector<16x80xf32> -> vector<144x80xf32>
      %98 = arith.mulf %97, %34 : vector<144x80xf32>
      %cst_76 = arith.constant dense<0.000000e+00> : vector<80xf32>
      %99 = vector.multi_reduction <add>, %98, %cst_76 [0] : vector<144x80xf32> to vector<80xf32>
      %100 = vector.shape_cast %99 : vector<80xf32> to vector<1x80xf32>
      %101 = vector.broadcast %35 : f32 to vector<1x80xf32>
      %102 = arith.addf %100, %101 : vector<1x80xf32>
      %cst_77 = arith.constant 0.000000e+00 : f32
      %103 = vector.broadcast %cst_77 : f32 to vector<1x80xf32>
      %104 = arith.maximumf %102, %103 : vector<1x80xf32>
      %105 = vector.broadcast %36 : f32 to vector<1x80xf32>
      %106 = arith.mulf %104, %105 : vector<1x80xf32>
      %107 = vector.broadcast %37 : f32 to vector<1x80xf32>
      %108 = arith.addf %106, %107 : vector<1x80xf32>
      %109 = arith.negf %108 : vector<1x80xf32>
      %110 = math.exp %109 : vector<1x80xf32>
      %cst_78 = arith.constant 1.000000e+00 : f32
      %111 = vector.broadcast %cst_78 : f32 to vector<1x80xf32>
      %112 = arith.addf %111, %110 : vector<1x80xf32>
      %113 = arith.divf %111, %112 : vector<1x80xf32>
      %c1_i32_79 = arith.constant 1 : i32
      %114 = arith.addi %arg18, %c1_i32_79 : i32
      %115 = arith.index_cast %114 : i32 to index
      %c0_80 = arith.constant 0 : index
      %c1_81 = arith.constant 1 : index
      %116 = vector.load %arg17[%115, %c0_80, %c1_81] : memref<82x16x82xf32, #tpu.memory_space<vmem>>, vector<1x16x80xf32>
      %117 = vector.shape_cast %116 : vector<1x16x80xf32> to vector<16x80xf32>
      %118 = vector.broadcast %113 : vector<1x80xf32> to vector<16x80xf32>
      %119 = arith.mulf %117, %118 : vector<16x80xf32>
      %120 = arith.addf %arg19, %119 : vector<16x80xf32>
      scf.yield %120 : vector<16x80xf32>
    }
    %c80_i32_52 = arith.constant 80 : i32
    %cst_53 = arith.constant dense<0.000000e+00> : vector<16xf32>
    %43 = vector.multi_reduction <add>, %42, %cst_53 [1] : vector<16x80xf32> to vector<16xf32>
    %44 = vector.shape_cast %43 : vector<16xf32> to vector<16x1xf32>
    %cst_54 = arith.constant 1.562500e-04 : f32
    %45 = vector.broadcast %cst_54 : f32 to vector<16x1xf32>
    %46 = arith.mulf %44, %45 : vector<16x1xf32>
    %c0_55 = arith.constant 0 : index
    %c0_56 = arith.constant 0 : index
    %47 = vector.load %arg10[%c0_55, %c0_56] : memref<16x8xf32, #tpu.memory_space<vmem>>, vector<16x8xf32>
    %48 = vector.broadcast %46 : vector<16x1xf32> to vector<16x8xf32>
    %49 = arith.mulf %47, %48 : vector<16x8xf32>
    %cst_57 = arith.constant dense<0.000000e+00> : vector<8xf32>
    %50 = vector.multi_reduction <add>, %49, %cst_57 [0] : vector<16x8xf32> to vector<8xf32>
    %51 = vector.shape_cast %50 : vector<8xf32> to vector<1x8xf32>
    %c0_58 = arith.constant 0 : index
    %c0_59 = arith.constant 0 : index
    %52 = vector.load %arg11[%c0_58, %c0_59] : memref<16x8xf32, #tpu.memory_space<vmem>>, vector<16x8xf32>
    %53 = vector.broadcast %51 : vector<1x8xf32> to vector<16x8xf32>
    %54 = arith.mulf %52, %53 : vector<16x8xf32>
    %cst_60 = arith.constant dense<0.000000e+00> : vector<16xf32>
    %55 = vector.multi_reduction <add>, %54, %cst_60 [1] : vector<16x8xf32> to vector<16xf32>
    %56 = vector.shape_cast %55 : vector<16xf32> to vector<16x1xf32>
    %c0_61 = arith.constant 0 : index
    %c0_62 = arith.constant 0 : index
    %57 = vector.load %arg12[%c0_61, %c0_62] : memref<16x8xf32, #tpu.memory_space<vmem>>, vector<16x8xf32>
    %58 = vector.broadcast %51 : vector<1x8xf32> to vector<16x8xf32>
    %59 = arith.mulf %57, %58 : vector<16x8xf32>
    %cst_63 = arith.constant dense<0.000000e+00> : vector<16xf32>
    %60 = vector.multi_reduction <add>, %59, %cst_63 [1] : vector<16x8xf32> to vector<16xf32>
    %61 = vector.shape_cast %60 : vector<16xf32> to vector<16x1xf32>
    %62 = arith.maximumf %56, %61 : vector<16x1xf32>
    %63 = arith.subf %56, %62 : vector<16x1xf32>
    %64 = math.exp %63 : vector<16x1xf32>
    %65 = arith.subf %61, %62 : vector<16x1xf32>
    %66 = math.exp %65 : vector<16x1xf32>
    %67 = arith.addf %64, %66 : vector<16x1xf32>
    %cst_64 = arith.constant 1.000000e+00 : f32
    %68 = vector.broadcast %cst_64 : f32 to vector<16x1xf32>
    %69 = arith.divf %68, %67 : vector<16x1xf32>
    %70 = arith.mulf %64, %69 : vector<16x1xf32>
    %71 = vector.shape_cast %70 : vector<16x1xf32> to vector<16x1xf32>
    %72 = vector.broadcast %71 : vector<16x1xf32> to vector<16x80xf32>
    %73 = arith.mulf %66, %69 : vector<16x1xf32>
    %74 = vector.shape_cast %73 : vector<16x1xf32> to vector<16x1xf32>
    %75 = vector.broadcast %74 : vector<16x1xf32> to vector<16x80xf32>
    %c0_i32_65 = arith.constant 0 : i32
    %c80_i32_66 = arith.constant 80 : i32
    %76 = arith.addi %c0_i32_65, %c80_i32_66 : i32
    %c1_i32_67 = arith.constant 1 : i32
    scf.for %arg18 = %c0_i32_65 to %76 step %c1_i32_67  : i32 {
      %77 = arith.index_cast %arg18 : i32 to index
      %c0_69 = arith.constant 0 : index
      %c0_70 = arith.constant 0 : index
      %78 = vector.load %arg15[%77, %c0_69, %c0_70] : memref<80x16x80xf32, #tpu.memory_space<vmem>>, vector<1x16x80xf32>
      %79 = vector.shape_cast %78 : vector<1x16x80xf32> to vector<16x80xf32>
      %80 = arith.mulf %79, %72 : vector<16x80xf32>
      %81 = arith.index_cast %arg18 : i32 to index
      %c0_71 = arith.constant 0 : index
      %c0_72 = arith.constant 0 : index
      %82 = vector.load %arg16[%81, %c0_71, %c0_72] : memref<80x16x80xf32, #tpu.memory_space<vmem>>, vector<1x16x80xf32>
      %83 = vector.shape_cast %82 : vector<1x16x80xf32> to vector<16x80xf32>
      %84 = arith.mulf %83, %75 : vector<16x80xf32>
      %85 = arith.addf %80, %84 : vector<16x80xf32>
      %c0_73 = arith.constant 0 : index
      %86 = arith.index_cast %arg18 : i32 to index
      %c0_74 = arith.constant 0 : index
      %c0_75 = arith.constant 0 : index
      %87 = vector.load %arg13[%c0_73, %86, %c0_74, %c0_75] : memref<1x80x16x80xf32, #tpu.memory_space<vmem>>, vector<1x1x16x80xf32>
      %88 = vector.shape_cast %87 : vector<1x1x16x80xf32> to vector<16x80xf32>
      %89 = vector.shape_cast %85 : vector<16x80xf32> to vector<1x1x16x80xf32>
      tpu.vector_store %arg13[%c0_73, %86, %c0_74, %c0_75], %89 {strides = array<i32>} : memref<1x80x16x80xf32, #tpu.memory_space<vmem>>, vector<1x1x16x80xf32>,
    }
    %c80_i32_68 = arith.constant 80 : i32
    return
  }
  func.func @transform_0(%arg0: i32) -> (i32, i32, i32, i32) {
    %c0_i32 = arith.constant 0 : i32
    %c0_i32_0 = arith.constant 0 : i32
    %c0_i32_1 = arith.constant 0 : i32
    %c0_i32_2 = arith.constant 0 : i32
    return %arg0, %c0_i32, %c0_i32_0, %c0_i32_1 : i32, i32, i32, i32
  }
  func.func @transform_1(%arg0: i32) -> (i32, i32) {
    %c0_i32 = arith.constant 0 : i32
    %c0_i32_0 = arith.constant 0 : i32
    %c0_i32_1 = arith.constant 0 : i32
    return %c0_i32, %c0_i32_0 : i32, i32
  }
  func.func @transform_2(%arg0: i32) -> (i32, i32) {
    %c0_i32 = arith.constant 0 : i32
    %c0_i32_0 = arith.constant 0 : i32
    %c0_i32_1 = arith.constant 0 : i32
    return %c0_i32, %c0_i32_0 : i32, i32
  }
  func.func @transform_3(%arg0: i32) -> (i32, i32) {
    %c0_i32 = arith.constant 0 : i32
    %c0_i32_0 = arith.constant 0 : i32
    %c0_i32_1 = arith.constant 0 : i32
    return %c0_i32, %c0_i32_0 : i32, i32
  }
  func.func @transform_4(%arg0: i32) -> (i32, i32) {
    %c0_i32 = arith.constant 0 : i32
    %c0_i32_0 = arith.constant 0 : i32
    %c0_i32_1 = arith.constant 0 : i32
    return %c0_i32, %c0_i32_0 : i32, i32
  }
  func.func @transform_5(%arg0: i32) -> (i32, i32) {
    %c0_i32 = arith.constant 0 : i32
    %c0_i32_0 = arith.constant 0 : i32
    %c0_i32_1 = arith.constant 0 : i32
    return %c0_i32, %c0_i32_0 : i32, i32
  }
  func.func @transform_6(%arg0: i32) -> (i32, i32) {
    %c0_i32 = arith.constant 0 : i32
    %c0_i32_0 = arith.constant 0 : i32
    %c0_i32_1 = arith.constant 0 : i32
    return %c0_i32, %c0_i32_0 : i32, i32
  }
  func.func @transform_7(%arg0: i32) -> (i32, i32) {
    %c0_i32 = arith.constant 0 : i32
    %c0_i32_0 = arith.constant 0 : i32
    %c0_i32_1 = arith.constant 0 : i32
    return %c0_i32, %c0_i32_0 : i32, i32
  }
  func.func @transform_8(%arg0: i32) -> i32 {
    %c0_i32 = arith.constant 0 : i32
    %c0_i32_0 = arith.constant 0 : i32
    return %c0_i32 : i32
  }
  func.func @transform_9(%arg0: i32) -> (i32, i32) {
    %c0_i32 = arith.constant 0 : i32
    %c0_i32_0 = arith.constant 0 : i32
    %c0_i32_1 = arith.constant 0 : i32
    return %c0_i32, %c0_i32_0 : i32, i32
  }
  func.func @transform_10(%arg0: i32) -> (i32, i32) {
    %c0_i32 = arith.constant 0 : i32
    %c0_i32_0 = arith.constant 0 : i32
    %c0_i32_1 = arith.constant 0 : i32
    return %c0_i32, %c0_i32_0 : i32, i32
  }
  func.func @transform_11(%arg0: i32) -> (i32, i32) {
    %c0_i32 = arith.constant 0 : i32
    %c0_i32_0 = arith.constant 0 : i32
    %c0_i32_1 = arith.constant 0 : i32
    return %c0_i32, %c0_i32_0 : i32, i32
  }
  func.func @transform_12(%arg0: i32) -> (i32, i32, i32, i32) {
    %c0_i32 = arith.constant 0 : i32
    %c0_i32_0 = arith.constant 0 : i32
    %c0_i32_1 = arith.constant 0 : i32
    %c0_i32_2 = arith.constant 0 : i32
    return %arg0, %c0_i32, %c0_i32_0, %c0_i32_1 : i32, i32, i32, i32
  }
}

</mosaic_0001>

<llo_original>
// kernel: up_with_sk_forward.1
$region0: #{up_with_sk_forward.1}
  #allocation0 [shape = 'u32[]', space=smem, size = 0x4, offset = 0x4, fixed_abs, tag = 'smem constant byte address 0x4 - core index']
  #allocation1 [shape = 'u32[144,128]{1,0:T(1,128)}', space=vmem, size = 0x12000, scoped, tag = 'internal scratch']
  #allocation2 [shape = 'bf16[84,16,84]{2,1,0:T(8,128)(2,1)}', space=vmem, size = 0x54000, scoped, tag = 'scratch operand']
  #allocation3 [shape = 'f32[80,16,80]{2,1,0:T(8,128)}', space=vmem, size = 0xa0000, scoped, tag = 'scratch operand']
  #allocation4 [shape = 'f32[80,16,80]{2,1,0:T(8,128)}', space=vmem, size = 0xa0000, scoped, tag = 'scratch operand']
  #allocation5 [shape = 'f32[82,16,82]{2,1,0:T(8,128)}', space=vmem, size = 0xa4000, scoped, tag = 'scratch operand']
  %s0 = inlined_call_operand.vmem [shape: f32[2,82,8,82], index: 0, kind: input, shape index: {}]
  %s1 = inlined_call_operand.vmem [shape: f32[16,72], index: 1, kind: input, shape index: {}]
  %s2 = inlined_call_operand.vmem [shape: f32[16,1], index: 2, kind: input, shape index: {}]
  %s3 = inlined_call_operand.vmem [shape: bf16[16,144], index: 3, kind: input, shape index: {}]
  %s4 = inlined_call_operand.vmem [shape: f32[16,1], index: 4, kind: input, shape index: {}]
  %s5 = inlined_call_operand.vmem [shape: bf16[16,144], index: 5, kind: input, shape index: {}]
  %s6 = inlined_call_operand.vmem [shape: f32[16,1], index: 6, kind: input, shape index: {}]
  %s7 = inlined_call_operand.vmem [shape: f32[144,1], index: 7, kind: input, shape index: {}]
  %s8 = inlined_call_operand.vmem [shape: f32[3], index: 8, kind: input, shape index: {}]
  %s9 = inlined_call_operand.vmem [shape: f32[16,8], index: 9, kind: input, shape index: {}]
  %s10 = inlined_call_operand.vmem [shape: f32[16,8], index: 10, kind: input, shape index: {}]
  %s11 = inlined_call_operand.vmem [shape: f32[16,8], index: 11, kind: input, shape index: {}]
  %s12 = inlined_call_operand.vmem [shape: f32[2,80,16,80], index: 12, kind: output, shape index: {}]
  %s13 = sld [smem:[#allocation0]]
  $region113: #{up_with_sk_forward.1} parent=0
    _
  %s15 = ssub.s32 1, %s13
  %s16 = scalar_select 0, %s15, %s13
  $region1: #{up_with_sk_forward.1} parent=0
    #allocation6 [shape = 'u8[512]{0}', space=smem, size = 0x200, scoped, tag = 'input window, operand 8, single buffered']
    #allocation7 [shape = 's32[2]{0}', space=sflag, size = 0x8, scoped, tag = 'scoped memory for up_with_sk_forward.1']
    %17 = vsyncpa [#allocation7], 0
    loop: start=0, step=1, limit=4
    $region2: #{up_with_sk_forward.1} parent=1 // loop_pre_header
      _
    $region3: #{up_with_sk_forward.1} parent=1 // loop_header
      %s19 = sphi 0, %s23
      %p20 = scmp.ge.s32.totalorder %s19, 4
      %s29 = sphi 0, %s31
      %s32 = sphi 0, %s29
      %s33 = sphi 0, %s32
      %s49 = sphi 0, %s33
      %s53 = sphi 0, %s53
      %s55 = sphi 0, %s53
      %s56 = sphi 0, %s55
      %s70 = sphi 0, %s56
      %s74 = sphi 0, %s74
      %s76 = sphi 0, %s74
      %s77 = sphi 0, %s76
      %s91 = sphi 0, %s77
      %s95 = sphi 0, %s95
      %s97 = sphi 0, %s95
      %s98 = sphi 0, %s97
      %s112 = sphi 0, %s98
      %s116 = sphi 0, %s116
      %s118 = sphi 0, %s116
      %s119 = sphi 0, %s118
      %s133 = sphi 0, %s119
      %s137 = sphi 0, %s137
      %s139 = sphi 0, %s137
      %s140 = sphi 0, %s139
      %s154 = sphi 0, %s140
      %s158 = sphi 0, %s158
      %s160 = sphi 0, %s158
      %s161 = sphi 0, %s160
      %s175 = sphi 0, %s161
      %s179 = sphi 0, %s179
      %s181 = sphi 0, %s179
      %s182 = sphi 0, %s181
      %s196 = sphi 0, %s182
      %s200 = sphi 0, %s200
      %s202 = sphi 0, %s200
      %s203 = sphi 0, %s202
      %s217 = sphi 0, %s203
      %s221 = sphi 0, %s221
      %s223 = sphi 0, %s221
      %s224 = sphi 0, %s223
      %s238 = sphi 0, %s224
      %s242 = sphi 0, %s242
      %s244 = sphi 0, %s242
      %s245 = sphi 0, %s244
      %s259 = sphi 0, %s245
      %s263 = sphi 0, %s263
      %s265 = sphi 0, %s263
      %s266 = sphi 0, %s265
      %s280 = sphi 0, %s266
      %s286 = sphi 0, %s288
      %s289 = sphi 0, %s286
      %s290 = sphi 0, %s289
      %s306 = sphi 0, %s290
    $region4: #{up_with_sk_forward.1} parent=1 // loop_header_branch
      %22 = sbr.rel (%p20) target = $region8
    $region5: #{up_with_sk_forward.1} parent=1 // loop_body
      %s24 = ssub.s32 %s19, 1
      %s25 = ssub.s32 %s19, 2
      %s26 = sadd.s32 %s19, 1
      %s27 = ssub.s32 %s19, %s26
      %p28 = scmp.eq.s32.totalorder %s27, 0
      %s30 = sadd.s32 %s29, 1
      %s31 = scalar_select %p28, %s29, %s30
      %p34 = pneg %p28
      %p35 = scmp.eq.s32.totalorder %s19, 1
      %p36 = por %p34, %p35
      %p37 = scmp.ne.s32.totalorder %s29, %s32
      %p38 = scmp.eq.s32.totalorder %s19, 0
      %p39 = por %p37, %p38
      %p40 = scmp.ne.s32.totalorder %s29, %s32
      %p41 = scmp.eq.s32.totalorder %s24, 1
      %p42 = por %p40, %p41
      %p43 = scmp.ne.s32.totalorder %s32, %s33
      %p44 = scmp.eq.s32.totalorder %s24, 0
      %p45 = por %p43, %p44
      %p46 = scmp.ne.s32.totalorder %s32, %s33
      %p47 = scmp.eq.s32.totalorder %s25, 1
      %p48 = por %p46, %p47
      %p50 = scmp.ne.s32.totalorder %s33, %s49
      %p51 = scmp.eq.s32.totalorder %s25, 0
      %p52 = por %p50, %p51
      %s54 = sadd.s32 %s53, 1
      %p57 = scmp.eq.s32.totalorder %s19, 1
      %p58 = scmp.ne.s32.totalorder %s53, %s55
      %p59 = scmp.eq.s32.totalorder %s19, 0
      %p60 = por %p58, %p59
      %p61 = scmp.ne.s32.totalorder %s53, %s55
      %p62 = scmp.eq.s32.totalorder %s24, 1
      %p63 = por %p61, %p62
      %p64 = scmp.ne.s32.totalorder %s55, %s56
      %p65 = scmp.eq.s32.totalorder %s24, 0
      %p66 = por %p64, %p65
      %p67 = scmp.ne.s32.totalorder %s55, %s56
      %p68 = scmp.eq.s32.totalorder %s25, 1
      %p69 = por %p67, %p68
      %p71 = scmp.ne.s32.totalorder %s56, %s70
      %p72 = scmp.eq.s32.totalorder %s25, 0
      %p73 = por %p71, %p72
      %s75 = sadd.s32 %s74, 1
      %p78 = scmp.eq.s32.totalorder %s19, 1
      %p79 = scmp.ne.s32.totalorder %s74, %s76
      %p80 = scmp.eq.s32.totalorder %s19, 0
      %p81 = por %p79, %p80
      %p82 = scmp.ne.s32.totalorder %s74, %s76
      %p83 = scmp.eq.s32.totalorder %s24, 1
      %p84 = por %p82, %p83
      %p85 = scmp.ne.s32.totalorder %s76, %s77
      %p86 = scmp.eq.s32.totalorder %s24, 0
      %p87 = por %p85, %p86
      %p88 = scmp.ne.s32.totalorder %s76, %s77
      %p89 = scmp.eq.s32.totalorder %s25, 1
      %p90 = por %p88, %p89
      %p92 = scmp.ne.s32.totalorder %s77, %s91
      %p93 = scmp.eq.s32.totalorder %s25, 0
      %p94 = por %p92, %p93
      %s96 = sadd.s32 %s95, 1
      %p99 = scmp.eq.s32.totalorder %s19, 1
      %p100 = scmp.ne.s32.totalorder %s95, %s97
      %p101 = scmp.eq.s32.totalorder %s19, 0
      %p102 = por %p100, %p101
      %p103 = scmp.ne.s32.totalorder %s95, %s97
      %p104 = scmp.eq.s32.totalorder %s24, 1
      %p105 = por %p103, %p104
      %p106 = scmp.ne.s32.totalorder %s97, %s98
      %p107 = scmp.eq.s32.totalorder %s24, 0
      %p108 = por %p106, %p107
      %p109 = scmp.ne.s32.totalorder %s97, %s98
      %p110 = scmp.eq.s32.totalorder %s25, 1
      %p111 = por %p109, %p110
      %p113 = scmp.ne.s32.totalorder %s98, %s112
      %p114 = scmp.eq.s32.totalorder %s25, 0
      %p115 = por %p113, %p114
      %s117 = sadd.s32 %s116, 1
      %p120 = scmp.eq.s32.totalorder %s19, 1
      %p121 = scmp.ne.s32.totalorder %s116, %s118
      %p122 = scmp.eq.s32.totalorder %s19, 0
      %p123 = por %p121, %p122
      %p124 = scmp.ne.s32.totalorder %s116, %s118
      %p125 = scmp.eq.s32.totalorder %s24, 1
      %p126 = por %p124, %p125
      %p127 = scmp.ne.s32.totalorder %s118, %s119
      %p128 = scmp.eq.s32.totalorder %s24, 0
      %p129 = por %p127, %p128
      %p130 = scmp.ne.s32.totalorder %s118, %s119
      %p131 = scmp.eq.s32.totalorder %s25, 1
      %p132 = por %p130, %p131
      %p134 = scmp.ne.s32.totalorder %s119, %s133
      %p135 = scmp.eq.s32.totalorder %s25, 0
      %p136 = por %p134, %p135
      %s138 = sadd.s32 %s137, 1
      %p141 = scmp.eq.s32.totalorder %s19, 1
      %p142 = scmp.ne.s32.totalorder %s137, %s139
      %p143 = scmp.eq.s32.totalorder %s19, 0
      %p144 = por %p142, %p143
      %p145 = scmp.ne.s32.totalorder %s137, %s139
      %p146 = scmp.eq.s32.totalorder %s24, 1
      %p147 = por %p145, %p146
      %p148 = scmp.ne.s32.totalorder %s139, %s140
      %p149 = scmp.eq.s32.totalorder %s24, 0
      %p150 = por %p148, %p149
      %p151 = scmp.ne.s32.totalorder %s139, %s140
      %p152 = scmp.eq.s32.totalorder %s25, 1
      %p153 = por %p151, %p152
      %p155 = scmp.ne.s32.totalorder %s140, %s154
      %p156 = scmp.eq.s32.totalorder %s25, 0
      %p157 = por %p155, %p156
      %s159 = sadd.s32 %s158, 1
      %p162 = scmp.eq.s32.totalorder %s19, 1
      %p163 = scmp.ne.s32.totalorder %s158, %s160
      %p164 = scmp.eq.s32.totalorder %s19, 0
      %p165 = por %p163, %p164
      %p166 = scmp.ne.s32.totalorder %s158, %s160
      %p167 = scmp.eq.s32.totalorder %s24, 1
      %p168 = por %p166, %p167
      %p169 = scmp.ne.s32.totalorder %s160, %s161
      %p170 = scmp.eq.s32.totalorder %s24, 0
      %p171 = por %p169, %p170
      %p172 = scmp.ne.s32.totalorder %s160, %s161
      %p173 = scmp.eq.s32.totalorder %s25, 1
      %p174 = por %p172, %p173
      %p176 = scmp.ne.s32.totalorder %s161, %s175
      %p177 = scmp.eq.s32.totalorder %s25, 0
      %p178 = por %p176, %p177
      %s180 = sadd.s32 %s179, 1
      %p183 = scmp.eq.s32.totalorder %s19, 1
      %p184 = scmp.ne.s32.totalorder %s179, %s181
      %p185 = scmp.eq.s32.totalorder %s19, 0
      %p186 = por %p184, %p185
      %p187 = scmp.ne.s32.totalorder %s179, %s181
      %p188 = scmp.eq.s32.totalorder %s24, 1
      %p189 = por %p187, %p188
      %p190 = scmp.ne.s32.totalorder %s181, %s182
      %p191 = scmp.eq.s32.totalorder %s24, 0
      %p192 = por %p190, %p191
      %p193 = scmp.ne.s32.totalorder %s181, %s182
      %p194 = scmp.eq.s32.totalorder %s25, 1
      %p195 = por %p193, %p194
      %p197 = scmp.ne.s32.totalorder %s182, %s196
      %p198 = scmp.eq.s32.totalorder %s25, 0
      %p199 = por %p197, %p198
      %s201 = sadd.s32 %s200, 1
      %p204 = scmp.eq.s32.totalorder %s19, 1
      %p205 = scmp.ne.s32.totalorder %s200, %s202
      %p206 = scmp.eq.s32.totalorder %s19, 0
      %p207 = por %p205, %p206
      %p208 = scmp.ne.s32.totalorder %s200, %s202
      %p209 = scmp.eq.s32.totalorder %s24, 1
      %p210 = por %p208, %p209
      %p211 = scmp.ne.s32.totalorder %s202, %s203
      %p212 = scmp.eq.s32.totalorder %s24, 0
      %p213 = por %p211, %p212
      %p214 = scmp.ne.s32.totalorder %s202, %s203
      %p215 = scmp.eq.s32.totalorder %s25, 1
      %p216 = por %p214, %p215
      %p218 = scmp.ne.s32.totalorder %s203, %s217
      %p219 = scmp.eq.s32.totalorder %s25, 0
      %p220 = por %p218, %p219
      %s222 = sadd.s32 %s221, 1
      %p225 = scmp.eq.s32.totalorder %s19, 1
      %p226 = scmp.ne.s32.totalorder %s221, %s223
      %p227 = scmp.eq.s32.totalorder %s19, 0
      %p228 = por %p226, %p227
      %p229 = scmp.ne.s32.totalorder %s221, %s223
      %p230 = scmp.eq.s32.totalorder %s24, 1
      %p231 = por %p229, %p230
      %p232 = scmp.ne.s32.totalorder %s223, %s224
      %p233 = scmp.eq.s32.totalorder %s24, 0
      %p234 = por %p232, %p233
      %p235 = scmp.ne.s32.totalorder %s223, %s224
      %p236 = scmp.eq.s32.totalorder %s25, 1
      %p237 = por %p235, %p236
      %p239 = scmp.ne.s32.totalorder %s224, %s238
      %p240 = scmp.eq.s32.totalorder %s25, 0
      %p241 = por %p239, %p240
      %s243 = sadd.s32 %s242, 1
      %p246 = scmp.eq.s32.totalorder %s19, 1
      %p247 = scmp.ne.s32.totalorder %s242, %s244
      %p248 = scmp.eq.s32.totalorder %s19, 0
      %p249 = por %p247, %p248
      %p250 = scmp.ne.s32.totalorder %s242, %s244
      %p251 = scmp.eq.s32.totalorder %s24, 1
      %p252 = por %p250, %p251
      %p253 = scmp.ne.s32.totalorder %s244, %s245
      %p254 = scmp.eq.s32.totalorder %s24, 0
      %p255 = por %p253, %p254
      %p256 = scmp.ne.s32.totalorder %s244, %s245
      %p257 = scmp.eq.s32.totalorder %s25, 1
      %p258 = por %p256, %p257
      %p260 = scmp.ne.s32.totalorder %s245, %s259
      %p261 = scmp.eq.s32.totalorder %s25, 0
      %p262 = por %p260, %p261
      %s264 = sadd.s32 %s263, 1
      %p267 = scmp.eq.s32.totalorder %s19, 1
      %p268 = scmp.ne.s32.totalorder %s263, %s265
      %p269 = scmp.eq.s32.totalorder %s19, 0
      %p270 = por %p268, %p269
      %p271 = scmp.ne.s32.totalorder %s263, %s265
      %p272 = scmp.eq.s32.totalorder %s24, 1
      %p273 = por %p271, %p272
      %p274 = scmp.ne.s32.totalorder %s265, %s266
      %p275 = scmp.eq.s32.totalorder %s24, 0
      %p276 = por %p274, %p275
      %p277 = scmp.ne.s32.totalorder %s265, %s266
      %p278 = scmp.eq.s32.totalorder %s25, 1
      %p279 = por %p277, %p278
      %p281 = scmp.ne.s32.totalorder %s266, %s280
      %p282 = scmp.eq.s32.totalorder %s25, 0
      %p283 = por %p281, %p282
      %s284 = ssub.s32 %s19, %s26
      %p285 = scmp.eq.s32.totalorder %s284, 0
      %s287 = sadd.s32 %s286, 1
      %s288 = scalar_select %p285, %s286, %s287
      %p291 = pneg %p285
      %p292 = scmp.eq.s32.totalorder %s19, 1
      %p293 = por %p291, %p292
      %p294 = scmp.ne.s32.totalorder %s286, %s289
      %p295 = scmp.eq.s32.totalorder %s19, 0
      %p296 = por %p294, %p295
      %p297 = scmp.ne.s32.totalorder %s286, %s289
      %p298 = scmp.eq.s32.totalorder %s24, 1
      %p299 = por %p297, %p298
      %p300 = scmp.ne.s32.totalorder %s289, %s290
      %p301 = scmp.eq.s32.totalorder %s24, 0
      %p302 = por %p300, %p301
      %p303 = scmp.ne.s32.totalorder %s289, %s290
      %p304 = scmp.eq.s32.totalorder %s25, 1
      %p305 = por %p303, %p304
      %p307 = scmp.ne.s32.totalorder %s290, %s306
      %p308 = scmp.eq.s32.totalorder %s25, 0
      %p309 = por %p307, %p308
      %p310 = scmp.le.s32.totalorder 1, %s19
      %p311 = scmp.lt.s32.totalorder %s19, 3
      %p312 = pnand %p310, %p311
      %p313 = pneg %p312
      // Predicated region
      $region9: #{up_with_sk_forward.1} parent=5 // pred_check
        _
      $region10: #{up_with_sk_forward.1} parent=5 // pred_check_branch
        %315 = sbr.rel (%p312) target = $region12
      $region11: #{up_with_sk_forward.1} parent=5 // pred_region
        %s316 = ssub.s32 %s19, 1
        // Predicated region
        $region13: #{up_with_sk_forward.1} parent=11 // pred_check
          %p317 = pneg %p66
        $region14: #{up_with_sk_forward.1} parent=11 // pred_check_branch
          %319 = sbr.rel (%p317) target = $region16
        $region15: #{up_with_sk_forward.1} parent=11 // pred_region
          _
        $region16: #{up_with_sk_forward.1} parent=11 // pred_fallthru
          _
        // Predicated region
        $region17: #{up_with_sk_forward.1} parent=11 // pred_check
          %p320 = pneg %p87
        $region18: #{up_with_sk_forward.1} parent=11 // pred_check_branch
          %322 = sbr.rel (%p320) target = $region20
        $region19: #{up_with_sk_forward.1} parent=11 // pred_region
          _
        $region20: #{up_with_sk_forward.1} parent=11 // pred_fallthru
          _
        // Predicated region
        $region21: #{up_with_sk_forward.1} parent=11 // pred_check
          %p323 = pneg %p108
        $region22: #{up_with_sk_forward.1} parent=11 // pred_check_branch
          %325 = sbr.rel (%p323) target = $region24
        $region23: #{up_with_sk_forward.1} parent=11 // pred_region
          _
        $region24: #{up_with_sk_forward.1} parent=11 // pred_fallthru
          _
        // Predicated region
        $region25: #{up_with_sk_forward.1} parent=11 // pred_check
          %p326 = pneg %p129
        $region26: #{up_with_sk_forward.1} parent=11 // pred_check_branch
          %328 = sbr.rel (%p326) target = $region28
        $region27: #{up_with_sk_forward.1} parent=11 // pred_region
          _
        $region28: #{up_with_sk_forward.1} parent=11 // pred_fallthru
          _
        // Predicated region
        $region29: #{up_with_sk_forward.1} parent=11 // pred_check
          %p329 = pneg %p150
        $region30: #{up_with_sk_forward.1} parent=11 // pred_check_branch
          %331 = sbr.rel (%p329) target = $region32
        $region31: #{up_with_sk_forward.1} parent=11 // pred_region
          _
        $region32: #{up_with_sk_forward.1} parent=11 // pred_fallthru
          _
        // Predicated region
        $region33: #{up_with_sk_forward.1} parent=11 // pred_check
          %p332 = pneg %p171
        $region34: #{up_with_sk_forward.1} parent=11 // pred_check_branch
          %334 = sbr.rel (%p332) target = $region36
        $region35: #{up_with_sk_forward.1} parent=11 // pred_region
          _
        $region36: #{up_with_sk_forward.1} parent=11 // pred_fallthru
          _
        // Predicated region
        $region37: #{up_with_sk_forward.1} parent=11 // pred_check
          %p335 = pneg %p192
        $region38: #{up_with_sk_forward.1} parent=11 // pred_check_branch
          %337 = sbr.rel (%p335) target = $region40
        $region39: #{up_with_sk_forward.1} parent=11 // pred_region
          _
        $region40: #{up_with_sk_forward.1} parent=11 // pred_fallthru
          _
        // Predicated region
        $region41: #{up_with_sk_forward.1} parent=11 // pred_check
          %p338 = pneg %p213
        $region42: #{up_with_sk_forward.1} parent=11 // pred_check_branch
          %340 = sbr.rel (%p338) target = $region44
        $region43: #{up_with_sk_forward.1} parent=11 // pred_region
          %s342 = ssub.s32 16, 16
          %343 = vsyncadd [#allocation7], %s342
          %s345 = sshll.u32 %s8, 4
          %s346 = int_to_ptr.vmem [resolvable:$true] %s345
          %348 = dma.vmem_to_smem %s346, 16, [#allocation6], [#allocation7]
        $region44: #{up_with_sk_forward.1} parent=11 // pred_fallthru
          _
        // Predicated region
        $region45: #{up_with_sk_forward.1} parent=11 // pred_check
          %p349 = pneg %p234
        $region46: #{up_with_sk_forward.1} parent=11 // pred_check_branch
          %351 = sbr.rel (%p349) target = $region48
        $region47: #{up_with_sk_forward.1} parent=11 // pred_region
          _
        $region48: #{up_with_sk_forward.1} parent=11 // pred_fallthru
          _
        // Predicated region
        $region49: #{up_with_sk_forward.1} parent=11 // pred_check
          %p352 = pneg %p255
        $region50: #{up_with_sk_forward.1} parent=11 // pred_check_branch
          %354 = sbr.rel (%p352) target = $region52
        $region51: #{up_with_sk_forward.1} parent=11 // pred_region
          _
        $region52: #{up_with_sk_forward.1} parent=11 // pred_fallthru
          _
        // Predicated region
        $region53: #{up_with_sk_forward.1} parent=11 // pred_check
          %p355 = pneg %p276
        $region54: #{up_with_sk_forward.1} parent=11 // pred_check_branch
          %357 = sbr.rel (%p355) target = $region56
        $region55: #{up_with_sk_forward.1} parent=11 // pred_region
          _
        $region56: #{up_with_sk_forward.1} parent=11 // pred_fallthru
          _
      $region12: #{up_with_sk_forward.1} parent=5 // pred_fallthru
        _
      %p358 = scmp.lt.s32.totalorder %s19, 2
      // Predicated region
      $region57: #{up_with_sk_forward.1} parent=5 // pred_check
        %p359 = pneg %p358
      $region58: #{up_with_sk_forward.1} parent=5 // pred_check_branch
        %361 = sbr.rel (%p359) target = $region60
      $region59: #{up_with_sk_forward.1} parent=5 // pred_region
        // Predicated region
        $region61: #{up_with_sk_forward.1} parent=59 // pred_check
          %p362 = pneg %p39
        $region62: #{up_with_sk_forward.1} parent=59 // pred_check_branch
          %364 = sbr.rel (%p362) target = $region64
        $region63: #{up_with_sk_forward.1} parent=59 // pred_region
          %p365 = scmp.lt.s32.totalorder %s19, 1
          %s366 = scalar_select %p365, %s19, 1
          %s367 = smul.addr %s366, 82
          %s368 = smul.addr %s367, 8
          %s369 = scalar_lea.vmem %s0, %s368
        $region64: #{up_with_sk_forward.1} parent=59 // pred_fallthru
          _
      $region60: #{up_with_sk_forward.1} parent=5 // pred_fallthru
        _
      %p370 = scmp.le.s32.totalorder 1, %s19
      %p371 = scmp.lt.s32.totalorder %s19, 3
      %p372 = pnand %p370, %p371
      %p373 = pneg %p372
      // Predicated region
      $region65: #{up_with_sk_forward.1} parent=5 // pred_check
        _
      $region66: #{up_with_sk_forward.1} parent=5 // pred_check_branch
        %375 = sbr.rel (%p372) target = $region68
      $region67: #{up_with_sk_forward.1} parent=5 // pred_region
        %s376 = ssub.s32 %s19, 1
        // Predicated region
        $region69: #{up_with_sk_forward.1} parent=67 // pred_check
          %p377 = pneg %p213
        $region70: #{up_with_sk_forward.1} parent=67 // pred_check_branch
          %379 = sbr.rel (%p377) target = $region72
        $region71: #{up_with_sk_forward.1} parent=67 // pred_region
          %380 = dma.done [#allocation7], 16
        $region72: #{up_with_sk_forward.1} parent=67 // pred_fallthru
          _
        %381 = sfence
        %p382 = scmp.lt.s32.totalorder %s24, 1
        %s383 = scalar_select %p382, %s24, 1
        %s384 = smul.addr %s383, 82
        %s385 = smul.addr %s384, 8
        %s386 = scalar_lea.vmem %s0, %s385
        %p387 = pneg %p45
        %p388 = pneg %p42
        %p389 = pneg %p66
        %p390 = pneg %p63
        %p391 = pneg %p87
        %p392 = pneg %p84
        %p393 = pneg %p108
        %p394 = pneg %p105
        %p395 = pneg %p129
        %p396 = pneg %p126
        %p397 = pneg %p150
        %p398 = pneg %p147
        %p399 = pneg %p171
        %p400 = pneg %p168
        %p401 = pneg %p192
        %p402 = pneg %p189
        %p403 = pneg %p213
        %p404 = pneg %p210
        %p405 = pneg %p234
        %p406 = pneg %p231
        %p407 = pneg %p255
        %p408 = pneg %p252
        %p409 = pneg %p276
        %p410 = pneg %p273
        %p411 = pneg %p302
        %p412 = pneg %p299
        %p413 = scmp.lt.s32.totalorder %s24, 1
        %s414 = scalar_select %p413, %s24, 1
        %s415 = smul.addr %s414, 160
        %s416 = smul.addr %s415, 8
        %s417 = scalar_lea.vmem %s12, %s416
        %p418 = scmp.lt.s32.totalorder %s24, 1
        %s419 = scalar_select %p418, %s24, 1
        %s420 = smul.addr %s419, 82
        %s421 = smul.addr %s420, 8
        %s422 = scalar_lea.vmem %s0, %s421
        %p423 = scmp.lt.s32.totalorder %s24, 1
        %s424 = scalar_select %p423, %s24, 1
        %s425 = smul.addr %s424, 160
        %s426 = smul.addr %s425, 8
        %s427 = scalar_lea.vmem %s12, %s426
        %vm429 = vcmask 683008
        %430 = vst.msk [vmem:[#allocation2] sm:$0xf] %vm429, 0
        %431 = vst.msk [vmem:[#allocation2 + $0x4] sm:$0xf] %vm429, 0
        %432 = vst.msk [vmem:[#allocation2 + $0x8] sm:$0xf] %vm429, 0
        %433 = vst.msk [vmem:[#allocation2 + $0xc] sm:$0xf] %vm429, 0
        %s434 = scalar_lea.vmem [#allocation2], 656
        %435 = vst.msk [vmem:[%s434] sm:$0xf] %vm429, 0
        %436 = vst.msk [vmem:[%s434 + $0x4] sm:$0xf] %vm429, 0
        %437 = vst.msk [vmem:[%s434 + $0x8] sm:$0xf] %vm429, 0
        %438 = vst.msk [vmem:[%s434 + $0xc] sm:$0xf] %vm429, 0
        %s439 = scalar_lea.vmem [#allocation2], 16
        %vm440 = vcmask 11264
        %441 = vst.msk [vmem:[%s439] sm:$0xf] %vm440, 0
        %442 = vst.msk [vmem:[%s439 + $0x4] sm:$0xf] %vm440, 0
        %443 = vst.msk [vmem:[%s439 + $0x8] sm:$0xf] %vm440, 0
        %444 = vst.msk [vmem:[%s439 + $0xc] sm:$0xf] %vm440, 0
        %445 = vst.msk [vmem:[%s439 + $0x10] sm:$0xf] %vm440, 0
        %446 = vst.msk [vmem:[%s439 + $0x14] sm:$0xf] %vm440, 0
        %447 = vst.msk [vmem:[%s439 + $0x18] sm:$0xf] %vm440, 0
        %448 = vst.msk [vmem:[%s439 + $0x1c] sm:$0xf] %vm440, 0
        %449 = vst.msk [vmem:[%s439 + $0x20] sm:$0xf] %vm440, 0
        %450 = vst.msk [vmem:[%s439 + $0x24] sm:$0xf] %vm440, 0
        %451 = vst.msk [vmem:[%s439 + $0x28] sm:$0xf] %vm440, 0
        %452 = vst.msk [vmem:[%s439 + $0x2c] sm:$0xf] %vm440, 0
        %453 = vst.msk [vmem:[%s439 + $0x30] sm:$0xf] %vm440, 0
        %454 = vst.msk [vmem:[%s439 + $0x34] sm:$0xf] %vm440, 0
        %455 = vst.msk [vmem:[%s439 + $0x38] sm:$0xf] %vm440, 0
        %456 = vst.msk [vmem:[%s439 + $0x3c] sm:$0xf] %vm440, 0
        %457 = vst.msk [vmem:[%s439 + $0x40] sm:$0xf] %vm440, 0
        %458 = vst.msk [vmem:[%s439 + $0x44] sm:$0xf] %vm440, 0
        %459 = vst.msk [vmem:[%s439 + $0x48] sm:$0xf] %vm440, 0
        %460 = vst.msk [vmem:[%s439 + $0x4c] sm:$0xf] %vm440, 0
        %461 = vst.msk [vmem:[%s439 + $0x50] sm:$0xf] %vm440, 0
        %462 = vst.msk [vmem:[%s439 + $0x54] sm:$0xf] %vm440, 0
        %463 = vst.msk [vmem:[%s439 + $0x58] sm:$0xf] %vm440, 0
        %464 = vst.msk [vmem:[%s439 + $0x5c] sm:$0xf] %vm440, 0
        %465 = vst.msk [vmem:[%s439 + $0x60] sm:$0xf] %vm440, 0
        %466 = vst.msk [vmem:[%s439 + $0x64] sm:$0xf] %vm440, 0
        %467 = vst.msk [vmem:[%s439 + $0x68] sm:$0xf] %vm440, 0
        %468 = vst.msk [vmem:[%s439 + $0x6c] sm:$0xf] %vm440, 0
        %469 = vst.msk [vmem:[%s439 + $0x70] sm:$0xf] %vm440, 0
        %470 = vst.msk [vmem:[%s439 + $0x74] sm:$0xf] %vm440, 0
        %471 = vst.msk [vmem:[%s439 + $0x78] sm:$0xf] %vm440, 0
        %472 = vst.msk [vmem:[%s439 + $0x7c] sm:$0xf] %vm440, 0
        %473 = vst.msk [vmem:[%s439 + $0x80] sm:$0xf] %vm440, 0
        %474 = vst.msk [vmem:[%s439 + $0x84] sm:$0xf] %vm440, 0
        %475 = vst.msk [vmem:[%s439 + $0x88] sm:$0xf] %vm440, 0
        %476 = vst.msk [vmem:[%s439 + $0x8c] sm:$0xf] %vm440, 0
        %477 = vst.msk [vmem:[%s439 + $0x90] sm:$0xf] %vm440, 0
        %478 = vst.msk [vmem:[%s439 + $0x94] sm:$0xf] %vm440, 0
        %479 = vst.msk [vmem:[%s439 + $0x98] sm:$0xf] %vm440, 0
        %480 = vst.msk [vmem:[%s439 + $0x9c] sm:$0xf] %vm440, 0
        %481 = vst.msk [vmem:[%s439 + $0xa0] sm:$0xf] %vm440, 0
        %482 = vst.msk [vmem:[%s439 + $0xa4] sm:$0xf] %vm440, 0
        %483 = vst.msk [vmem:[%s439 + $0xa8] sm:$0xf] %vm440, 0
        %484 = vst.msk [vmem:[%s439 + $0xac] sm:$0xf] %vm440, 0
        %485 = vst.msk [vmem:[%s439 + $0xb0] sm:$0xf] %vm440, 0
        %486 = vst.msk [vmem:[%s439 + $0xb4] sm:$0xf] %vm440, 0
        %487 = vst.msk [vmem:[%s439 + $0xb8] sm:$0xf] %vm440, 0
        %488 = vst.msk [vmem:[%s439 + $0xbc] sm:$0xf] %vm440, 0
        %489 = vst.msk [vmem:[%s439 + $0xc0] sm:$0xf] %vm440, 0
        %490 = vst.msk [vmem:[%s439 + $0xc4] sm:$0xf] %vm440, 0
        %491 = vst.msk [vmem:[%s439 + $0xc8] sm:$0xf] %vm440, 0
        %492 = vst.msk [vmem:[%s439 + $0xcc] sm:$0xf] %vm440, 0
        %493 = vst.msk [vmem:[%s439 + $0xd0] sm:$0xf] %vm440, 0
        %494 = vst.msk [vmem:[%s439 + $0xd4] sm:$0xf] %vm440, 0
        %495 = vst.msk [vmem:[%s439 + $0xd8] sm:$0xf] %vm440, 0
        %496 = vst.msk [vmem:[%s439 + $0xdc] sm:$0xf] %vm440, 0
        %497 = vst.msk [vmem:[%s439 + $0xe0] sm:$0xf] %vm440, 0
        %498 = vst.msk [vmem:[%s439 + $0xe4] sm:$0xf] %vm440, 0
        %499 = vst.msk [vmem:[%s439 + $0xe8] sm:$0xf] %vm440, 0
        %500 = vst.msk [vmem:[%s439 + $0xec] sm:$0xf] %vm440, 0
        %501 = vst.msk [vmem:[%s439 + $0xf0] sm:$0xf] %vm440, 0
        %502 = vst.msk [vmem:[%s439 + $0xf4] sm:$0xf] %vm440, 0
        %503 = vst.msk [vmem:[%s439 + $0xf8] sm:$0xf] %vm440, 0
        %504 = vst.msk [vmem:[%s439 + $0xfc] sm:$0xf] %vm440, 0
        %505 = vst.msk [vmem:[%s439 + $0x100] sm:$0xf] %vm440, 0
        %506 = vst.msk [vmem:[%s439 + $0x104] sm:$0xf] %vm440, 0
        %507 = vst.msk [vmem:[%s439 + $0x108] sm:$0xf] %vm440, 0
        %508 = vst.msk [vmem:[%s439 + $0x10c] sm:$0xf] %vm440, 0
        %509 = vst.msk [vmem:[%s439 + $0x110] sm:$0xf] %vm440, 0
        %510 = vst.msk [vmem:[%s439 + $0x114] sm:$0xf] %vm440, 0
        %511 = vst.msk [vmem:[%s439 + $0x118] sm:$0xf] %vm440, 0
        %512 = vst.msk [vmem:[%s439 + $0x11c] sm:$0xf] %vm440, 0
        %513 = vst.msk [vmem:[%s439 + $0x120] sm:$0xf] %vm440, 0
        %514 = vst.msk [vmem:[%s439 + $0x124] sm:$0xf] %vm440, 0
        %515 = vst.msk [vmem:[%s439 + $0x128] sm:$0xf] %vm440, 0
        %516 = vst.msk [vmem:[%s439 + $0x12c] sm:$0xf] %vm440, 0
        %517 = vst.msk [vmem:[%s439 + $0x130] sm:$0xf] %vm440, 0
        %518 = vst.msk [vmem:[%s439 + $0x134] sm:$0xf] %vm440, 0
        %519 = vst.msk [vmem:[%s439 + $0x138] sm:$0xf] %vm440, 0
        %520 = vst.msk [vmem:[%s439 + $0x13c] sm:$0xf] %vm440, 0
        %521 = vst.msk [vmem:[%s439 + $0x140] sm:$0xf] %vm440, 0
        %522 = vst.msk [vmem:[%s439 + $0x144] sm:$0xf] %vm440, 0
        %523 = vst.msk [vmem:[%s439 + $0x148] sm:$0xf] %vm440, 0
        %524 = vst.msk [vmem:[%s439 + $0x14c] sm:$0xf] %vm440, 0
        %525 = vst.msk [vmem:[%s439 + $0x150] sm:$0xf] %vm440, 0
        %526 = vst.msk [vmem:[%s439 + $0x154] sm:$0xf] %vm440, 0
        %527 = vst.msk [vmem:[%s439 + $0x158] sm:$0xf] %vm440, 0
        %528 = vst.msk [vmem:[%s439 + $0x15c] sm:$0xf] %vm440, 0
        %529 = vst.msk [vmem:[%s439 + $0x160] sm:$0xf] %vm440, 0
        %530 = vst.msk [vmem:[%s439 + $0x164] sm:$0xf] %vm440, 0
        %531 = vst.msk [vmem:[%s439 + $0x168] sm:$0xf] %vm440, 0
        %532 = vst.msk [vmem:[%s439 + $0x16c] sm:$0xf] %vm440, 0
        %533 = vst.msk [vmem:[%s439 + $0x170] sm:$0xf] %vm440, 0
        %534 = vst.msk [vmem:[%s439 + $0x174] sm:$0xf] %vm440, 0
        %535 = vst.msk [vmem:[%s439 + $0x178] sm:$0xf] %vm440, 0
        %536 = vst.msk [vmem:[%s439 + $0x17c] sm:$0xf] %vm440, 0
        %537 = vst.msk [vmem:[%s439 + $0x180] sm:$0xf] %vm440, 0
        %538 = vst.msk [vmem:[%s439 + $0x184] sm:$0xf] %vm440, 0
        %539 = vst.msk [vmem:[%s439 + $0x188] sm:$0xf] %vm440, 0
        %540 = vst.msk [vmem:[%s439 + $0x18c] sm:$0xf] %vm440, 0
        %541 = vst.msk [vmem:[%s439 + $0x190] sm:$0xf] %vm440, 0
        %542 = vst.msk [vmem:[%s439 + $0x194] sm:$0xf] %vm440, 0
        %543 = vst.msk [vmem:[%s439 + $0x198] sm:$0xf] %vm440, 0
        %544 = vst.msk [vmem:[%s439 + $0x19c] sm:$0xf] %vm440, 0
        %545 = vst.msk [vmem:[%s439 + $0x1a0] sm:$0xf] %vm440, 0
        %546 = vst.msk [vmem:[%s439 + $0x1a4] sm:$0xf] %vm440, 0
        %547 = vst.msk [vmem:[%s439 + $0x1a8] sm:$0xf] %vm440, 0
        %548 = vst.msk [vmem:[%s439 + $0x1ac] sm:$0xf] %vm440, 0
        %549 = vst.msk [vmem:[%s439 + $0x1b0] sm:$0xf] %vm440, 0
        %550 = vst.msk [vmem:[%s439 + $0x1b4] sm:$0xf] %vm440, 0
        %551 = vst.msk [vmem:[%s439 + $0x1b8] sm:$0xf] %vm440, 0
        %552 = vst.msk [vmem:[%s439 + $0x1bc] sm:$0xf] %vm440, 0
        %553 = vst.msk [vmem:[%s439 + $0x1c0] sm:$0xf] %vm440, 0
        %554 = vst.msk [vmem:[%s439 + $0x1c4] sm:$0xf] %vm440, 0
        %555 = vst.msk [vmem:[%s439 + $0x1c8] sm:$0xf] %vm440, 0
        %556 = vst.msk [vmem:[%s439 + $0x1cc] sm:$0xf] %vm440, 0
        %557 = vst.msk [vmem:[%s439 + $0x1d0] sm:$0xf] %vm440, 0
        %558 = vst.msk [vmem:[%s439 + $0x1d4] sm:$0xf] %vm440, 0
        %559 = vst.msk [vmem:[%s439 + $0x1d8] sm:$0xf] %vm440, 0
        %560 = vst.msk [vmem:[%s439 + $0x1dc] sm:$0xf] %vm440, 0
        %561 = vst.msk [vmem:[%s439 + $0x1e0] sm:$0xf] %vm440, 0
        %562 = vst.msk [vmem:[%s439 + $0x1e4] sm:$0xf] %vm440, 0
        %563 = vst.msk [vmem:[%s439 + $0x1e8] sm:$0xf] %vm440, 0
        %564 = vst.msk [vmem:[%s439 + $0x1ec] sm:$0xf] %vm440, 0
        %565 = vst.msk [vmem:[%s439 + $0x1f0] sm:$0xf] %vm440, 0
        %566 = vst.msk [vmem:[%s439 + $0x1f4] sm:$0xf] %vm440, 0
        %567 = vst.msk [vmem:[%s439 + $0x1f8] sm:$0xf] %vm440, 0
        %568 = vst.msk [vmem:[%s439 + $0x1fc] sm:$0xf] %vm440, 0
        %569 = vst.msk [vmem:[%s439 + $0x200] sm:$0xf] %vm440, 0
        %570 = vst.msk [vmem:[%s439 + $0x204] sm:$0xf] %vm440, 0
        %571 = vst.msk [vmem:[%s439 + $0x208] sm:$0xf] %vm440, 0
        %572 = vst.msk [vmem:[%s439 + $0x20c] sm:$0xf] %vm440, 0
        %573 = vst.msk [vmem:[%s439 + $0x210] sm:$0xf] %vm440, 0
        %574 = vst.msk [vmem:[%s439 + $0x214] sm:$0xf] %vm440, 0
        %575 = vst.msk [vmem:[%s439 + $0x218] sm:$0xf] %vm440, 0
        %576 = vst.msk [vmem:[%s439 + $0x21c] sm:$0xf] %vm440, 0
        %577 = vst.msk [vmem:[%s439 + $0x220] sm:$0xf] %vm440, 0
        %578 = vst.msk [vmem:[%s439 + $0x224] sm:$0xf] %vm440, 0
        %579 = vst.msk [vmem:[%s439 + $0x228] sm:$0xf] %vm440, 0
        %580 = vst.msk [vmem:[%s439 + $0x22c] sm:$0xf] %vm440, 0
        %581 = vst.msk [vmem:[%s439 + $0x230] sm:$0xf] %vm440, 0
        %582 = vst.msk [vmem:[%s439 + $0x234] sm:$0xf] %vm440, 0
        %583 = vst.msk [vmem:[%s439 + $0x238] sm:$0xf] %vm440, 0
        %584 = vst.msk [vmem:[%s439 + $0x23c] sm:$0xf] %vm440, 0
        %585 = vst.msk [vmem:[%s439 + $0x240] sm:$0xf] %vm440, 0
        %586 = vst.msk [vmem:[%s439 + $0x244] sm:$0xf] %vm440, 0
        %587 = vst.msk [vmem:[%s439 + $0x248] sm:$0xf] %vm440, 0
        %588 = vst.msk [vmem:[%s439 + $0x24c] sm:$0xf] %vm440, 0
        %589 = vst.msk [vmem:[%s439 + $0x250] sm:$0xf] %vm440, 0
        %590 = vst.msk [vmem:[%s439 + $0x254] sm:$0xf] %vm440, 0
        %591 = vst.msk [vmem:[%s439 + $0x258] sm:$0xf] %vm440, 0
        %592 = vst.msk [vmem:[%s439 + $0x25c] sm:$0xf] %vm440, 0
        %593 = vst.msk [vmem:[%s439 + $0x260] sm:$0xf] %vm440, 0
        %594 = vst.msk [vmem:[%s439 + $0x264] sm:$0xf] %vm440, 0
        %595 = vst.msk [vmem:[%s439 + $0x268] sm:$0xf] %vm440, 0
        %596 = vst.msk [vmem:[%s439 + $0x26c] sm:$0xf] %vm440, 0
        %597 = vst.msk [vmem:[%s439 + $0x270] sm:$0xf] %vm440, 0
        %598 = vst.msk [vmem:[%s439 + $0x274] sm:$0xf] %vm440, 0
        %599 = vst.msk [vmem:[%s439 + $0x278] sm:$0xf] %vm440, 0
        %600 = vst.msk [vmem:[%s439 + $0x27c] sm:$0xf] %vm440, 0
        %vm601 = vcmask 683664
        %602 = vst.msk [vmem:[%s439] sm:$0xf] %vm601, 0
        %603 = vst.msk [vmem:[%s439 + $0x4] sm:$0xf] %vm601, 0
        %604 = vst.msk [vmem:[%s439 + $0x8] sm:$0xf] %vm601, 0
        %605 = vst.msk [vmem:[%s439 + $0xc] sm:$0xf] %vm601, 0
        %606 = vst.msk [vmem:[%s439 + $0x10] sm:$0xf] %vm601, 0
        %607 = vst.msk [vmem:[%s439 + $0x14] sm:$0xf] %vm601, 0
        %608 = vst.msk [vmem:[%s439 + $0x18] sm:$0xf] %vm601, 0
        %609 = vst.msk [vmem:[%s439 + $0x1c] sm:$0xf] %vm601, 0
        %610 = vst.msk [vmem:[%s439 + $0x20] sm:$0xf] %vm601, 0
        %611 = vst.msk [vmem:[%s439 + $0x24] sm:$0xf] %vm601, 0
        %612 = vst.msk [vmem:[%s439 + $0x28] sm:$0xf] %vm601, 0
        %613 = vst.msk [vmem:[%s439 + $0x2c] sm:$0xf] %vm601, 0
        %614 = vst.msk [vmem:[%s439 + $0x30] sm:$0xf] %vm601, 0
        %615 = vst.msk [vmem:[%s439 + $0x34] sm:$0xf] %vm601, 0
        %616 = vst.msk [vmem:[%s439 + $0x38] sm:$0xf] %vm601, 0
        %617 = vst.msk [vmem:[%s439 + $0x3c] sm:$0xf] %vm601, 0
        %618 = vst.msk [vmem:[%s439 + $0x40] sm:$0xf] %vm601, 0
        %619 = vst.msk [vmem:[%s439 + $0x44] sm:$0xf] %vm601, 0
        %620 = vst.msk [vmem:[%s439 + $0x48] sm:$0xf] %vm601, 0
        %621 = vst.msk [vmem:[%s439 + $0x4c] sm:$0xf] %vm601, 0
        %622 = vst.msk [vmem:[%s439 + $0x50] sm:$0xf] %vm601, 0
        %623 = vst.msk [vmem:[%s439 + $0x54] sm:$0xf] %vm601, 0
        %624 = vst.msk [vmem:[%s439 + $0x58] sm:$0xf] %vm601, 0
        %625 = vst.msk [vmem:[%s439 + $0x5c] sm:$0xf] %vm601, 0
        %626 = vst.msk [vmem:[%s439 + $0x60] sm:$0xf] %vm601, 0
        %627 = vst.msk [vmem:[%s439 + $0x64] sm:$0xf] %vm601, 0
        %628 = vst.msk [vmem:[%s439 + $0x68] sm:$0xf] %vm601, 0
        %629 = vst.msk [vmem:[%s439 + $0x6c] sm:$0xf] %vm601, 0
        %630 = vst.msk [vmem:[%s439 + $0x70] sm:$0xf] %vm601, 0
        %631 = vst.msk [vmem:[%s439 + $0x74] sm:$0xf] %vm601, 0
        %632 = vst.msk [vmem:[%s439 + $0x78] sm:$0xf] %vm601, 0
        %633 = vst.msk [vmem:[%s439 + $0x7c] sm:$0xf] %vm601, 0
        %634 = vst.msk [vmem:[%s439 + $0x80] sm:$0xf] %vm601, 0
        %635 = vst.msk [vmem:[%s439 + $0x84] sm:$0xf] %vm601, 0
        %636 = vst.msk [vmem:[%s439 + $0x88] sm:$0xf] %vm601, 0
        %637 = vst.msk [vmem:[%s439 + $0x8c] sm:$0xf] %vm601, 0
        %638 = vst.msk [vmem:[%s439 + $0x90] sm:$0xf] %vm601, 0
        %639 = vst.msk [vmem:[%s439 + $0x94] sm:$0xf] %vm601, 0
        %640 = vst.msk [vmem:[%s439 + $0x98] sm:$0xf] %vm601, 0
        %641 = vst.msk [vmem:[%s439 + $0x9c] sm:$0xf] %vm601, 0
        %642 = vst.msk [vmem:[%s439 + $0xa0] sm:$0xf] %vm601, 0
        %643 = vst.msk [vmem:[%s439 + $0xa4] sm:$0xf] %vm601, 0
        %644 = vst.msk [vmem:[%s439 + $0xa8] sm:$0xf] %vm601, 0
        %645 = vst.msk [vmem:[%s439 + $0xac] sm:$0xf] %vm601, 0
        %646 = vst.msk [vmem:[%s439 + $0xb0] sm:$0xf] %vm601, 0
        %647 = vst.msk [vmem:[%s439 + $0xb4] sm:$0xf] %vm601, 0
        %648 = vst.msk [vmem:[%s439 + $0xb8] sm:$0xf] %vm601, 0
        %649 = vst.msk [vmem:[%s439 + $0xbc] sm:$0xf] %vm601, 0
        %650 = vst.msk [vmem:[%s439 + $0xc0] sm:$0xf] %vm601, 0
        %651 = vst.msk [vmem:[%s439 + $0xc4] sm:$0xf] %vm601, 0
        %652 = vst.msk [vmem:[%s439 + $0xc8] sm:$0xf] %vm601, 0
        %653 = vst.msk [vmem:[%s439 + $0xcc] sm:$0xf] %vm601, 0
        %654 = vst.msk [vmem:[%s439 + $0xd0] sm:$0xf] %vm601, 0
        %655 = vst.msk [vmem:[%s439 + $0xd4] sm:$0xf] %vm601, 0
        %656 = vst.msk [vmem:[%s439 + $0xd8] sm:$0xf] %vm601, 0
        %657 = vst.msk [vmem:[%s439 + $0xdc] sm:$0xf] %vm601, 0
        %658 = vst.msk [vmem:[%s439 + $0xe0] sm:$0xf] %vm601, 0
        %659 = vst.msk [vmem:[%s439 + $0xe4] sm:$0xf] %vm601, 0
        %660 = vst.msk [vmem:[%s439 + $0xe8] sm:$0xf] %vm601, 0
        %661 = vst.msk [vmem:[%s439 + $0xec] sm:$0xf] %vm601, 0
        %662 = vst.msk [vmem:[%s439 + $0xf0] sm:$0xf] %vm601, 0
        %663 = vst.msk [vmem:[%s439 + $0xf4] sm:$0xf] %vm601, 0
        %664 = vst.msk [vmem:[%s439 + $0xf8] sm:$0xf] %vm601, 0
        %665 = vst.msk [vmem:[%s439 + $0xfc] sm:$0xf] %vm601, 0
        %666 = vst.msk [vmem:[%s439 + $0x100] sm:$0xf] %vm601, 0
        %667 = vst.msk [vmem:[%s439 + $0x104] sm:$0xf] %vm601, 0
        %668 = vst.msk [vmem:[%s439 + $0x108] sm:$0xf] %vm601, 0
        %669 = vst.msk [vmem:[%s439 + $0x10c] sm:$0xf] %vm601, 0
        %670 = vst.msk [vmem:[%s439 + $0x110] sm:$0xf] %vm601, 0
        %671 = vst.msk [vmem:[%s439 + $0x114] sm:$0xf] %vm601, 0
        %672 = vst.msk [vmem:[%s439 + $0x118] sm:$0xf] %vm601, 0
        %673 = vst.msk [vmem:[%s439 + $0x11c] sm:$0xf] %vm601, 0
        %674 = vst.msk [vmem:[%s439 + $0x120] sm:$0xf] %vm601, 0
        %675 = vst.msk [vmem:[%s439 + $0x124] sm:$0xf] %vm601, 0
        %676 = vst.msk [vmem:[%s439 + $0x128] sm:$0xf] %vm601, 0
        %677 = vst.msk [vmem:[%s439 + $0x12c] sm:$0xf] %vm601, 0
        %678 = vst.msk [vmem:[%s439 + $0x130] sm:$0xf] %vm601, 0
        %679 = vst.msk [vmem:[%s439 + $0x134] sm:$0xf] %vm601, 0
        %680 = vst.msk [vmem:[%s439 + $0x138] sm:$0xf] %vm601, 0
        %681 = vst.msk [vmem:[%s439 + $0x13c] sm:$0xf] %vm601, 0
        %682 = vst.msk [vmem:[%s439 + $0x140] sm:$0xf] %vm601, 0
        %683 = vst.msk [vmem:[%s439 + $0x144] sm:$0xf] %vm601, 0
        %684 = vst.msk [vmem:[%s439 + $0x148] sm:$0xf] %vm601, 0
        %685 = vst.msk [vmem:[%s439 + $0x14c] sm:$0xf] %vm601, 0
        %686 = vst.msk [vmem:[%s439 + $0x150] sm:$0xf] %vm601, 0
        %687 = vst.msk [vmem:[%s439 + $0x154] sm:$0xf] %vm601, 0
        %688 = vst.msk [vmem:[%s439 + $0x158] sm:$0xf] %vm601, 0
        %689 = vst.msk [vmem:[%s439 + $0x15c] sm:$0xf] %vm601, 0
        %690 = vst.msk [vmem:[%s439 + $0x160] sm:$0xf] %vm601, 0
        %691 = vst.msk [vmem:[%s439 + $0x164] sm:$0xf] %vm601, 0
        %692 = vst.msk [vmem:[%s439 + $0x168] sm:$0xf] %vm601, 0
        %693 = vst.msk [vmem:[%s439 + $0x16c] sm:$0xf] %vm601, 0
        %694 = vst.msk [vmem:[%s439 + $0x170] sm:$0xf] %vm601, 0
        %695 = vst.msk [vmem:[%s439 + $0x174] sm:$0xf] %vm601, 0
        %696 = vst.msk [vmem:[%s439 + $0x178] sm:$0xf] %vm601, 0
        %697 = vst.msk [vmem:[%s439 + $0x17c] sm:$0xf] %vm601, 0
        %698 = vst.msk [vmem:[%s439 + $0x180] sm:$0xf] %vm601, 0
        %699 = vst.msk [vmem:[%s439 + $0x184] sm:$0xf] %vm601, 0
        %700 = vst.msk [vmem:[%s439 + $0x188] sm:$0xf] %vm601, 0
        %701 = vst.msk [vmem:[%s439 + $0x18c] sm:$0xf] %vm601, 0
        %702 = vst.msk [vmem:[%s439 + $0x190] sm:$0xf] %vm601, 0
        %703 = vst.msk [vmem:[%s439 + $0x194] sm:$0xf] %vm601, 0
        %704 = vst.msk [vmem:[%s439 + $0x198] sm:$0xf] %vm601, 0
        %705 = vst.msk [vmem:[%s439 + $0x19c] sm:$0xf] %vm601, 0
        %706 = vst.msk [vmem:[%s439 + $0x1a0] sm:$0xf] %vm601, 0
        %707 = vst.msk [vmem:[%s439 + $0x1a4] sm:$0xf] %vm601, 0
        %708 = vst.msk [vmem:[%s439 + $0x1a8] sm:$0xf] %vm601, 0
        %709 = vst.msk [vmem:[%s439 + $0x1ac] sm:$0xf] %vm601, 0
        %710 = vst.msk [vmem:[%s439 + $0x1b0] sm:$0xf] %vm601, 0
        %711 = vst.msk [vmem:[%s439 + $0x1b4] sm:$0xf] %vm601, 0
        %712 = vst.msk [vmem:[%s439 + $0x1b8] sm:$0xf] %vm601, 0
        %713 = vst.msk [vmem:[%s439 + $0x1bc] sm:$0xf] %vm601, 0
        %714 = vst.msk [vmem:[%s439 + $0x1c0] sm:$0xf] %vm601, 0
        %715 = vst.msk [vmem:[%s439 + $0x1c4] sm:$0xf] %vm601, 0
        %716 = vst.msk [vmem:[%s439 + $0x1c8] sm:$0xf] %vm601, 0
        %717 = vst.msk [vmem:[%s439 + $0x1cc] sm:$0xf] %vm601, 0
        %718 = vst.msk [vmem:[%s439 + $0x1d0] sm:$0xf] %vm601, 0
        %719 = vst.msk [vmem:[%s439 + $0x1d4] sm:$0xf] %vm601, 0
        %720 = vst.msk [vmem:[%s439 + $0x1d8] sm:$0xf] %vm601, 0
        %721 = vst.msk [vmem:[%s439 + $0x1dc] sm:$0xf] %vm601, 0
        %722 = vst.msk [vmem:[%s439 + $0x1e0] sm:$0xf] %vm601, 0
        %723 = vst.msk [vmem:[%s439 + $0x1e4] sm:$0xf] %vm601, 0
        %724 = vst.msk [vmem:[%s439 + $0x1e8] sm:$0xf] %vm601, 0
        %725 = vst.msk [vmem:[%s439 + $0x1ec] sm:$0xf] %vm601, 0
        %726 = vst.msk [vmem:[%s439 + $0x1f0] sm:$0xf] %vm601, 0
        %727 = vst.msk [vmem:[%s439 + $0x1f4] sm:$0xf] %vm601, 0
        %728 = vst.msk [vmem:[%s439 + $0x1f8] sm:$0xf] %vm601, 0
        %729 = vst.msk [vmem:[%s439 + $0x1fc] sm:$0xf] %vm601, 0
        %730 = vst.msk [vmem:[%s439 + $0x200] sm:$0xf] %vm601, 0
        %731 = vst.msk [vmem:[%s439 + $0x204] sm:$0xf] %vm601, 0
        %732 = vst.msk [vmem:[%s439 + $0x208] sm:$0xf] %vm601, 0
        %733 = vst.msk [vmem:[%s439 + $0x20c] sm:$0xf] %vm601, 0
        %734 = vst.msk [vmem:[%s439 + $0x210] sm:$0xf] %vm601, 0
        %735 = vst.msk [vmem:[%s439 + $0x214] sm:$0xf] %vm601, 0
        %736 = vst.msk [vmem:[%s439 + $0x218] sm:$0xf] %vm601, 0
        %737 = vst.msk [vmem:[%s439 + $0x21c] sm:$0xf] %vm601, 0
        %738 = vst.msk [vmem:[%s439 + $0x220] sm:$0xf] %vm601, 0
        %739 = vst.msk [vmem:[%s439 + $0x224] sm:$0xf] %vm601, 0
        %740 = vst.msk [vmem:[%s439 + $0x228] sm:$0xf] %vm601, 0
        %741 = vst.msk [vmem:[%s439 + $0x22c] sm:$0xf] %vm601, 0
        %742 = vst.msk [vmem:[%s439 + $0x230] sm:$0xf] %vm601, 0
        %743 = vst.msk [vmem:[%s439 + $0x234] sm:$0xf] %vm601, 0
        %744 = vst.msk [vmem:[%s439 + $0x238] sm:$0xf] %vm601, 0
        %745 = vst.msk [vmem:[%s439 + $0x23c] sm:$0xf] %vm601, 0
        %746 = vst.msk [vmem:[%s439 + $0x240] sm:$0xf] %vm601, 0
        %747 = vst.msk [vmem:[%s439 + $0x244] sm:$0xf] %vm601, 0
        %748 = vst.msk [vmem:[%s439 + $0x248] sm:$0xf] %vm601, 0
        %749 = vst.msk [vmem:[%s439 + $0x24c] sm:$0xf] %vm601, 0
        %750 = vst.msk [vmem:[%s439 + $0x250] sm:$0xf] %vm601, 0
        %751 = vst.msk [vmem:[%s439 + $0x254] sm:$0xf] %vm601, 0
        %752 = vst.msk [vmem:[%s439 + $0x258] sm:$0xf] %vm601, 0
        %753 = vst.msk [vmem:[%s439 + $0x25c] sm:$0xf] %vm601, 0
        %754 = vst.msk [vmem:[%s439 + $0x260] sm:$0xf] %vm601, 0
        %755 = vst.msk [vmem:[%s439 + $0x264] sm:$0xf] %vm601, 0
        %756 = vst.msk [vmem:[%s439 + $0x268] sm:$0xf] %vm601, 0
        %757 = vst.msk [vmem:[%s439 + $0x26c] sm:$0xf] %vm601, 0
        %758 = vst.msk [vmem:[%s439 + $0x270] sm:$0xf] %vm601, 0
        %759 = vst.msk [vmem:[%s439 + $0x274] sm:$0xf] %vm601, 0
        %760 = vst.msk [vmem:[%s439 + $0x278] sm:$0xf] %vm601, 0
        %761 = vst.msk [vmem:[%s439 + $0x27c] sm:$0xf] %vm601, 0
        %vm762 = vcmask 670720
        %763 = vst.msk [vmem:[#allocation5] sm:$0xff] %vm762, 0.0
        %764 = vst.msk [vmem:[#allocation5 + $0x8] sm:$0xff] %vm762, 0.0
        %s765 = scalar_lea.vmem [#allocation5], 1296
        %766 = vst.msk [vmem:[%s765] sm:$0xff] %vm762, 0.0
        %767 = vst.msk [vmem:[%s765 + $0x8] sm:$0xff] %vm762, 0.0
        %s768 = scalar_lea.vmem [#allocation5], 16
        %vm769 = vcmask 7168
        %770 = vst.msk [vmem:[%s768] sm:$0xff] %vm769, 0.0
        %771 = vst.msk [vmem:[%s768 + $0x8] sm:$0xff] %vm769, 0.0
        %772 = vst.msk [vmem:[%s768 + $0x10] sm:$0xff] %vm769, 0.0
        %773 = vst.msk [vmem:[%s768 + $0x18] sm:$0xff] %vm769, 0.0
        %774 = vst.msk [vmem:[%s768 + $0x20] sm:$0xff] %vm769, 0.0
        %775 = vst.msk [vmem:[%s768 + $0x28] sm:$0xff] %vm769, 0.0
        %776 = vst.msk [vmem:[%s768 + $0x30] sm:$0xff] %vm769, 0.0
        %777 = vst.msk [vmem:[%s768 + $0x38] sm:$0xff] %vm769, 0.0
        %778 = vst.msk [vmem:[%s768 + $0x40] sm:$0xff] %vm769, 0.0
        %779 = vst.msk [vmem:[%s768 + $0x48] sm:$0xff] %vm769, 0.0
        %780 = vst.msk [vmem:[%s768 + $0x50] sm:$0xff] %vm769, 0.0
        %781 = vst.msk [vmem:[%s768 + $0x58] sm:$0xff] %vm769, 0.0
        %782 = vst.msk [vmem:[%s768 + $0x60] sm:$0xff] %vm769, 0.0
        %783 = vst.msk [vmem:[%s768 + $0x68] sm:$0xff] %vm769, 0.0
        %784 = vst.msk [vmem:[%s768 + $0x70] sm:$0xff] %vm769, 0.0
        %785 = vst.msk [vmem:[%s768 + $0x78] sm:$0xff] %vm769, 0.0
        %786 = vst.msk [vmem:[%s768 + $0x80] sm:$0xff] %vm769, 0.0
        %787 = vst.msk [vmem:[%s768 + $0x88] sm:$0xff] %vm769, 0.0
        %788 = vst.msk [vmem:[%s768 + $0x90] sm:$0xff] %vm769, 0.0
        %789 = vst.msk [vmem:[%s768 + $0x98] sm:$0xff] %vm769, 0.0
        %790 = vst.msk [vmem:[%s768 + $0xa0] sm:$0xff] %vm769, 0.0
        %791 = vst.msk [vmem:[%s768 + $0xa8] sm:$0xff] %vm769, 0.0
        %792 = vst.msk [vmem:[%s768 + $0xb0] sm:$0xff] %vm769, 0.0
        %793 = vst.msk [vmem:[%s768 + $0xb8] sm:$0xff] %vm769, 0.0
        %794 = vst.msk [vmem:[%s768 + $0xc0] sm:$0xff] %vm769, 0.0
        %795 = vst.msk [vmem:[%s768 + $0xc8] sm:$0xff] %vm769, 0.0
        %796 = vst.msk [vmem:[%s768 + $0xd0] sm:$0xff] %vm769, 0.0
        %797 = vst.msk [vmem:[%s768 + $0xd8] sm:$0xff] %vm769, 0.0
        %798 = vst.msk [vmem:[%s768 + $0xe0] sm:$0xff] %vm769, 0.0
        %799 = vst.msk [vmem:[%s768 + $0xe8] sm:$0xff] %vm769, 0.0
        %800 = vst.msk [vmem:[%s768 + $0xf0] sm:$0xff] %vm769, 0.0
        %801 = vst.msk [vmem:[%s768 + $0xf8] sm:$0xff] %vm769, 0.0
        %802 = vst.msk [vmem:[%s768 + $0x100] sm:$0xff] %vm769, 0.0
        %803 = vst.msk [vmem:[%s768 + $0x108] sm:$0xff] %vm769, 0.0
        %804 = vst.msk [vmem:[%s768 + $0x110] sm:$0xff] %vm769, 0.0
        %805 = vst.msk [vmem:[%s768 + $0x118] sm:$0xff] %vm769, 0.0
        %806 = vst.msk [vmem:[%s768 + $0x120] sm:$0xff] %vm769, 0.0
        %807 = vst.msk [vmem:[%s768 + $0x128] sm:$0xff] %vm769, 0.0
        %808 = vst.msk [vmem:[%s768 + $0x130] sm:$0xff] %vm769, 0.0
        %809 = vst.msk [vmem:[%s768 + $0x138] sm:$0xff] %vm769, 0.0
        %810 = vst.msk [vmem:[%s768 + $0x140] sm:$0xff] %vm769, 0.0
        %811 = vst.msk [vmem:[%s768 + $0x148] sm:$0xff] %vm769, 0.0
        %812 = vst.msk [vmem:[%s768 + $0x150] sm:$0xff] %vm769, 0.0
        %813 = vst.msk [vmem:[%s768 + $0x158] sm:$0xff] %vm769, 0.0
        %814 = vst.msk [vmem:[%s768 + $0x160] sm:$0xff] %vm769, 0.0
        %815 = vst.msk [vmem:[%s768 + $0x168] sm:$0xff] %vm769, 0.0
        %816 = vst.msk [vmem:[%s768 + $0x170] sm:$0xff] %vm769, 0.0
        %817 = vst.msk [vmem:[%s768 + $0x178] sm:$0xff] %vm769, 0.0
        %818 = vst.msk [vmem:[%s768 + $0x180] sm:$0xff] %vm769, 0.0
        %819 = vst.msk [vmem:[%s768 + $0x188] sm:$0xff] %vm769, 0.0
        %820 = vst.msk [vmem:[%s768 + $0x190] sm:$0xff] %vm769, 0.0
        %821 = vst.msk [vmem:[%s768 + $0x198] sm:$0xff] %vm769, 0.0
        %822 = vst.msk [vmem:[%s768 + $0x1a0] sm:$0xff] %vm769, 0.0
        %823 = vst.msk [vmem:[%s768 + $0x1a8] sm:$0xff] %vm769, 0.0
        %824 = vst.msk [vmem:[%s768 + $0x1b0] sm:$0xff] %vm769, 0.0
        %825 = vst.msk [vmem:[%s768 + $0x1b8] sm:$0xff] %vm769, 0.0
        %826 = vst.msk [vmem:[%s768 + $0x1c0] sm:$0xff] %vm769, 0.0
        %827 = vst.msk [vmem:[%s768 + $0x1c8] sm:$0xff] %vm769, 0.0
        %828 = vst.msk [vmem:[%s768 + $0x1d0] sm:$0xff] %vm769, 0.0
        %829 = vst.msk [vmem:[%s768 + $0x1d8] sm:$0xff] %vm769, 0.0
        %830 = vst.msk [vmem:[%s768 + $0x1e0] sm:$0xff] %vm769, 0.0
        %831 = vst.msk [vmem:[%s768 + $0x1e8] sm:$0xff] %vm769, 0.0
        %832 = vst.msk [vmem:[%s768 + $0x1f0] sm:$0xff] %vm769, 0.0
        %833 = vst.msk [vmem:[%s768 + $0x1f8] sm:$0xff] %vm769, 0.0
        %834 = vst.msk [vmem:[%s768 + $0x200] sm:$0xff] %vm769, 0.0
        %835 = vst.msk [vmem:[%s768 + $0x208] sm:$0xff] %vm769, 0.0
        %836 = vst.msk [vmem:[%s768 + $0x210] sm:$0xff] %vm769, 0.0
        %837 = vst.msk [vmem:[%s768 + $0x218] sm:$0xff] %vm769, 0.0
        %838 = vst.msk [vmem:[%s768 + $0x220] sm:$0xff] %vm769, 0.0
        %839 = vst.msk [vmem:[%s768 + $0x228] sm:$0xff] %vm769, 0.0
        %840 = vst.msk [vmem:[%s768 + $0x230] sm:$0xff] %vm769, 0.0
        %841 = vst.msk [vmem:[%s768 + $0x238] sm:$0xff] %vm769, 0.0
        %842 = vst.msk [vmem:[%s768 + $0x240] sm:$0xff] %vm769, 0.0
        %843 = vst.msk [vmem:[%s768 + $0x248] sm:$0xff] %vm769, 0.0
        %844 = vst.msk [vmem:[%s768 + $0x250] sm:$0xff] %vm769, 0.0
        %845 = vst.msk [vmem:[%s768 + $0x258] sm:$0xff] %vm769, 0.0
        %846 = vst.msk [vmem:[%s768 + $0x260] sm:$0xff] %vm769, 0.0
        %847 = vst.msk [vmem:[%s768 + $0x268] sm:$0xff] %vm769, 0.0
        %848 = vst.msk [vmem:[%s768 + $0x270] sm:$0xff] %vm769, 0.0
        %849 = vst.msk [vmem:[%s768 + $0x278] sm:$0xff] %vm769, 0.0
        %850 = vst.msk [vmem:[%s768 + $0x280] sm:$0xff] %vm769, 0.0
        %851 = vst.msk [vmem:[%s768 + $0x288] sm:$0xff] %vm769, 0.0
        %852 = vst.msk [vmem:[%s768 + $0x290] sm:$0xff] %vm769, 0.0
        %853 = vst.msk [vmem:[%s768 + $0x298] sm:$0xff] %vm769, 0.0
        %854 = vst.msk [vmem:[%s768 + $0x2a0] sm:$0xff] %vm769, 0.0
        %855 = vst.msk [vmem:[%s768 + $0x2a8] sm:$0xff] %vm769, 0.0
        %856 = vst.msk [vmem:[%s768 + $0x2b0] sm:$0xff] %vm769, 0.0
        %857 = vst.msk [vmem:[%s768 + $0x2b8] sm:$0xff] %vm769, 0.0
        %858 = vst.msk [vmem:[%s768 + $0x2c0] sm:$0xff] %vm769, 0.0
        %859 = vst.msk [vmem:[%s768 + $0x2c8] sm:$0xff] %vm769, 0.0
        %860 = vst.msk [vmem:[%s768 + $0x2d0] sm:$0xff] %vm769, 0.0
        %861 = vst.msk [vmem:[%s768 + $0x2d8] sm:$0xff] %vm769, 0.0
        %862 = vst.msk [vmem:[%s768 + $0x2e0] sm:$0xff] %vm769, 0.0
        %863 = vst.msk [vmem:[%s768 + $0x2e8] sm:$0xff] %vm769, 0.0
        %864 = vst.msk [vmem:[%s768 + $0x2f0] sm:$0xff] %vm769, 0.0
        %865 = vst.msk [vmem:[%s768 + $0x2f8] sm:$0xff] %vm769, 0.0
        %866 = vst.msk [vmem:[%s768 + $0x300] sm:$0xff] %vm769, 0.0
        %867 = vst.msk [vmem:[%s768 + $0x308] sm:$0xff] %vm769, 0.0
        %868 = vst.msk [vmem:[%s768 + $0x310] sm:$0xff] %vm769, 0.0
        %869 = vst.msk [vmem:[%s768 + $0x318] sm:$0xff] %vm769, 0.0
        %870 = vst.msk [vmem:[%s768 + $0x320] sm:$0xff] %vm769, 0.0
        %871 = vst.msk [vmem:[%s768 + $0x328] sm:$0xff] %vm769, 0.0
        %872 = vst.msk [vmem:[%s768 + $0x330] sm:$0xff] %vm769, 0.0
        %873 = vst.msk [vmem:[%s768 + $0x338] sm:$0xff] %vm769, 0.0
        %874 = vst.msk [vmem:[%s768 + $0x340] sm:$0xff] %vm769, 0.0
        %875 = vst.msk [vmem:[%s768 + $0x348] sm:$0xff] %vm769, 0.0
        %876 = vst.msk [vmem:[%s768 + $0x350] sm:$0xff] %vm769, 0.0
        %877 = vst.msk [vmem:[%s768 + $0x358] sm:$0xff] %vm769, 0.0
        %878 = vst.msk [vmem:[%s768 + $0x360] sm:$0xff] %vm769, 0.0
        %879 = vst.msk [vmem:[%s768 + $0x368] sm:$0xff] %vm769, 0.0
        %880 = vst.msk [vmem:[%s768 + $0x370] sm:$0xff] %vm769, 0.0
        %881 = vst.msk [vmem:[%s768 + $0x378] sm:$0xff] %vm769, 0.0
        %882 = vst.msk [vmem:[%s768 + $0x380] sm:$0xff] %vm769, 0.0
        %883 = vst.msk [vmem:[%s768 + $0x388] sm:$0xff] %vm769, 0.0
        %884 = vst.msk [vmem:[%s768 + $0x390] sm:$0xff] %vm769, 0.0
        %885 = vst.msk [vmem:[%s768 + $0x398] sm:$0xff] %vm769, 0.0
        %886 = vst.msk [vmem:[%s768 + $0x3a0] sm:$0xff] %vm769, 0.0
        %887 = vst.msk [vmem:[%s768 + $0x3a8] sm:$0xff] %vm769, 0.0
        %888 = vst.msk [vmem:[%s768 + $0x3b0] sm:$0xff] %vm769, 0.0
        %889 = vst.msk [vmem:[%s768 + $0x3b8] sm:$0xff] %vm769, 0.0
        %890 = vst.msk [vmem:[%s768 + $0x3c0] sm:$0xff] %vm769, 0.0
        %891 = vst.msk [vmem:[%s768 + $0x3c8] sm:$0xff] %vm769, 0.0
        %892 = vst.msk [vmem:[%s768 + $0x3d0] sm:$0xff] %vm769, 0.0
        %893 = vst.msk [vmem:[%s768 + $0x3d8] sm:$0xff] %vm769, 0.0
        %894 = vst.msk [vmem:[%s768 + $0x3e0] sm:$0xff] %vm769, 0.0
        %895 = vst.msk [vmem:[%s768 + $0x3e8] sm:$0xff] %vm769, 0.0
        %896 = vst.msk [vmem:[%s768 + $0x3f0] sm:$0xff] %vm769, 0.0
        %897 = vst.msk [vmem:[%s768 + $0x3f8] sm:$0xff] %vm769, 0.0
        %898 = vst.msk [vmem:[%s768 + $0x400] sm:$0xff] %vm769, 0.0
        %899 = vst.msk [vmem:[%s768 + $0x408] sm:$0xff] %vm769, 0.0
        %900 = vst.msk [vmem:[%s768 + $0x410] sm:$0xff] %vm769, 0.0
        %901 = vst.msk [vmem:[%s768 + $0x418] sm:$0xff] %vm769, 0.0
        %902 = vst.msk [vmem:[%s768 + $0x420] sm:$0xff] %vm769, 0.0
        %903 = vst.msk [vmem:[%s768 + $0x428] sm:$0xff] %vm769, 0.0
        %904 = vst.msk [vmem:[%s768 + $0x430] sm:$0xff] %vm769, 0.0
        %905 = vst.msk [vmem:[%s768 + $0x438] sm:$0xff] %vm769, 0.0
        %906 = vst.msk [vmem:[%s768 + $0x440] sm:$0xff] %vm769, 0.0
        %907 = vst.msk [vmem:[%s768 + $0x448] sm:$0xff] %vm769, 0.0
        %908 = vst.msk [vmem:[%s768 + $0x450] sm:$0xff] %vm769, 0.0
        %909 = vst.msk [vmem:[%s768 + $0x458] sm:$0xff] %vm769, 0.0
        %910 = vst.msk [vmem:[%s768 + $0x460] sm:$0xff] %vm769, 0.0
        %911 = vst.msk [vmem:[%s768 + $0x468] sm:$0xff] %vm769, 0.0
        %912 = vst.msk [vmem:[%s768 + $0x470] sm:$0xff] %vm769, 0.0
        %913 = vst.msk [vmem:[%s768 + $0x478] sm:$0xff] %vm769, 0.0
        %914 = vst.msk [vmem:[%s768 + $0x480] sm:$0xff] %vm769, 0.0
        %915 = vst.msk [vmem:[%s768 + $0x488] sm:$0xff] %vm769, 0.0
        %916 = vst.msk [vmem:[%s768 + $0x490] sm:$0xff] %vm769, 0.0
        %917 = vst.msk [vmem:[%s768 + $0x498] sm:$0xff] %vm769, 0.0
        %918 = vst.msk [vmem:[%s768 + $0x4a0] sm:$0xff] %vm769, 0.0
        %919 = vst.msk [vmem:[%s768 + $0x4a8] sm:$0xff] %vm769, 0.0
        %920 = vst.msk [vmem:[%s768 + $0x4b0] sm:$0xff] %vm769, 0.0
        %921 = vst.msk [vmem:[%s768 + $0x4b8] sm:$0xff] %vm769, 0.0
        %922 = vst.msk [vmem:[%s768 + $0x4c0] sm:$0xff] %vm769, 0.0
        %923 = vst.msk [vmem:[%s768 + $0x4c8] sm:$0xff] %vm769, 0.0
        %924 = vst.msk [vmem:[%s768 + $0x4d0] sm:$0xff] %vm769, 0.0
        %925 = vst.msk [vmem:[%s768 + $0x4d8] sm:$0xff] %vm769, 0.0
        %926 = vst.msk [vmem:[%s768 + $0x4e0] sm:$0xff] %vm769, 0.0
        %927 = vst.msk [vmem:[%s768 + $0x4e8] sm:$0xff] %vm769, 0.0
        %928 = vst.msk [vmem:[%s768 + $0x4f0] sm:$0xff] %vm769, 0.0
        %929 = vst.msk [vmem:[%s768 + $0x4f8] sm:$0xff] %vm769, 0.0
        %vm930 = vcmask 671368
        %931 = vst.msk [vmem:[%s768] sm:$0xff] %vm930, 0.0
        %932 = vst.msk [vmem:[%s768 + $0x8] sm:$0xff] %vm930, 0.0
        %933 = vst.msk [vmem:[%s768 + $0x10] sm:$0xff] %vm930, 0.0
        %934 = vst.msk [vmem:[%s768 + $0x18] sm:$0xff] %vm930, 0.0
        %935 = vst.msk [vmem:[%s768 + $0x20] sm:$0xff] %vm930, 0.0
        %936 = vst.msk [vmem:[%s768 + $0x28] sm:$0xff] %vm930, 0.0
        %937 = vst.msk [vmem:[%s768 + $0x30] sm:$0xff] %vm930, 0.0
        %938 = vst.msk [vmem:[%s768 + $0x38] sm:$0xff] %vm930, 0.0
        %939 = vst.msk [vmem:[%s768 + $0x40] sm:$0xff] %vm930, 0.0
        %940 = vst.msk [vmem:[%s768 + $0x48] sm:$0xff] %vm930, 0.0
        %941 = vst.msk [vmem:[%s768 + $0x50] sm:$0xff] %vm930, 0.0
        %942 = vst.msk [vmem:[%s768 + $0x58] sm:$0xff] %vm930, 0.0
        %943 = vst.msk [vmem:[%s768 + $0x60] sm:$0xff] %vm930, 0.0
        %944 = vst.msk [vmem:[%s768 + $0x68] sm:$0xff] %vm930, 0.0
        %945 = vst.msk [vmem:[%s768 + $0x70] sm:$0xff] %vm930, 0.0
        %946 = vst.msk [vmem:[%s768 + $0x78] sm:$0xff] %vm930, 0.0
        %947 = vst.msk [vmem:[%s768 + $0x80] sm:$0xff] %vm930, 0.0
        %948 = vst.msk [vmem:[%s768 + $0x88] sm:$0xff] %vm930, 0.0
        %949 = vst.msk [vmem:[%s768 + $0x90] sm:$0xff] %vm930, 0.0
        %950 = vst.msk [vmem:[%s768 + $0x98] sm:$0xff] %vm930, 0.0
        %951 = vst.msk [vmem:[%s768 + $0xa0] sm:$0xff] %vm930, 0.0
        %952 = vst.msk [vmem:[%s768 + $0xa8] sm:$0xff] %vm930, 0.0
        %953 = vst.msk [vmem:[%s768 + $0xb0] sm:$0xff] %vm930, 0.0
        %954 = vst.msk [vmem:[%s768 + $0xb8] sm:$0xff] %vm930, 0.0
        %955 = vst.msk [vmem:[%s768 + $0xc0] sm:$0xff] %vm930, 0.0
        %956 = vst.msk [vmem:[%s768 + $0xc8] sm:$0xff] %vm930, 0.0
        %957 = vst.msk [vmem:[%s768 + $0xd0] sm:$0xff] %vm930, 0.0
        %958 = vst.msk [vmem:[%s768 + $0xd8] sm:$0xff] %vm930, 0.0
        %959 = vst.msk [vmem:[%s768 + $0xe0] sm:$0xff] %vm930, 0.0
        %960 = vst.msk [vmem:[%s768 + $0xe8] sm:$0xff] %vm930, 0.0
        %961 = vst.msk [vmem:[%s768 + $0xf0] sm:$0xff] %vm930, 0.0
        %962 = vst.msk [vmem:[%s768 + $0xf8] sm:$0xff] %vm930, 0.0
        %963 = vst.msk [vmem:[%s768 + $0x100] sm:$0xff] %vm930, 0.0
        %964 = vst.msk [vmem:[%s768 + $0x108] sm:$0xff] %vm930, 0.0
        %965 = vst.msk [vmem:[%s768 + $0x110] sm:$0xff] %vm930, 0.0
        %966 = vst.msk [vmem:[%s768 + $0x118] sm:$0xff] %vm930, 0.0
        %967 = vst.msk [vmem:[%s768 + $0x120] sm:$0xff] %vm930, 0.0
        %968 = vst.msk [vmem:[%s768 + $0x128] sm:$0xff] %vm930, 0.0
        %969 = vst.msk [vmem:[%s768 + $0x130] sm:$0xff] %vm930, 0.0
        %970 = vst.msk [vmem:[%s768 + $0x138] sm:$0xff] %vm930, 0.0
        %971 = vst.msk [vmem:[%s768 + $0x140] sm:$0xff] %vm930, 0.0
        %972 = vst.msk [vmem:[%s768 + $0x148] sm:$0xff] %vm930, 0.0
        %973 = vst.msk [vmem:[%s768 + $0x150] sm:$0xff] %vm930, 0.0
        %974 = vst.msk [vmem:[%s768 + $0x158] sm:$0xff] %vm930, 0.0
        %975 = vst.msk [vmem:[%s768 + $0x160] sm:$0xff] %vm930, 0.0
        %976 = vst.msk [vmem:[%s768 + $0x168] sm:$0xff] %vm930, 0.0
        %977 = vst.msk [vmem:[%s768 + $0x170] sm:$0xff] %vm930, 0.0
        %978 = vst.msk [vmem:[%s768 + $0x178] sm:$0xff] %vm930, 0.0
        %979 = vst.msk [vmem:[%s768 + $0x180] sm:$0xff] %vm930, 0.0
        %980 = vst.msk [vmem:[%s768 + $0x188] sm:$0xff] %vm930, 0.0
        %981 = vst.msk [vmem:[%s768 + $0x190] sm:$0xff] %vm930, 0.0
        %982 = vst.msk [vmem:[%s768 + $0x198] sm:$0xff] %vm930, 0.0
        %983 = vst.msk [vmem:[%s768 + $0x1a0] sm:$0xff] %vm930, 0.0
        %984 = vst.msk [vmem:[%s768 + $0x1a8] sm:$0xff] %vm930, 0.0
        %985 = vst.msk [vmem:[%s768 + $0x1b0] sm:$0xff] %vm930, 0.0
        %986 = vst.msk [vmem:[%s768 + $0x1b8] sm:$0xff] %vm930, 0.0
        %987 = vst.msk [vmem:[%s768 + $0x1c0] sm:$0xff] %vm930, 0.0
        %988 = vst.msk [vmem:[%s768 + $0x1c8] sm:$0xff] %vm930, 0.0
        %989 = vst.msk [vmem:[%s768 + $0x1d0] sm:$0xff] %vm930, 0.0
        %990 = vst.msk [vmem:[%s768 + $0x1d8] sm:$0xff] %vm930, 0.0
        %991 = vst.msk [vmem:[%s768 + $0x1e0] sm:$0xff] %vm930, 0.0
        %992 = vst.msk [vmem:[%s768 + $0x1e8] sm:$0xff] %vm930, 0.0
        %993 = vst.msk [vmem:[%s768 + $0x1f0] sm:$0xff] %vm930, 0.0
        %994 = vst.msk [vmem:[%s768 + $0x1f8] sm:$0xff] %vm930, 0.0
        %995 = vst.msk [vmem:[%s768 + $0x200] sm:$0xff] %vm930, 0.0
        %996 = vst.msk [vmem:[%s768 + $0x208] sm:$0xff] %vm930, 0.0
        %997 = vst.msk [vmem:[%s768 + $0x210] sm:$0xff] %vm930, 0.0
        %998 = vst.msk [vmem:[%s768 + $0x218] sm:$0xff] %vm930, 0.0
        %999 = vst.msk [vmem:[%s768 + $0x220] sm:$0xff] %vm930, 0.0
        %1000 = vst.msk [vmem:[%s768 + $0x228] sm:$0xff] %vm930, 0.0
        %1001 = vst.msk [vmem:[%s768 + $0x230] sm:$0xff] %vm930, 0.0
        %1002 = vst.msk [vmem:[%s768 + $0x238] sm:$0xff] %vm930, 0.0
        %1003 = vst.msk [vmem:[%s768 + $0x240] sm:$0xff] %vm930, 0.0
        %1004 = vst.msk [vmem:[%s768 + $0x248] sm:$0xff] %vm930, 0.0
        %1005 = vst.msk [vmem:[%s768 + $0x250] sm:$0xff] %vm930, 0.0
        %1006 = vst.msk [vmem:[%s768 + $0x258] sm:$0xff] %vm930, 0.0
        %1007 = vst.msk [vmem:[%s768 + $0x260] sm:$0xff] %vm930, 0.0
        %1008 = vst.msk [vmem:[%s768 + $0x268] sm:$0xff] %vm930, 0.0
        %1009 = vst.msk [vmem:[%s768 + $0x270] sm:$0xff] %vm930, 0.0
        %1010 = vst.msk [vmem:[%s768 + $0x278] sm:$0xff] %vm930, 0.0
        %1011 = vst.msk [vmem:[%s768 + $0x280] sm:$0xff] %vm930, 0.0
        %1012 = vst.msk [vmem:[%s768 + $0x288] sm:$0xff] %vm930, 0.0
        %1013 = vst.msk [vmem:[%s768 + $0x290] sm:$0xff] %vm930, 0.0
        %1014 = vst.msk [vmem:[%s768 + $0x298] sm:$0xff] %vm930, 0.0
        %1015 = vst.msk [vmem:[%s768 + $0x2a0] sm:$0xff] %vm930, 0.0
        %1016 = vst.msk [vmem:[%s768 + $0x2a8] sm:$0xff] %vm930, 0.0
        %1017 = vst.msk [vmem:[%s768 + $0x2b0] sm:$0xff] %vm930, 0.0
        %1018 = vst.msk [vmem:[%s768 + $0x2b8] sm:$0xff] %vm930, 0.0
        %1019 = vst.msk [vmem:[%s768 + $0x2c0] sm:$0xff] %vm930, 0.0
        %1020 = vst.msk [vmem:[%s768 + $0x2c8] sm:$0xff] %vm930, 0.0
        %1021 = vst.msk [vmem:[%s768 + $0x2d0] sm:$0xff] %vm930, 0.0
        %1022 = vst.msk [vmem:[%s768 + $0x2d8] sm:$0xff] %vm930, 0.0
        %1023 = vst.msk [vmem:[%s768 + $0x2e0] sm:$0xff] %vm930, 0.0
        %1024 = vst.msk [vmem:[%s768 + $0x2e8] sm:$0xff] %vm930, 0.0
        %1025 = vst.msk [vmem:[%s768 + $0x2f0] sm:$0xff] %vm930, 0.0
        %1026 = vst.msk [vmem:[%s768 + $0x2f8] sm:$0xff] %vm930, 0.0
        %1027 = vst.msk [vmem:[%s768 + $0x300] sm:$0xff] %vm930, 0.0
        %1028 = vst.msk [vmem:[%s768 + $0x308] sm:$0xff] %vm930, 0.0
        %1029 = vst.msk [vmem:[%s768 + $0x310] sm:$0xff] %vm930, 0.0
        %1030 = vst.msk [vmem:[%s768 + $0x318] sm:$0xff] %vm930, 0.0
        %1031 = vst.msk [vmem:[%s768 + $0x320] sm:$0xff] %vm930, 0.0
        %1032 = vst.msk [vmem:[%s768 + $0x328] sm:$0xff] %vm930, 0.0
        %1033 = vst.msk [vmem:[%s768 + $0x330] sm:$0xff] %vm930, 0.0
        %1034 = vst.msk [vmem:[%s768 + $0x338] sm:$0xff] %vm930, 0.0
        %1035 = vst.msk [vmem:[%s768 + $0x340] sm:$0xff] %vm930, 0.0
        %1036 = vst.msk [vmem:[%s768 + $0x348] sm:$0xff] %vm930, 0.0
        %1037 = vst.msk [vmem:[%s768 + $0x350] sm:$0xff] %vm930, 0.0
        %1038 = vst.msk [vmem:[%s768 + $0x358] sm:$0xff] %vm930, 0.0
        %1039 = vst.msk [vmem:[%s768 + $0x360] sm:$0xff] %vm930, 0.0
        %1040 = vst.msk [vmem:[%s768 + $0x368] sm:$0xff] %vm930, 0.0
        %1041 = vst.msk [vmem:[%s768 + $0x370] sm:$0xff] %vm930, 0.0
        %1042 = vst.msk [vmem:[%s768 + $0x378] sm:$0xff] %vm930, 0.0
        %1043 = vst.msk [vmem:[%s768 + $0x380] sm:$0xff] %vm930, 0.0
        %1044 = vst.msk [vmem:[%s768 + $0x388] sm:$0xff] %vm930, 0.0
        %1045 = vst.msk [vmem:[%s768 + $0x390] sm:$0xff] %vm930, 0.0
        %1046 = vst.msk [vmem:[%s768 + $0x398] sm:$0xff] %vm930, 0.0
        %1047 = vst.msk [vmem:[%s768 + $0x3a0] sm:$0xff] %vm930, 0.0
        %1048 = vst.msk [vmem:[%s768 + $0x3a8] sm:$0xff] %vm930, 0.0
        %1049 = vst.msk [vmem:[%s768 + $0x3b0] sm:$0xff] %vm930, 0.0
        %1050 = vst.msk [vmem:[%s768 + $0x3b8] sm:$0xff] %vm930, 0.0
        %1051 = vst.msk [vmem:[%s768 + $0x3c0] sm:$0xff] %vm930, 0.0
        %1052 = vst.msk [vmem:[%s768 + $0x3c8] sm:$0xff] %vm930, 0.0
        %1053 = vst.msk [vmem:[%s768 + $0x3d0] sm:$0xff] %vm930, 0.0
        %1054 = vst.msk [vmem:[%s768 + $0x3d8] sm:$0xff] %vm930, 0.0
        %1055 = vst.msk [vmem:[%s768 + $0x3e0] sm:$0xff] %vm930, 0.0
        %1056 = vst.msk [vmem:[%s768 + $0x3e8] sm:$0xff] %vm930, 0.0
        %1057 = vst.msk [vmem:[%s768 + $0x3f0] sm:$0xff] %vm930, 0.0
        %1058 = vst.msk [vmem:[%s768 + $0x3f8] sm:$0xff] %vm930, 0.0
        %1059 = vst.msk [vmem:[%s768 + $0x400] sm:$0xff] %vm930, 0.0
        %1060 = vst.msk [vmem:[%s768 + $0x408] sm:$0xff] %vm930, 0.0
        %1061 = vst.msk [vmem:[%s768 + $0x410] sm:$0xff] %vm930, 0.0
        %1062 = vst.msk [vmem:[%s768 + $0x418] sm:$0xff] %vm930, 0.0
        %1063 = vst.msk [vmem:[%s768 + $0x420] sm:$0xff] %vm930, 0.0
        %1064 = vst.msk [vmem:[%s768 + $0x428] sm:$0xff] %vm930, 0.0
        %1065 = vst.msk [vmem:[%s768 + $0x430] sm:$0xff] %vm930, 0.0
        %1066 = vst.msk [vmem:[%s768 + $0x438] sm:$0xff] %vm930, 0.0
        %1067 = vst.msk [vmem:[%s768 + $0x440] sm:$0xff] %vm930, 0.0
        %1068 = vst.msk [vmem:[%s768 + $0x448] sm:$0xff] %vm930, 0.0
        %1069 = vst.msk [vmem:[%s768 + $0x450] sm:$0xff] %vm930, 0.0
        %1070 = vst.msk [vmem:[%s768 + $0x458] sm:$0xff] %vm930, 0.0
        %1071 = vst.msk [vmem:[%s768 + $0x460] sm:$0xff] %vm930, 0.0
        %1072 = vst.msk [vmem:[%s768 + $0x468] sm:$0xff] %vm930, 0.0
        %1073 = vst.msk [vmem:[%s768 + $0x470] sm:$0xff] %vm930, 0.0
        %1074 = vst.msk [vmem:[%s768 + $0x478] sm:$0xff] %vm930, 0.0
        %1075 = vst.msk [vmem:[%s768 + $0x480] sm:$0xff] %vm930, 0.0
        %1076 = vst.msk [vmem:[%s768 + $0x488] sm:$0xff] %vm930, 0.0
        %1077 = vst.msk [vmem:[%s768 + $0x490] sm:$0xff] %vm930, 0.0
        %1078 = vst.msk [vmem:[%s768 + $0x498] sm:$0xff] %vm930, 0.0
        %1079 = vst.msk [vmem:[%s768 + $0x4a0] sm:$0xff] %vm930, 0.0
        %1080 = vst.msk [vmem:[%s768 + $0x4a8] sm:$0xff] %vm930, 0.0
        %1081 = vst.msk [vmem:[%s768 + $0x4b0] sm:$0xff] %vm930, 0.0
        %1082 = vst.msk [vmem:[%s768 + $0x4b8] sm:$0xff] %vm930, 0.0
        %1083 = vst.msk [vmem:[%s768 + $0x4c0] sm:$0xff] %vm930, 0.0
        %1084 = vst.msk [vmem:[%s768 + $0x4c8] sm:$0xff] %vm930, 0.0
        %1085 = vst.msk [vmem:[%s768 + $0x4d0] sm:$0xff] %vm930, 0.0
        %1086 = vst.msk [vmem:[%s768 + $0x4d8] sm:$0xff] %vm930, 0.0
        %1087 = vst.msk [vmem:[%s768 + $0x4e0] sm:$0xff] %vm930, 0.0
        %1088 = vst.msk [vmem:[%s768 + $0x4e8] sm:$0xff] %vm930, 0.0
        %1089 = vst.msk [vmem:[%s768 + $0x4f0] sm:$0xff] %vm930, 0.0
        %1090 = vst.msk [vmem:[%s768 + $0x4f8] sm:$0xff] %vm930, 0.0
        %v1091 = vld [vmem:[%s1] sm:$0xff]
        %v1092 = vld [vmem:[%s1 + $0x8] sm:$0xff]
        %v1093 = vld [vmem:[%s2] sm:$0xff]
        %v1094 = vld [vmem:[%s2 + $0x8] sm:$0xff]
        %1096 = vset.pattern.permute.xlu0 0
        %1097 = vperm.xlu0 %1096, %v1093
        %v1098 = vpop.permute.xlu0 %1097
        %1101 = vset.pattern.permute.xlu0 0
        %1102 = vperm.xlu0 %1101, %v1094
        %v1103 = vpop.permute.xlu0 %1102
        %v1105 = vld [vmem:[%s3] sm:$0xff]
        %v1106 = vld [vmem:[%s3 + $0x8] sm:$0xff]
        %v1107 = vld [vmem:[%s5] sm:$0xff]
        %v1108 = vld [vmem:[%s5 + $0x8] sm:$0xff]
        %v1109 = vld [vmem:[%s4] sm:$0xff]
        %v1110 = vld [vmem:[%s4 + $0x8] sm:$0xff]
        %1112 = vset.pattern.permute.xlu0 0
        %1113 = vperm.xlu0 %1112, %v1109
        %v1114 = vpop.permute.xlu0 %1113
        %1117 = vset.pattern.permute.xlu0 0
        %1118 = vperm.xlu0 %1117, %v1110
        %v1119 = vpop.permute.xlu0 %1118
        %v1121 = vld [vmem:[%s6] sm:$0xff]
        %v1122 = vld [vmem:[%s6 + $0x8] sm:$0xff]
        %1124 = vset.pattern.permute.xlu0 0
        %1125 = vperm.xlu0 %1124, %v1121
        %v1126 = vpop.permute.xlu0 %1125
        %1129 = vset.pattern.permute.xlu0 0
        %1130 = vperm.xlu0 %1129, %v1122
        %v1131 = vpop.permute.xlu0 %1130
        %v1133 = vld [vmem:[%s7] sm:$0xff]
        %v1134 = vld [vmem:[%s7 + $0x8] sm:$0xff]
        %v1135 = vld [vmem:[%s7 + $0x10] sm:$0xff]
        %v1136 = vld [vmem:[%s7 + $0x18] sm:$0xff]
        %v1137 = vld [vmem:[%s7 + $0x20] sm:$0xff]
        %v1138 = vld [vmem:[%s7 + $0x28] sm:$0xff]
        %v1139 = vld [vmem:[%s7 + $0x30] sm:$0xff]
        %v1140 = vld [vmem:[%s7 + $0x38] sm:$0xff]
        %v1141 = vld [vmem:[%s7 + $0x40] sm:$0xff]
        %v1142 = vld [vmem:[%s7 + $0x48] sm:$0xff]
        %v1143 = vld [vmem:[%s7 + $0x50] sm:$0xff]
        %v1144 = vld [vmem:[%s7 + $0x58] sm:$0xff]
        %v1145 = vld [vmem:[%s7 + $0x60] sm:$0xff]
        %v1146 = vld [vmem:[%s7 + $0x68] sm:$0xff]
        %v1147 = vld [vmem:[%s7 + $0x70] sm:$0xff]
        %v1148 = vld [vmem:[%s7 + $0x78] sm:$0xff]
        %v1149 = vld [vmem:[%s7 + $0x80] sm:$0xff]
        %v1150 = vld [vmem:[%s7 + $0x88] sm:$0xff]
        %1152 = vset.pattern.permute.xlu0 0
        %1153 = vperm.xlu0 %1152, %v1133
        %v1154 = vpop.permute.xlu0 %1153
        %1157 = vset.pattern.permute.xlu0 0
        %1158 = vperm.xlu0 %1157, %v1134
        %v1159 = vpop.permute.xlu0 %1158
        %1162 = vset.pattern.permute.xlu0 0
        %1163 = vperm.xlu0 %1162, %v1135
        %v1164 = vpop.permute.xlu0 %1163
        %1167 = vset.pattern.permute.xlu0 0
        %1168 = vperm.xlu0 %1167, %v1136
        %v1169 = vpop.permute.xlu0 %1168
        %1172 = vset.pattern.permute.xlu0 0
        %1173 = vperm.xlu0 %1172, %v1137
        %v1174 = vpop.permute.xlu0 %1173
        %1177 = vset.pattern.permute.xlu0 0
        %1178 = vperm.xlu0 %1177, %v1138
        %v1179 = vpop.permute.xlu0 %1178
        %1182 = vset.pattern.permute.xlu0 0
        %1183 = vperm.xlu0 %1182, %v1139
        %v1184 = vpop.permute.xlu0 %1183
        %1187 = vset.pattern.permute.xlu0 0
        %1188 = vperm.xlu0 %1187, %v1140
        %v1189 = vpop.permute.xlu0 %1188
        %1192 = vset.pattern.permute.xlu0 0
        %1193 = vperm.xlu0 %1192, %v1141
        %v1194 = vpop.permute.xlu0 %1193
        %1197 = vset.pattern.permute.xlu0 0
        %1198 = vperm.xlu0 %1197, %v1142
        %v1199 = vpop.permute.xlu0 %1198
        %1202 = vset.pattern.permute.xlu0 0
        %1203 = vperm.xlu0 %1202, %v1143
        %v1204 = vpop.permute.xlu0 %1203
        %1207 = vset.pattern.permute.xlu0 0
        %1208 = vperm.xlu0 %1207, %v1144
        %v1209 = vpop.permute.xlu0 %1208
        %1212 = vset.pattern.permute.xlu0 0
        %1213 = vperm.xlu0 %1212, %v1145
        %v1214 = vpop.permute.xlu0 %1213
        %1217 = vset.pattern.permute.xlu0 0
        %1218 = vperm.xlu0 %1217, %v1146
        %v1219 = vpop.permute.xlu0 %1218
        %1222 = vset.pattern.permute.xlu0 0
        %1223 = vperm.xlu0 %1222, %v1147
        %v1224 = vpop.permute.xlu0 %1223
        %1227 = vset.pattern.permute.xlu0 0
        %1228 = vperm.xlu0 %1227, %v1148
        %v1229 = vpop.permute.xlu0 %1228
        %1232 = vset.pattern.permute.xlu0 0
        %1233 = vperm.xlu0 %1232, %v1149
        %v1234 = vpop.permute.xlu0 %1233
        %1237 = vset.pattern.permute.xlu0 0
        %1238 = vperm.xlu0 %1237, %v1150
        %v1239 = vpop.permute.xlu0 %1238
        %s1241 = sld [smem:[#allocation6]]
        %s1242 = sld [smem:[#allocation6 + $0x1]]
        %s1243 = sld [smem:[#allocation6 + $0x2]]
        loop: start=0, step=1, limit=80
        $region73: #{up_with_sk_forward.1} parent=67 // loop_pre_header
          _
        $region74: #{up_with_sk_forward.1} parent=67 // loop_header
          %s1245 = sphi 0, %s1249
          %p1246 = scmp.ge.s32.totalorder %s1245, 80
        $region75: #{up_with_sk_forward.1} parent=67 // loop_header_branch
          %1248 = sbr.rel (%p1246) target = $region79
        $region76: #{up_with_sk_forward.1} parent=67 // loop_body
          %s1250 = smul.u32 %s1245, 8
          %s1251 = scalar_lea.vmem %s422, %s1250
          %v1252 = vld [vmem:[%s1251] sm:$0xff]
          %s1253 = sadd.s32 %s1245, 1
          %s1254 = smul.u32 %s1253, 8
          %s1255 = scalar_lea.vmem %s422, %s1254
          %v1256 = vld [vmem:[%s1255] sm:$0xff]
          %s1257 = sadd.s32 %s1245, 2
          %s1258 = smul.u32 %s1257, 8
          %s1259 = scalar_lea.vmem %s422, %s1258
          %v1260 = vld [vmem:[%s1259] sm:$0xff]
          %1262 = vrot.lane.b32.xlu0 %v1252, 127
          %v1263 = vpop.permute.xlu0 %1262
          %1265 = vrot.lane.b32.xlu0 %v1252, 126
          %v1266 = vpop.permute.xlu0 %1265
          %1269 = vrot.lane.b32.xlu0 %v1256, 127
          %v1270 = vpop.permute.xlu0 %1269
          %1272 = vrot.lane.b32.xlu0 %v1256, 126
          %v1273 = vpop.permute.xlu0 %1272
          %1276 = vrot.lane.b32.xlu0 %v1260, 127
          %v1277 = vpop.permute.xlu0 %1276
          %1279 = vrot.lane.b32.xlu0 %v1260, 126
          %v1280 = vpop.permute.xlu0 %1279
          %vm1282 = vcmask 588800
          %v1284 = vsel %vm1282, %v1091, 0
          %v1287 = vsel %vm1282, %v1092, 0
          %1289 = vmatprep.subr.mxu0 0.0
          %1290 = vmatpush1.msra.mxu0 0.0
          %1291 = vmatprep.subr.mxu0 0.0
          %1292 = vmatpush1.msra.mxu0 0.0
          %1293 = vmatprep.subr.mxu0 0.0
          %1294 = vmatpush1.msra.mxu0 0.0
          %1295 = vmatprep.subr.mxu0 0.0
          %1296 = vmatpush1.msra.mxu0 0.0
          %1297 = vmatprep.subr.mxu0 0.0
          %1298 = vmatpush1.msra.mxu0 0.0
          %1299 = vmatprep.subr.mxu0 0.0
          %1300 = vmatpush1.msra.mxu0 0.0
          %1301 = vmatprep.subr.mxu0 0.0
          %1302 = vmatpush1.msra.mxu0 0.0
          %1303 = vmatprep.subr.mxu0 0.0
          %1304 = vmatpush1.msra.mxu0 %v1280
          %1305 = vmatprep.subr.mxu0 0.0
          %1306 = vmatpush1.msra.mxu0 %v1277
          %1307 = vmatprep.subr.mxu0 0.0
          %1308 = vmatpush1.msra.mxu0 %v1260
          %1309 = vmatprep.subr.mxu0 0.0
          %1310 = vmatpush1.msra.mxu0 %v1273
          %1311 = vmatprep.subr.mxu0 0.0
          %1312 = vmatpush1.msra.mxu0 %v1270
          %1313 = vmatprep.subr.mxu0 0.0
          %1314 = vmatpush1.msra.mxu0 %v1256
          %1315 = vmatprep.subr.mxu0 0.0
          %1316 = vmatpush1.msra.mxu0 %v1266
          %1317 = vmatprep.subr.mxu0 0.0
          %1318 = vmatpush1.msra.mxu0 %v1263
          %1319 = vmatprep.subr.mxu0 0.0
          %1320 = vmatpush1.msra.mxu0 %v1252
          %1321 = vmatprep.subr.mxu0 0.0
          %1322 = vmatpush2.msra.mxu0 0.0
          %1323 = vmatprep.subr.mxu0 0.0
          %1324 = vmatpush2.msra.mxu0 0.0
          %1325 = vmatprep.subr.mxu0 0.0
          %1326 = vmatpush2.msra.mxu0 0.0
          %1327 = vmatprep.subr.mxu0 0.0
          %1328 = vmatpush2.msra.mxu0 0.0
          %1329 = vmatprep.subr.mxu0 0.0
          %1330 = vmatpush2.msra.mxu0 0.0
          %1331 = vmatprep.subr.mxu0 0.0
          %1332 = vmatpush2.msra.mxu0 0.0
          %1333 = vmatprep.subr.mxu0 0.0
          %1334 = vmatpush2.msra.mxu0 0.0
          %1335 = vmatprep.subr.mxu0 0.0
          %1336 = vmatpush2.msra.mxu0 0.0
          %1337 = vmatprep.subr.mxu0 0.0
          %1338 = vmatpush2.msra.mxu0 0.0
          %1339 = vmatprep.subr.mxu0 0.0
          %1340 = vmatpush2.msra.mxu0 0.0
          %1341 = vmatprep.subr.mxu0 0.0
          %1342 = vmatpush2.msra.mxu0 0.0
          %1343 = vmatprep.subr.mxu0 0.0
          %1344 = vmatpush2.msra.mxu0 0.0
          %1345 = vmatprep.subr.mxu0 0.0
          %1346 = vmatpush2.msra.mxu0 0.0
          %1347 = vmatprep.subr.mxu0 0.0
          %1348 = vmatpush2.msra.mxu0 0.0
          %1349 = vmatprep.subr.mxu0 0.0
          %1350 = vmatpush2.msra.mxu0 0.0
          %1351 = vmatprep.subr.mxu0 0.0
          %1352 = vmatpush2.msra.mxu0 0.0
          %1353 = vmatprep.mubr.f32.mxu0 0.0
          %1354 = vmatmul.mubr.f32.gmra.mxu0 %v1284
          %v1355 = vpop.f32.mrf.mxu0
          %v1356 = vadd.f32 %v1098, %v1355
          %v1357 = vpop.f32.mrf.mxu0
          %1358 = vmatprep.mubr.f32.mxu0 0.0
          %1359 = vmatmul.mubr.f32.gmra.mxu0 %v1287
          %v1360 = vpop.f32.mrf.mxu0
          %v1361 = vadd.f32 %v1103, %v1360
          %v1362 = vpop.f32.mrf.mxu0
          %1363 = vdwg.mxu0
          %v1364 = vmax.f32 %v1356, 0.0
          %v1365 = vmax.f32 %v1361, 0.0
          %v1366 = vpack.c.bf16 %v1365, %v1364
          %v1368 = vunpack.c.l.b16 %v1366
          %v1369 = vunpack.c.h.b16 %v1366
          %v1370 = vpack.c.b16 %v1368, %v1368
          %v1371 = vpack.c.b16 %v1369, %v1369
          %1372 = vrot.lane.b32.xlu0 %v1370, 2
          %v1373 = vpop.permute.xlu0 %1372
          %1374 = vrot.lane.b32.xlu0 %v1371, 2
          %v1375 = vpop.permute.xlu0 %1374
          %s1378 = smul.u32 %s1257, 2
          %s1379 = smul.addr %s1378, 4
          %s1380 = scalar_lea.vmem [#allocation2], %s1379
          %vm1381 = vcmask 666640
          %1382 = vst.msk [vmem:[%s1380] sm:$0xf] %vm1381, %v1373
          %1383 = vst.msk [vmem:[%s1380 + $0x4] sm:$0xf] %vm1381, %v1375
        $region77: #{up_with_sk_forward.1} parent=67 // loop_footer
          %s1249 = sadd.s32 1, %s1245
        $region78: #{up_with_sk_forward.1} parent=67 // loop_footer_branch
          %1244 = sbr.rel target = $region74
        $region79: #{up_with_sk_forward.1} parent=67 // loop_exit
          _
        loop: start=0, step=1, limit=80
        $region80: #{up_with_sk_forward.1} parent=67 // loop_pre_header
          _
        $region81: #{up_with_sk_forward.1} parent=67 // loop_header
          %s1385 = sphi 0, %s1389
          %p1386 = scmp.ge.s32.totalorder %s1385, 80
        $region82: #{up_with_sk_forward.1} parent=67 // loop_header_branch
          %1388 = sbr.rel (%p1386) target = $region86
        $region83: #{up_with_sk_forward.1} parent=67 // loop_body
          %s1390 = smul.u32 %s1385, 2
          %s1391 = smul.addr %s1390, 4
          %s1392 = scalar_lea.vmem [#allocation2], %s1391
          %v1393 = vld [vmem:[%s1392] sm:$0xf]
          %v1394 = vld [vmem:[%s1392 + $0x4] sm:$0xf]
          %s1395 = sadd.s32 %s1385, 1
          %s1396 = smul.u32 %s1395, 2
          %s1397 = smul.addr %s1396, 4
          %s1398 = scalar_lea.vmem [#allocation2], %s1397
          %v1399 = vld [vmem:[%s1398] sm:$0xf]
          %v1400 = vld [vmem:[%s1398 + $0x4] sm:$0xf]
          %s1401 = sadd.s32 %s1385, 2
          %s1402 = smul.u32 %s1401, 2
          %s1403 = smul.addr %s1402, 4
          %s1404 = scalar_lea.vmem [#allocation2], %s1403
          %v1405 = vld [vmem:[%s1404] sm:$0xf]
          %v1406 = vld [vmem:[%s1404 + $0x4] sm:$0xf]
          %s1407 = sadd.s32 %s1385, 3
          %s1408 = smul.u32 %s1407, 2
          %s1409 = smul.addr %s1408, 4
          %s1410 = scalar_lea.vmem [#allocation2], %s1409
          %v1411 = vld [vmem:[%s1410] sm:$0xf]
          %v1412 = vld [vmem:[%s1410 + $0x4] sm:$0xf]
          %s1413 = sadd.s32 %s1385, 4
          %s1414 = smul.u32 %s1413, 2
          %s1415 = smul.addr %s1414, 4
          %s1416 = scalar_lea.vmem [#allocation2], %s1415
          %v1417 = vld [vmem:[%s1416] sm:$0xf]
          %v1418 = vld [vmem:[%s1416 + $0x4] sm:$0xf]
          %v1421 = vunpack.c.l.b16 %v1399
          %v1422 = vunpack.c.l.b16 %v1400
          %v1423 = vpack.c.b16 %v1422, %v1421
          %1424 = vrot.lane.b32.xlu0 %v1423, 127
          %v1425 = vpop.permute.xlu0 %1424
          %1426 = vrot.lane.b32.xlu0 %v1423, 126
          %v1427 = vpop.permute.xlu0 %1426
          %v1430 = vunpack.c.l.b16 %v1405
          %v1431 = vunpack.c.l.b16 %v1406
          %v1432 = vpack.c.b16 %v1431, %v1430
          %1433 = vrot.lane.b32.xlu0 %v1432, 127
          %v1434 = vpop.permute.xlu0 %1433
          %1435 = vrot.lane.b32.xlu0 %v1432, 126
          %v1436 = vpop.permute.xlu0 %1435
          %v1439 = vunpack.c.l.b16 %v1411
          %v1440 = vunpack.c.l.b16 %v1412
          %v1441 = vpack.c.b16 %v1440, %v1439
          %1442 = vrot.lane.b32.xlu0 %v1441, 127
          %v1443 = vpop.permute.xlu0 %1442
          %1444 = vrot.lane.b32.xlu0 %v1441, 126
          %v1445 = vpop.permute.xlu0 %1444
          %v1448 = vunpack.c.l.b16 %v1105
          %v1449 = vunpack.c.h.b16 %v1105
          %v1450 = vunpack.c.l.b16 %v1106
          %v1451 = vunpack.c.h.b16 %v1106
          %v1452 = vpack.c.b16 %v1450, %v1448
          %v1453 = vpack.c.b16 %v1451, %v1449
          %1455 = vrot.lane.b32.xlu0 %v1425, 127
          %v1456 = vpop.permute.xlu0 %1455
          %1457 = vrot.lane.b32.xlu0 %v1427, 127
          %v1458 = vpop.permute.xlu0 %1457
          %1459 = vrot.lane.b32.xlu0 %v1434, 127
          %v1460 = vpop.permute.xlu0 %1459
          %1461 = vrot.lane.b32.xlu0 %v1436, 127
          %v1462 = vpop.permute.xlu0 %1461
          %1463 = vrot.lane.b32.xlu0 %v1443, 127
          %v1464 = vpop.permute.xlu0 %1463
          %1465 = vrot.lane.b32.xlu0 %v1445, 127
          %v1466 = vpop.permute.xlu0 %1465
          %vm1476 = vcmask 130048
          %v1478 = vsel %vm1476, %v1453, 0
          %1480 = vmatprep.subr.bf16.mxu0 0
          %1481 = vmatpush1.bf16.msra.mxu0 %v1464
          %1482 = vmatprep.subr.bf16.mxu0 0
          %1483 = vmatpush1.bf16.msra.mxu0 %v1443
          %1484 = vmatprep.subr.bf16.mxu0 0
          %1485 = vmatpush1.bf16.msra.mxu0 %v1462
          %1486 = vmatprep.subr.bf16.mxu0 0
          %1487 = vmatpush1.bf16.msra.mxu0 %v1460
          %1488 = vmatprep.subr.bf16.mxu0 0
          %1489 = vmatpush1.bf16.msra.mxu0 %v1434
          %1490 = vmatprep.subr.bf16.mxu0 0
          %1491 = vmatpush1.bf16.msra.mxu0 %v1458
          %1492 = vmatprep.subr.bf16.mxu0 0
          %1493 = vmatpush1.bf16.msra.mxu0 %v1456
          %1494 = vmatprep.subr.bf16.mxu0 0
          %1495 = vmatpush1.bf16.msra.mxu0 %v1425
          %1496 = vmatprep.subr.bf16.mxu0 0
          %1497 = vmatpush2.bf16.msra.mxu0 0
          %1498 = vmatprep.subr.bf16.mxu0 0
          %1499 = vmatpush2.bf16.msra.mxu0 0
          %1500 = vmatprep.subr.bf16.mxu0 0
          %1501 = vmatpush2.bf16.msra.mxu0 0
          %1502 = vmatprep.subr.bf16.mxu0 0
          %1503 = vmatpush2.bf16.msra.mxu0 0
          %1504 = vmatprep.subr.bf16.mxu0 0
          %1505 = vmatpush2.bf16.msra.mxu0 0
          %1506 = vmatprep.subr.bf16.mxu0 0
          %1507 = vmatpush2.bf16.msra.mxu0 0
          %1508 = vmatprep.subr.bf16.mxu0 0
          %1509 = vmatpush2.bf16.msra.mxu0 0
          %1510 = vmatprep.subr.bf16.mxu0 0
          %1511 = vmatpush2.bf16.msra.mxu0 %v1466
          %1512 = vmatprep.mubr.bf16.mxu0 %v1478
          %1513 = vmatmul.mubr.bf16.gmra.mxu0 %v1452
          %v1514 = vpop.f32.mrf.mxu0
          %v1515 = vadd.f32 %v1114, %v1514
          %v1516 = vpop.f32.mrf.mxu0
          %v1517 = vpop.f32.mrf.mxu0
          %v1518 = vadd.f32 %v1119, %v1517
          %v1519 = vpop.f32.mrf.mxu0
          %1520 = vdwg.mxu0
          %v1521 = vmax.f32 %v1515, 0.0
          %v1522 = vmax.f32 %v1518, 0.0
          %s1523 = smul.u32 %s1385, 16
          %s1524 = scalar_lea.vmem [#allocation3], %s1523
          %vm1525 = vcmask 654336
          %1526 = vst.msk [vmem:[%s1524] sm:$0xff] %vm1525, %v1521
          %1527 = vst.msk [vmem:[%s1524 + $0x8] sm:$0xff] %vm1525, %v1522
          %v1530 = vunpack.c.l.b16 %v1393
          %v1531 = vunpack.c.l.b16 %v1394
          %v1532 = vpack.c.b16 %v1531, %v1530
          %1534 = vrot.lane.b32.xlu0 %v1532, 126
          %v1535 = vpop.permute.xlu0 %1534
          %1537 = vrot.lane.b32.xlu0 %v1532, 124
          %v1538 = vpop.permute.xlu0 %1537
          %1542 = vrot.lane.b32.xlu0 %v1432, 124
          %v1543 = vpop.permute.xlu0 %1542
          %v1547 = vunpack.c.l.b16 %v1417
          %v1548 = vunpack.c.l.b16 %v1418
          %v1549 = vpack.c.b16 %v1548, %v1547
          %1551 = vrot.lane.b32.xlu0 %v1549, 126
          %v1552 = vpop.permute.xlu0 %1551
          %1554 = vrot.lane.b32.xlu0 %v1549, 124
          %v1555 = vpop.permute.xlu0 %1554
          %v1559 = vunpack.c.l.b16 %v1107
          %v1560 = vunpack.c.h.b16 %v1107
          %v1561 = vunpack.c.l.b16 %v1108
          %v1562 = vunpack.c.h.b16 %v1108
          %v1563 = vpack.c.b16 %v1561, %v1559
          %v1564 = vpack.c.b16 %v1562, %v1560
          %v1567 = vsel %vm1476, %v1564, 0
          %1569 = vmatprep.subr.bf16.mxu0 0
          %1570 = vmatpush1.bf16.msra.mxu0 %v1552
          %1571 = vmatprep.subr.bf16.mxu0 0
          %1572 = vmatpush1.bf16.msra.mxu0 %v1549
          %1573 = vmatprep.subr.bf16.mxu0 0
          %1574 = vmatpush1.bf16.msra.mxu0 %v1543
          %1575 = vmatprep.subr.bf16.mxu0 0
          %1576 = vmatpush1.bf16.msra.mxu0 %v1436
          %1577 = vmatprep.subr.bf16.mxu0 0
          %1578 = vmatpush1.bf16.msra.mxu0 %v1432
          %1579 = vmatprep.subr.bf16.mxu0 0
          %1580 = vmatpush1.bf16.msra.mxu0 %v1538
          %1581 = vmatprep.subr.bf16.mxu0 0
          %1582 = vmatpush1.bf16.msra.mxu0 %v1535
          %1583 = vmatprep.subr.bf16.mxu0 0
          %1584 = vmatpush1.bf16.msra.mxu0 %v1532
          %1585 = vmatprep.subr.bf16.mxu0 0
          %1586 = vmatpush2.bf16.msra.mxu0 0
          %1587 = vmatprep.subr.bf16.mxu0 0
          %1588 = vmatpush2.bf16.msra.mxu0 0
          %1589 = vmatprep.subr.bf16.mxu0 0
          %1590 = vmatpush2.bf16.msra.mxu0 0
          %1591 = vmatprep.subr.bf16.mxu0 0
          %1592 = vmatpush2.bf16.msra.mxu0 0
          %1593 = vmatprep.subr.bf16.mxu0 0
          %1594 = vmatpush2.bf16.msra.mxu0 0
          %1595 = vmatprep.subr.bf16.mxu0 0
          %1596 = vmatpush2.bf16.msra.mxu0 0
          %1597 = vmatprep.subr.bf16.mxu0 0
          %1598 = vmatpush2.bf16.msra.mxu0 0
          %1599 = vmatprep.subr.bf16.mxu0 0
          %1600 = vmatpush2.bf16.msra.mxu0 %v1555
          %1601 = vmatprep.mubr.bf16.mxu0 %v1567
          %1602 = vmatmul.mubr.bf16.gmra.mxu0 %v1563
          %v1603 = vpop.f32.mrf.mxu0
          %v1604 = vadd.f32 %v1126, %v1603
          %v1605 = vpop.f32.mrf.mxu0
          %v1606 = vpop.f32.mrf.mxu0
          %v1607 = vadd.f32 %v1131, %v1606
          %v1608 = vpop.f32.mrf.mxu0
          %1609 = vdwg.mxu0
          %v1610 = vmax.f32 %v1604, 0.0
          %v1611 = vmax.f32 %v1607, 0.0
          %s1612 = scalar_lea.vmem [#allocation4], %s1523
          %1613 = vst.msk [vmem:[%s1612] sm:$0xff] %vm1525, %v1610
          %1614 = vst.msk [vmem:[%s1612 + $0x8] sm:$0xff] %vm1525, %v1611
          %v1615 = vadd.f32 %v1521, %v1610
          %v1616 = vadd.f32 %v1522, %v1611
          %1619 = vrot.lane.b32.xlu0 %v1615, 1
          %v1620 = vpop.permute.xlu0 %1619
          %1621 = vrot.lane.b32.xlu0 %v1616, 1
          %v1622 = vpop.permute.xlu0 %1621
          %s1625 = smul.u32 %s1395, 16
          %s1626 = scalar_lea.vmem [#allocation5], %s1625
          %vm1627 = vcmask 662536
          %1628 = vst.msk [vmem:[%s1626] sm:$0xff] %vm1627, %v1620
          %1629 = vst.msk [vmem:[%s1626 + $0x8] sm:$0xff] %vm1627, %v1622
        $region84: #{up_with_sk_forward.1} parent=67 // loop_footer
          %s1389 = sadd.s32 1, %s1385
        $region85: #{up_with_sk_forward.1} parent=67 // loop_footer_branch
          %1384 = sbr.rel target = $region81
        $region86: #{up_with_sk_forward.1} parent=67 // loop_exit
          _
        loop: start=0, step=1, limit=80
        $region87: #{up_with_sk_forward.1} parent=67 // loop_pre_header
          _
        $region88: #{up_with_sk_forward.1} parent=67 // loop_header
          %s1631 = sphi 0, %s1635
          %p1632 = scmp.ge.s32.totalorder %s1631, 80
          %v1636 = vphi 0.0, %v1773
          %v1637 = vphi 0.0, %v1774
        $region89: #{up_with_sk_forward.1} parent=67 // loop_header_branch
          %1634 = sbr.rel (%p1632) target = $region93
        $region90: #{up_with_sk_forward.1} parent=67 // loop_body
          %s1638 = smul.u32 %s1631, 16
          %s1639 = scalar_lea.vmem [#allocation5], %s1638
          %v1640 = vld [vmem:[%s1639] sm:$0xff]
          %v1641 = vld [vmem:[%s1639 + $0x8] sm:$0xff]
          %s1642 = sadd.s32 %s1631, 1
          %s1643 = smul.u32 %s1642, 16
          %s1644 = scalar_lea.vmem [#allocation5], %s1643
          %v1645 = vld [vmem:[%s1644] sm:$0xff]
          %v1646 = vld [vmem:[%s1644 + $0x8] sm:$0xff]
          %s1647 = sadd.s32 %s1631, 2
          %s1648 = smul.u32 %s1647, 16
          %s1649 = scalar_lea.vmem [#allocation5], %s1648
          %v1650 = vld [vmem:[%s1649] sm:$0xff]
          %v1651 = vld [vmem:[%s1649 + $0x8] sm:$0xff]
          %1654 = vrot.lane.b32.xlu0 %v1640, 127
          %v1655 = vpop.permute.xlu0 %1654
          %1656 = vrot.lane.b32.xlu0 %v1641, 127
          %v1657 = vpop.permute.xlu0 %1656
          %1660 = vrot.lane.b32.xlu0 %v1640, 126
          %v1661 = vpop.permute.xlu0 %1660
          %1662 = vrot.lane.b32.xlu0 %v1641, 126
          %v1663 = vpop.permute.xlu0 %1662
          %1668 = vrot.lane.b32.xlu0 %v1645, 127
          %v1669 = vpop.permute.xlu0 %1668
          %1670 = vrot.lane.b32.xlu0 %v1646, 127
          %v1671 = vpop.permute.xlu0 %1670
          %1674 = vrot.lane.b32.xlu0 %v1645, 126
          %v1675 = vpop.permute.xlu0 %1674
          %1676 = vrot.lane.b32.xlu0 %v1646, 126
          %v1677 = vpop.permute.xlu0 %1676
          %1682 = vrot.lane.b32.xlu0 %v1650, 127
          %v1683 = vpop.permute.xlu0 %1682
          %1684 = vrot.lane.b32.xlu0 %v1651, 127
          %v1685 = vpop.permute.xlu0 %1684
          %1688 = vrot.lane.b32.xlu0 %v1650, 126
          %v1689 = vpop.permute.xlu0 %1688
          %1690 = vrot.lane.b32.xlu0 %v1651, 126
          %v1691 = vpop.permute.xlu0 %1690
          %v1694 = vmul.f32 %v1640, %v1154
          %v1695 = vmul.f32 %v1641, %v1159
          %v1696 = vmul.f32 %v1655, %v1164
          %v1697 = vmul.f32 %v1657, %v1169
          %v1698 = vmul.f32 %v1661, %v1174
          %v1699 = vmul.f32 %v1663, %v1179
          %v1700 = vmul.f32 %v1645, %v1184
          %v1701 = vmul.f32 %v1646, %v1189
          %v1702 = vmul.f32 %v1669, %v1194
          %v1703 = vmul.f32 %v1671, %v1199
          %v1704 = vmul.f32 %v1675, %v1204
          %v1705 = vmul.f32 %v1677, %v1209
          %v1706 = vmul.f32 %v1650, %v1214
          %v1707 = vmul.f32 %v1651, %v1219
          %v1708 = vmul.f32 %v1683, %v1224
          %v1709 = vmul.f32 %v1685, %v1229
          %v1710 = vmul.f32 %v1689, %v1234
          %v1711 = vmul.f32 %v1691, %v1239
          %vm1712 = vcmask 654336
          %v1713 = vsel %vm1712, %v1694, 0.0
          %v1714 = vsel %vm1712, %v1695, 0.0
          %v1715 = vadd.f32 %v1713, %v1714
          %v1716 = vsel %vm1712, %v1696, 0.0
          %v1717 = vadd.f32 %v1715, %v1716
          %v1718 = vsel %vm1712, %v1697, 0.0
          %v1719 = vadd.f32 %v1717, %v1718
          %v1720 = vsel %vm1712, %v1698, 0.0
          %v1721 = vadd.f32 %v1719, %v1720
          %v1722 = vsel %vm1712, %v1699, 0.0
          %v1723 = vadd.f32 %v1721, %v1722
          %v1724 = vsel %vm1712, %v1700, 0.0
          %v1725 = vadd.f32 %v1723, %v1724
          %v1726 = vsel %vm1712, %v1701, 0.0
          %v1727 = vadd.f32 %v1725, %v1726
          %v1728 = vsel %vm1712, %v1702, 0.0
          %v1729 = vadd.f32 %v1727, %v1728
          %v1730 = vsel %vm1712, %v1703, 0.0
          %v1731 = vadd.f32 %v1729, %v1730
          %v1732 = vsel %vm1712, %v1704, 0.0
          %v1733 = vadd.f32 %v1731, %v1732
          %v1734 = vsel %vm1712, %v1705, 0.0
          %v1735 = vadd.f32 %v1733, %v1734
          %v1736 = vsel %vm1712, %v1706, 0.0
          %v1737 = vadd.f32 %v1735, %v1736
          %v1738 = vsel %vm1712, %v1707, 0.0
          %v1739 = vadd.f32 %v1737, %v1738
          %v1740 = vsel %vm1712, %v1708, 0.0
          %v1741 = vadd.f32 %v1739, %v1740
          %v1742 = vsel %vm1712, %v1709, 0.0
          %v1743 = vadd.f32 %v1741, %v1742
          %v1744 = vsel %vm1712, %v1710, 0.0
          %v1745 = vadd.f32 %v1743, %v1744
          %v1746 = vsel %vm1712, %v1711, 0.0
          %v1747 = vadd.f32 %v1745, %v1746
          %v1748 = vrot.slane %v1747, 4
          %v1749 = vadd.f32 %v1747, %v1748
          %v1750 = vrot.slane %v1749, 2
          %v1751 = vadd.f32 %v1749, %v1750
          %v1752 = vrot.slane %v1751, 1
          %v1753 = vadd.f32 %v1751, %v1752
          %v1754 = vstv %s1241
          %v1755 = vadd.f32 %v1753, %v1754
          %v1756 = vmax.f32 %v1755, 0.0
          %v1757 = vstv %s1242
          %v1758 = vmul.f32 %v1756, %v1757
          %v1759 = vstv %s1243
          %v1760 = vadd.f32 %v1758, %v1759
          %v1761 = vxor.u32 %v1760, 2147483648
          %v1762 = vmul.f32 %v1761, 1.442695
          %v1763 = vpow.pop %v1762
          %v1764 = vadd.f32 %v1763, 1.0
          %v1765 = vrcp.pop %v1764
          %v1766 = vmul.f32 1.0, %v1765
          %1768 = vrot.lane.b32.xlu0 %v1766, 1
          %v1769 = vpop.permute.xlu0 %1768
          %v1771 = vmul.f32 %v1645, %v1769
          %v1772 = vmul.f32 %v1646, %v1769
          %v1773 = vadd.f32 %v1636, %v1771
          %v1774 = vadd.f32 %v1637, %v1772
        $region91: #{up_with_sk_forward.1} parent=67 // loop_footer
          %s1635 = sadd.s32 1, %s1631
        $region92: #{up_with_sk_forward.1} parent=67 // loop_footer_branch
          %1630 = sbr.rel target = $region88
        $region93: #{up_with_sk_forward.1} parent=67 // loop_exit
          _
        %1777 = vrot.lane.b32.xlu0 %v1636, 127
        %v1778 = vpop.permute.xlu0 %1777
        %1779 = vrot.lane.b32.xlu0 %v1637, 127
        %v1780 = vpop.permute.xlu0 %1779
        %vm1783 = vcmask 654336
        %v1784 = vsel %vm1783, %v1778, 0.0
        %1785 = vadd.xlane.f32.xlu0 %v1784
        %v1786 = vpop.xlane.xlu0 %1785
        %v1787 = vsel %vm1783, %v1780, 0.0
        %1788 = vadd.xlane.f32.xlu0 %v1787
        %v1789 = vpop.xlane.xlu0 %1788
        %v1790 = vmul.f32 %v1786, 0.00015625
        %v1791 = vmul.f32 %v1789, 0.00015625
        %v1792 = vld [vmem:[%s9] sm:$0xff]
        %v1793 = vld [vmem:[%s9 + $0x8] sm:$0xff]
        %v1794 = vmul.f32 %v1792, %v1790
        %v1795 = vmul.f32 %v1793, %v1791
        %vm1796 = vcmask 64512
        %v1797 = vsel %vm1796, %v1794, 0.0
        %v1798 = vsel %vm1796, %v1795, 0.0
        %v1799 = vadd.f32 %v1797, %v1798
        %v1800 = vrot.slane %v1799, 4
        %v1801 = vadd.f32 %v1799, %v1800
        %v1802 = vrot.slane %v1801, 2
        %v1803 = vadd.f32 %v1801, %v1802
        %v1804 = vrot.slane %v1803, 1
        %v1805 = vadd.f32 %v1803, %v1804
        %v1806 = vld [vmem:[%s10] sm:$0xff]
        %v1807 = vld [vmem:[%s10 + $0x8] sm:$0xff]
        %v1808 = vmul.f32 %v1806, %v1805
        %v1809 = vmul.f32 %v1807, %v1805
        %v1810 = vsel %vm1796, %v1808, 0.0
        %1811 = vadd.xlane.f32.xlu0 %v1810
        %v1812 = vpop.xlane.xlu0 %1811
        %v1813 = vsel %vm1796, %v1809, 0.0
        %1814 = vadd.xlane.f32.xlu0 %v1813
        %v1815 = vpop.xlane.xlu0 %1814
        %v1816 = vld [vmem:[%s11] sm:$0xff]
        %v1817 = vld [vmem:[%s11 + $0x8] sm:$0xff]
        %v1818 = vmul.f32 %v1816, %v1805
        %v1819 = vmul.f32 %v1817, %v1805
        %v1820 = vsel %vm1796, %v1818, 0.0
        %1821 = vadd.xlane.f32.xlu0 %v1820
        %v1822 = vpop.xlane.xlu0 %1821
        %v1823 = vsel %vm1796, %v1819, 0.0
        %1824 = vadd.xlane.f32.xlu0 %v1823
        %v1825 = vpop.xlane.xlu0 %1824
        %v1826 = vmax.f32 %v1812, %v1822
        %v1827 = vmax.f32 %v1815, %v1825
        %v1828 = vsub.f32 %v1812, %v1826
        %v1829 = vsub.f32 %v1815, %v1827
        %v1830 = vmul.f32 %v1828, 1.442695
        %v1831 = vpow.pop %v1830
        %v1832 = vmul.f32 %v1829, 1.442695
        %v1833 = vpow.pop %v1832
        %v1834 = vsub.f32 %v1822, %v1826
        %v1835 = vsub.f32 %v1825, %v1827
        %v1836 = vmul.f32 %v1834, 1.442695
        %v1837 = vpow.pop %v1836
        %v1838 = vmul.f32 %v1835, 1.442695
        %v1839 = vpow.pop %v1838
        %v1840 = vadd.f32 %v1831, %v1837
        %v1841 = vadd.f32 %v1833, %v1839
        %v1842 = vrcp.pop %v1840
        %v1843 = vmul.f32 1.0, %v1842
        %v1844 = vrcp.pop %v1841
        %v1845 = vmul.f32 1.0, %v1844
        %v1846 = vmul.f32 %v1831, %v1843
        %v1847 = vmul.f32 %v1833, %v1845
        %v1848 = vmul.f32 %v1837, %v1843
        %v1849 = vmul.f32 %v1839, %v1845
        loop: start=0, step=1, limit=80
        $region94: #{up_with_sk_forward.1} parent=67 // loop_pre_header
          _
        $region95: #{up_with_sk_forward.1} parent=67 // loop_header
          %s1851 = sphi 0, %s1855
          %p1852 = scmp.ge.s32.totalorder %s1851, 80
        $region96: #{up_with_sk_forward.1} parent=67 // loop_header_branch
          %1854 = sbr.rel (%p1852) target = $region100
        $region97: #{up_with_sk_forward.1} parent=67 // loop_body
          %s1856 = smul.u32 %s1851, 16
          %s1857 = scalar_lea.vmem [#allocation3], %s1856
          %v1858 = vld [vmem:[%s1857] sm:$0xff]
          %v1859 = vld [vmem:[%s1857 + $0x8] sm:$0xff]
          %v1860 = vmul.f32 %v1858, %v1846
          %v1861 = vmul.f32 %v1859, %v1847
          %s1862 = scalar_lea.vmem [#allocation4], %s1856
          %v1863 = vld [vmem:[%s1862] sm:$0xff]
          %v1864 = vld [vmem:[%s1862 + $0x8] sm:$0xff]
          %v1865 = vmul.f32 %v1863, %v1848
          %v1866 = vmul.f32 %v1864, %v1849
          %v1867 = vadd.f32 %v1860, %v1865
          %v1868 = vadd.f32 %v1861, %v1866
          %s1869 = scalar_lea.vmem %s427, %s1856
          %1870 = vst.msk [vmem:[%s1869] sm:$0xff] %vm1783, %v1867
          %1871 = vst.msk [vmem:[%s1869 + $0x8] sm:$0xff] %vm1783, %v1868
        $region98: #{up_with_sk_forward.1} parent=67 // loop_footer
          %s1855 = sadd.s32 1, %s1851
        $region99: #{up_with_sk_forward.1} parent=67 // loop_footer_branch
          %1850 = sbr.rel target = $region95
        $region100: #{up_with_sk_forward.1} parent=67 // loop_exit
          _
        %p1872 = scmp.lt.s32.totalorder %s24, 1
        %s1873 = scalar_select %p1872, %s24, 1
        %s1874 = smul.addr %s1873, 160
        %s1875 = smul.addr %s1874, 8
        %s1876 = scalar_lea.vmem %s12, %s1875
        // Predicated region
        $region101: #{up_with_sk_forward.1} parent=67 // pred_check
          %p1877 = pneg %p299
        $region102: #{up_with_sk_forward.1} parent=67 // pred_check_branch
          %1879 = sbr.rel (%p1877) target = $region104
        $region103: #{up_with_sk_forward.1} parent=67 // pred_region
          _
        $region104: #{up_with_sk_forward.1} parent=67 // pred_fallthru
          _
      $region68: #{up_with_sk_forward.1} parent=5 // pred_fallthru
        _
      %p1880 = scmp.le.s32.totalorder 2, %s19
      // Predicated region
      $region105: #{up_with_sk_forward.1} parent=5 // pred_check
        %p1881 = pneg %p1880
      $region106: #{up_with_sk_forward.1} parent=5 // pred_check_branch
        %1883 = sbr.rel (%p1881) target = $region108
      $region107: #{up_with_sk_forward.1} parent=5 // pred_region
        %s1884 = ssub.s32 %s19, 2
        // Predicated region
        $region109: #{up_with_sk_forward.1} parent=107 // pred_check
          %p1885 = pneg %p305
        $region110: #{up_with_sk_forward.1} parent=107 // pred_check_branch
          %1887 = sbr.rel (%p1885) target = $region112
        $region111: #{up_with_sk_forward.1} parent=107 // pred_region
          %p1888 = scmp.lt.s32.totalorder %s25, 1
          %s1889 = scalar_select %p1888, %s25, 1
          %s1890 = smul.addr %s1889, 160
          %s1891 = smul.addr %s1890, 8
          %s1892 = scalar_lea.vmem %s12, %s1891
        $region112: #{up_with_sk_forward.1} parent=107 // pred_fallthru
          _
      $region108: #{up_with_sk_forward.1} parent=5 // pred_fallthru
        _
    $region6: #{up_with_sk_forward.1} parent=1 // loop_footer
      %s23 = sadd.s32 1, %s19
    $region7: #{up_with_sk_forward.1} parent=1 // loop_footer_branch
      %18 = sbr.rel target = $region3
    $region8: #{up_with_sk_forward.1} parent=1 // loop_exit
      _
    %1893 = vsyncpa [#allocation7], 1
    %s1894 = scalar_lea.sflag [#allocation7], 1
    %1895 = vsyncpa %s1894, 1

</llo_original>
